<compile_context>
chip_gen: v6e
topology: v6e:2x2x1
jax: 0.10.0
libtpu: 0.0.40
codegen_flags: <defaults>
</compile_context>

<pallas_src>
import jax
import jax.numpy as jnp
from jax.experimental import pallas as pl
from jax.experimental.pallas import tpu as pltpu

# ---- model hyper-parameters (PyTorch module defaults; voxel_dim chosen = 32) ----
X_DIM = 7
VOXEL_DIM = 32
LATENT_DIM = 16
ENC_HIDDEN = (256, 256)
DEC_HIDDEN = (256, 256)
MODE_HIDDEN = (512, 512, 512)
MODE_DIM = 5
IN_DIM = X_DIM + VOXEL_DIM

# ---- packed lane-dense input slab ([*, 64]) ----
IN_W = 64
POSE_OFF = 0           # pose  -> lanes [0, 7)
VOX_OFF = 32           # voxel -> lanes [32, 64)

# ---- packed lane-dense output slab layout ([*, 128]) ----
OUT_W = 128
Y_OFF = 0              # y       -> lanes [0, 5)    (sigmoid)
REC_OFF = 32           # recon   -> lanes [32, 64)  (sigmoid)
MEAN_OFF = 64          # mean    -> lanes [64, 80)  (identity)
LV_OFF = 80            # log_var -> lanes [80, 96)  (identity)
SIGMOID_BOUND = MEAN_OFF  # lanes < 64 -> sigmoid, lanes >= 64 -> linear

# fused output-head K dimension: [g (512) | d (256) | h (256)]
HEAD_K = MODE_HIDDEN[2] + DEC_HIDDEN[1] + ENC_HIDDEN[1]


def modenet_kernel(
    xv_ref, eps_ref,
    # VAE encoder (enc1 takes the packed [*,64] input; pose rows are zero)
    ew1, eb1, ew2, eb2, wm, bm, wl, bl,
    # VAE decoder hidden
    dw1, db1, dw2, db2,
    # mode FC head hidden (fc1 split: packed-input pose part + z part)
    fw1p, fw1z, fb1, fw2, fb2, fw3, fb3,
    # fused output heads: one [1024, 128] weight + packed bias
    sw_all, sb,
    # output
    out_ref,
):
    f32 = jnp.float32
    bf16 = jnp.bfloat16

    def dot(a, w_ref):
        # bf16 MXU inputs, f32 accumulation (valid on v5e/v6e/v7x)
        return jnp.dot(a.astype(bf16), w_ref[...], preferred_element_type=f32)

    def lin(a, w_ref, b_ref):
        return dot(a, w_ref) + b_ref[...]

    def relu(a):
        return jnp.maximum(a, 0.0)

    xv = xv_ref[...].astype(f32)      # packed [tile, 64]: pose cols 0:7, voxel cols 32:64
    eps = eps_ref[...].astype(f32)

    # ---- VAE encoder (ew1 has zero rows for the pose lanes) ----
    h = relu(lin(xv, ew1, eb1))
    h = relu(lin(h, ew2, eb2))
    mean = lin(h, wm, bm)
    log_var = lin(h, wl, bl)

    # ---- reparameterization: z = mean + eps * exp(0.5 * log_var) ----
    z = mean + eps * jnp.exp(0.5 * log_var)

    # ---- VAE decoder hidden ----
    d = relu(lin(z, dw1, db1))
    d = relu(lin(d, dw2, db2))

    # ---- mode FC head hidden: fc1 split (fw1p has zero rows for voxel lanes) ----
    # TODO(synk): nn.Dropout treated as eval-mode identity (deterministic kernel).
    g = relu(dot(xv, fw1p) + dot(z, fw1z) + fb1[...])
    g = relu(lin(g, fw2, fb2))
    g = relu(lin(g, fw3, fb3))

    # ---- fused output heads: one K=1024 MXU pass into the packed slab ----
    # [g | d | h] is a pure lane-group concatenation (512/256/256 widths), and
    # sw_all stacks fc4/dec3/(mean,logvar) weights row-wise into disjoint
    # output-column ranges, so the MXU does all the packing.
    gdh = jnp.concatenate(
        [g.astype(bf16), d.astype(bf16), h.astype(bf16)], axis=1)
    slab = jnp.dot(gdh, sw_all[...], preferred_element_type=f32) + sb[...]

    lane = jax.lax.broadcasted_iota(jnp.int32, slab.shape, 1)
    # exact sigmoid: EUP exp + exact EUP reciprocal (MXU-bound kernel -> free)
    sig = pl.reciprocal(1.0 + jnp.exp(-slab))
    out_ref[...] = jnp.where(lane < SIGMOID_BOUND, sig, slab).astype(out_ref.dtype)


def init_params(key):
    """PyTorch-Linear-style init: U(-1/sqrt(fan_in), 1/sqrt(fan_in)); W stored [in, out]."""
    params = {}

    def add_linear(k, name, din, dout):
        kw, kb = jax.random.split(k)
        scale = 1.0 / (din ** 0.5)
        params[name + "_w"] = jax.random.uniform(kw, (din, dout), jnp.float32, -scale, scale)
        params[name + "_b"] = jax.random.uniform(kb, (1, dout), jnp.float32, -scale, scale)

    keys = jax.random.split(key, 11)
    add_linear(keys[0], "enc1", VOXEL_DIM, ENC_HIDDEN[0])
    add_linear(keys[1], "enc2", ENC_HIDDEN[0], ENC_HIDDEN[1])
    add_linear(keys[2], "mean", ENC_HIDDEN[1], LATENT_DIM)
    add_linear(keys[3], "logvar", ENC_HIDDEN[1], LATENT_DIM)
    add_linear(keys[4], "dec1", LATENT_DIM, DEC_HIDDEN[0])
    add_linear(keys[5], "dec2", DEC_HIDDEN[0], DEC_HIDDEN[1])
    add_linear(keys[6], "dec3", DEC_HIDDEN[1], VOXEL_DIM)
    add_linear(keys[7], "fc1", X_DIM + LATENT_DIM, MODE_HIDDEN[0])
    add_linear(keys[8], "fc2", MODE_HIDDEN[0], MODE_HIDDEN[1])
    add_linear(keys[9], "fc3", MODE_HIDDEN[1], MODE_HIDDEN[2])
    add_linear(keys[10], "fc4", MODE_HIDDEN[2], MODE_DIM)
    return params


def _pack_kernel_operands(params):
    """Kernel weight operands: bf16 weights, f32 biases, packed-input & fused-head weights."""
    bf16 = jnp.bfloat16

    def w(name):
        return params[name + "_w"].astype(bf16)

    def b(name):
        return params[name + "_b"].astype(jnp.float32)

    def place_rows(mat, off, nrows):
        out = jnp.zeros((nrows, mat.shape[1]), mat.dtype)
        return out.at[off:off + mat.shape[0], :].set(mat)

    def place_cols(mat, off):
        out = jnp.zeros((mat.shape[0], OUT_W), mat.dtype)
        return out.at[:, off:off + mat.shape[1]].set(mat)

    # enc1 / fc1-pose take the packed [*, 64] input: zero-pad unused rows.
    enc1_packed = place_rows(params["enc1_w"], VOX_OFF, IN_W).astype(bf16)    # [64, 256]
    fc1_w = params["fc1_w"]
    fc1p_packed = place_rows(fc1_w[:X_DIM, :], POSE_OFF, IN_W).astype(bf16)   # [64, 512]
    fc1z = fc1_w[X_DIM:, :].astype(bf16)                                      # [16, 512]

    # Fused output-head weight: rows must match the kernel's [g | d | h] order.
    sw_all = jnp.concatenate(
        [place_cols(params["fc4_w"], Y_OFF),                                  # [512, 128]
         place_cols(params["dec3_w"], REC_OFF),                               # [256, 128]
         (place_cols(params["mean_w"], MEAN_OFF)
          + place_cols(params["logvar_w"], LV_OFF))],                         # [256, 128]
        axis=0).astype(bf16)                                                  # [1024, 128]

    slab_b = jnp.zeros((1, OUT_W), jnp.float32)
    slab_b = slab_b.at[:, Y_OFF:Y_OFF + MODE_DIM].set(params["fc4_b"])
    slab_b = slab_b.at[:, REC_OFF:REC_OFF + VOXEL_DIM].set(params["dec3_b"])
    slab_b = slab_b.at[:, MEAN_OFF:MEAN_OFF + LATENT_DIM].set(params["mean_b"])
    slab_b = slab_b.at[:, LV_OFF:LV_OFF + LATENT_DIM].set(params["logvar_b"])

    return [
        enc1_packed, b("enc1"), w("enc2"), b("enc2"),
        w("mean"), b("mean"), w("logvar"), b("logvar"),
        w("dec1"), b("dec1"), w("dec2"), b("dec2"),
        fc1p_packed, fc1z, b("fc1"), w("fc2"), b("fc2"), w("fc3"), b("fc3"),
        sw_all, slab_b,
    ]


def _round_up(n, m):
    return ((n + m - 1) // m) * m


def _cdiv(a, b):
    return (a + b - 1) // b


def _select_tile(B, batch_tile):
    """Pick (tile, Bp) bounding padding waste to <16 rows/step (16-row bf16 floor),
    forcing >=2 grid steps when B is large enough so v7x can use both TensorCores,
    and capping the tile at 512 so v5e's 16 MiB scoped-VMEM default always suffices."""
    steps = max(_cdiv(B, batch_tile), 1)
    if _round_up(B, 16) >= 32:
        steps = max(steps, 2)          # keep both v7x TensorCores busy
    tile = _round_up(_cdiv(B, steps), 16)
    tile = min(tile, 512)              # v5e scoped-VMEM safety
    steps = _cdiv(B, tile)
    return tile, steps * tile


def modenet_forward(x, eps, params, *, batch_tile=512):
    """Returns (y, voxel, recon_voxel, mean, log_var) like ModeNet.forward."""
    B, D = x.shape
    assert D == IN_DIM
    voxel = x[:, X_DIM:]

    tile, Bp = _select_tile(B, batch_tile)

    # Pack pose + voxel into one lane-dense [B, 64] input (unmasked 64-wide DMA).
    xv = jnp.zeros((Bp, IN_W), jnp.float32)
    xv = xv.at[:B, POSE_OFF:POSE_OFF + X_DIM].set(x[:, :X_DIM])
    xv = xv.at[:B, VOX_OFF:VOX_OFF + VOXEL_DIM].set(voxel)
    eps_k = jnp.pad(eps, ((0, Bp - B), (0, 0))) if Bp != B else eps

    weights = _pack_kernel_operands(params)

    def batched(feat):
        return pl.BlockSpec((tile, feat), lambda i: (i, 0))

    def stationary(p):
        # Whole parameter resident in VMEM; constant index_map => no re-DMA per step.
        return pl.BlockSpec(p.shape, lambda i: (0, 0))

    in_specs = ([batched(IN_W), batched(LATENT_DIM)]
                + [stationary(p) for p in weights])

    flops = 2 * Bp * (
        IN_W * ENC_HIDDEN[0] + ENC_HIDDEN[0] * ENC_HIDDEN[1]
        + 2 * ENC_HIDDEN[1] * LATENT_DIM
        + LATENT_DIM * DEC_HIDDEN[0] + DEC_HIDDEN[0] * DEC_HIDDEN[1]
        + (IN_W + LATENT_DIM) * MODE_HIDDEN[0]
        + MODE_HIDDEN[0] * MODE_HIDDEN[1] + MODE_HIDDEN[1] * MODE_HIDDEN[2]
        + HEAD_K * OUT_W
    )
    transcendentals = Bp * (LATENT_DIM + 2 * OUT_W)
    bytes_accessed = (
        (xv.size + eps_k.size + Bp * OUT_W) * 4
        + sum(int(p.size) * p.dtype.itemsize for p in weights)
    )

    slab = pl.pallas_call(
        modenet_kernel,
        out_shape=jax.ShapeDtypeStruct((Bp, OUT_W), jnp.float32),
        grid=(Bp // tile,),
        in_specs=in_specs,
        out_specs=batched(OUT_W),
        compiler_params=pltpu.CompilerParams(
            dimension_semantics=("parallel",),
        ),
        cost_estimate=pl.CostEstimate(
            flops=flops,
            transcendentals=transcendentals,
            bytes_accessed=bytes_accessed,
        ),
    )(xv, eps_k, *weights)

    y = slab[:B, Y_OFF:Y_OFF + MODE_DIM]
    recon = slab[:B, REC_OFF:REC_OFF + VOXEL_DIM]
    mean = slab[:B, MEAN_OFF:MEAN_OFF + LATENT_DIM]
    log_var = slab[:B, LV_OFF:LV_OFF + LATENT_DIM]
    return y, voxel, recon, mean, log_var


def modenet_reference(x, eps, params):
    """Pure-JAX f32 reference of ModeNet.forward (for correctness checking)."""
    relu = lambda a: jnp.maximum(a, 0.0)
    lin = lambda a, n: a @ params[n + "_w"] + params[n + "_b"]
    x_pose = x[:, :X_DIM]
    voxel = x[:, X_DIM:]
    h = relu(lin(voxel, "enc1"))
    h = relu(lin(h, "enc2"))
    mean = lin(h, "mean")
    log_var = lin(h, "logvar")
    z = mean + eps * jnp.exp(0.5 * log_var)
    d = relu(lin(z, "dec1"))
    d = relu(lin(d, "dec2"))
    recon = jax.nn.sigmoid(lin(d, "dec3"))
    xf = jnp.concatenate([x_pose, z], axis=1)
    g = relu(lin(xf, "fc1"))
    g = relu(lin(g, "fc2"))
    g = relu(lin(g, "fc3"))
    y = jax.nn.sigmoid(lin(g, "fc4"))
    return y, voxel, recon, mean, log_var


if __name__ == "__main__":
    key = jax.random.PRNGKey(0)
    k_params, k_pose, k_vox, k_eps = jax.random.split(key, 4)

    B = 16
    params = init_params(k_params)
    # input row: [pose (7), voxel occupancy (32)]
    x_pose = jax.random.uniform(k_pose, (B, X_DIM), jnp.float32, -1.0, 1.0)
    voxel_in = (jax.random.uniform(k_vox, (B, VOXEL_DIM)) > 0.5).astype(jnp.float32)
    x = jnp.concatenate([x_pose, voxel_in], axis=1)
    # deterministic reparameterization noise (stands in for torch.randn in the VAE)
    eps = jax.random.normal(k_eps, (B, LATENT_DIM), jnp.float32)

    y, voxel, recon_voxel, mean, log_var = jax.block_until_ready(
        modenet_forward(x, eps, params)
    )

    assert y.shape == (B, MODE_DIM)
    assert voxel.shape == (B, VOXEL_DIM)
    assert recon_voxel.shape == (B, VOXEL_DIM)
    assert mean.shape == (B, LATENT_DIM)
    assert log_var.shape == (B, LATENT_DIM)
    for o in (y, recon_voxel, mean, log_var):
        assert bool(jnp.all(jnp.isfinite(o)))

    # Compare against the pure-JAX f32 reference (kernel uses bf16 MXU inputs,
    # so the tolerance absorbs bf16 accumulation noise).
    y_r, _, recon_r, mean_r, lv_r = modenet_reference(x, eps, params)
    assert float(jnp.max(jnp.abs(y - y_r))) < 5e-2
    assert float(jnp.max(jnp.abs(recon_voxel - recon_r))) < 5e-2
    assert float(jnp.max(jnp.abs(mean - mean_r))) < 5e-2
    assert float(jnp.max(jnp.abs(log_var - lv_r))) < 5e-2

    # Exercise the padded / multi-step (v7x two-TC) tile-selection path once.
    B2 = 300
    k2a, k2b, k2c = jax.random.split(jax.random.PRNGKey(1), 3)
    x2 = jnp.concatenate(
        [jax.random.uniform(k2a, (B2, X_DIM), jnp.float32, -1.0, 1.0),
         (jax.random.uniform(k2b, (B2, VOXEL_DIM)) > 0.5).astype(jnp.float32)], axis=1)
    eps2 = jax.random.normal(k2c, (B2, LATENT_DIM), jnp.float32)
    y2, _, recon2, mean2, lv2 = jax.block_until_ready(modenet_forward(x2, eps2, params))
    y2_r, _, recon2_r, mean2_r, lv2_r = modenet_reference(x2, eps2, params)
    assert y2.shape == (B2, MODE_DIM)
    assert float(jnp.max(jnp.abs(y2 - y2_r))) < 5e-2
    assert float(jnp.max(jnp.abs(recon2 - recon2_r))) < 5e-2
    assert float(jnp.max(jnp.abs(mean2 - mean2_r))) < 5e-2
    assert float(jnp.max(jnp.abs(lv2 - lv2_r))) < 5e-2

    print("KERNEL_OK")
</pallas_src>

<mosaic_0001>
module attributes {stable_mosaic.version = 11 : i64} {
  func.func @modenet_kernel(%arg0: i32, %arg1: memref<16x64xf32, #tpu.memory_space<vmem>>, %arg2: memref<16x16xf32, #tpu.memory_space<vmem>>, %arg3: memref<64x256xbf16, #tpu.memory_space<vmem>>, %arg4: memref<1x256xf32, #tpu.memory_space<vmem>>, %arg5: memref<256x256xbf16, #tpu.memory_space<vmem>>, %arg6: memref<1x256xf32, #tpu.memory_space<vmem>>, %arg7: memref<256x16xbf16, #tpu.memory_space<vmem>>, %arg8: memref<1x16xf32, #tpu.memory_space<vmem>>, %arg9: memref<256x16xbf16, #tpu.memory_space<vmem>>, %arg10: memref<1x16xf32, #tpu.memory_space<vmem>>, %arg11: memref<16x256xbf16, #tpu.memory_space<vmem>>, %arg12: memref<1x256xf32, #tpu.memory_space<vmem>>, %arg13: memref<256x256xbf16, #tpu.memory_space<vmem>>, %arg14: memref<1x256xf32, #tpu.memory_space<vmem>>, %arg15: memref<64x512xbf16, #tpu.memory_space<vmem>>, %arg16: memref<16x512xbf16, #tpu.memory_space<vmem>>, %arg17: memref<1x512xf32, #tpu.memory_space<vmem>>, %arg18: memref<512x512xbf16, #tpu.memory_space<vmem>>, %arg19: memref<1x512xf32, #tpu.memory_space<vmem>>, %arg20: memref<512x512xbf16, #tpu.memory_space<vmem>>, %arg21: memref<1x512xf32, #tpu.memory_space<vmem>>, %arg22: memref<1024x128xbf16, #tpu.memory_space<vmem>>, %arg23: memref<1x128xf32, #tpu.memory_space<vmem>>, %arg24: memref<16x128xf32, #tpu.memory_space<vmem>>) attributes {dimension_semantics = [#tpu.dimension_semantics<parallel>], iteration_bounds = array<i64: 1>, scalar_prefetch = 0 : i64, scratch_operands = 0 : i64, tpu.core_type = #tpu.core_type<tc>, window_params = [{transform_indices = @transform_0, window_bounds = array<i64: 16, 64>}, {transform_indices = @transform_1, window_bounds = array<i64: 16, 16>}, {pipeline_mode = #tpu.pipeline_mode<synchronous>, transform_indices = @transform_2, window_bounds = array<i64: 64, 256>}, {pipeline_mode = #tpu.pipeline_mode<synchronous>, transform_indices = @transform_3, window_bounds = array<i64: 1, 256>}, {pipeline_mode = #tpu.pipeline_mode<synchronous>, transform_indices = @transform_4, window_bounds = array<i64: 256, 256>}, {pipeline_mode = #tpu.pipeline_mode<synchronous>, transform_indices = @transform_5, window_bounds = array<i64: 1, 256>}, {pipeline_mode = #tpu.pipeline_mode<synchronous>, transform_indices = @transform_6, window_bounds = array<i64: 256, 16>}, {pipeline_mode = #tpu.pipeline_mode<synchronous>, transform_indices = @transform_7, window_bounds = array<i64: 1, 16>}, {pipeline_mode = #tpu.pipeline_mode<synchronous>, transform_indices = @transform_8, window_bounds = array<i64: 256, 16>}, {pipeline_mode = #tpu.pipeline_mode<synchronous>, transform_indices = @transform_9, window_bounds = array<i64: 1, 16>}, {pipeline_mode = #tpu.pipeline_mode<synchronous>, transform_indices = @transform_10, window_bounds = array<i64: 16, 256>}, {pipeline_mode = #tpu.pipeline_mode<synchronous>, transform_indices = @transform_11, window_bounds = array<i64: 1, 256>}, {pipeline_mode = #tpu.pipeline_mode<synchronous>, transform_indices = @transform_12, window_bounds = array<i64: 256, 256>}, {pipeline_mode = #tpu.pipeline_mode<synchronous>, transform_indices = @transform_13, window_bounds = array<i64: 1, 256>}, {pipeline_mode = #tpu.pipeline_mode<synchronous>, transform_indices = @transform_14, window_bounds = array<i64: 64, 512>}, {pipeline_mode = #tpu.pipeline_mode<synchronous>, transform_indices = @transform_15, window_bounds = array<i64: 16, 512>}, {pipeline_mode = #tpu.pipeline_mode<synchronous>, transform_indices = @transform_16, window_bounds = array<i64: 1, 512>}, {pipeline_mode = #tpu.pipeline_mode<synchronous>, transform_indices = @transform_17, window_bounds = array<i64: 512, 512>}, {pipeline_mode = #tpu.pipeline_mode<synchronous>, transform_indices = @transform_18, window_bounds = array<i64: 1, 512>}, {pipeline_mode = #tpu.pipeline_mode<synchronous>, transform_indices = @transform_19, window_bounds = array<i64: 512, 512>}, {pipeline_mode = #tpu.pipeline_mode<synchronous>, transform_indices = @transform_20, window_bounds = array<i64: 1, 512>}, {pipeline_mode = #tpu.pipeline_mode<synchronous>, transform_indices = @transform_21, window_bounds = array<i64: 1024, 128>}, {pipeline_mode = #tpu.pipeline_mode<synchronous>, transform_indices = @transform_22, window_bounds = array<i64: 1, 128>}, {transform_indices = @transform_23, window_bounds = array<i64: 16, 128>}]} {
    %c0 = arith.constant 0 : index
    %c0_0 = arith.constant 0 : index
    %0 = vector.load %arg1[%c0, %c0_0] : memref<16x64xf32, #tpu.memory_space<vmem>>, vector<16x64xf32>
    %c0_1 = arith.constant 0 : index
    %c0_2 = arith.constant 0 : index
    %1 = vector.load %arg2[%c0_1, %c0_2] : memref<16x16xf32, #tpu.memory_space<vmem>>, vector<16x16xf32>
    %2 = arith.truncf %0 : vector<16x64xf32> to vector<16x64xbf16>
    %c0_3 = arith.constant 0 : index
    %c0_4 = arith.constant 0 : index
    %3 = vector.load %arg3[%c0_3, %c0_4] : memref<64x256xbf16, #tpu.memory_space<vmem>>, vector<64x256xbf16>
    %cst = arith.constant dense<0.000000e+00> : vector<16x256xf32>
    %4 = tpu.matmul %2, %3, %cst {dimension_numbers = #tpu.dot_dimension_numbers<[1], [0], [0], [1], [0, 0, 1, 1], [], []>} : vector<16x64xbf16>, vector<64x256xbf16>, vector<16x256xf32> -> vector<16x256xf32>
    %c0_5 = arith.constant 0 : index
    %c0_6 = arith.constant 0 : index
    %5 = vector.load %arg4[%c0_5, %c0_6] : memref<1x256xf32, #tpu.memory_space<vmem>>, vector<1x256xf32>
    %6 = vector.broadcast %5 : vector<1x256xf32> to vector<16x256xf32>
    %7 = arith.addf %4, %6 : vector<16x256xf32>
    %cst_7 = arith.constant 0.000000e+00 : f32
    %8 = vector.broadcast %cst_7 : f32 to vector<16x256xf32>
    %9 = arith.maximumf %7, %8 : vector<16x256xf32>
    %10 = arith.truncf %9 : vector<16x256xf32> to vector<16x256xbf16>
    %c0_8 = arith.constant 0 : index
    %c0_9 = arith.constant 0 : index
    %11 = vector.load %arg5[%c0_8, %c0_9] : memref<256x256xbf16, #tpu.memory_space<vmem>>, vector<256x256xbf16>
    %cst_10 = arith.constant dense<0.000000e+00> : vector<16x256xf32>
    %12 = tpu.matmul %10, %11, %cst_10 {dimension_numbers = #tpu.dot_dimension_numbers<[1], [0], [0], [1], [0, 0, 1, 1], [], []>} : vector<16x256xbf16>, vector<256x256xbf16>, vector<16x256xf32> -> vector<16x256xf32>
    %c0_11 = arith.constant 0 : index
    %c0_12 = arith.constant 0 : index
    %13 = vector.load %arg6[%c0_11, %c0_12] : memref<1x256xf32, #tpu.memory_space<vmem>>, vector<1x256xf32>
    %14 = vector.broadcast %13 : vector<1x256xf32> to vector<16x256xf32>
    %15 = arith.addf %12, %14 : vector<16x256xf32>
    %cst_13 = arith.constant 0.000000e+00 : f32
    %16 = vector.broadcast %cst_13 : f32 to vector<16x256xf32>
    %17 = arith.maximumf %15, %16 : vector<16x256xf32>
    %18 = arith.truncf %17 : vector<16x256xf32> to vector<16x256xbf16>
    %c0_14 = arith.constant 0 : index
    %c0_15 = arith.constant 0 : index
    %19 = vector.load %arg7[%c0_14, %c0_15] : memref<256x16xbf16, #tpu.memory_space<vmem>>, vector<256x16xbf16>
    %cst_16 = arith.constant dense<0.000000e+00> : vector<16x16xf32>
    %20 = tpu.matmul %18, %19, %cst_16 {dimension_numbers = #tpu.dot_dimension_numbers<[1], [0], [0], [1], [0, 0, 1, 1], [], []>} : vector<16x256xbf16>, vector<256x16xbf16>, vector<16x16xf32> -> vector<16x16xf32>
    %c0_17 = arith.constant 0 : index
    %c0_18 = arith.constant 0 : index
    %21 = vector.load %arg8[%c0_17, %c0_18] : memref<1x16xf32, #tpu.memory_space<vmem>>, vector<1x16xf32>
    %22 = vector.broadcast %21 : vector<1x16xf32> to vector<16x16xf32>
    %23 = arith.addf %20, %22 : vector<16x16xf32>
    %24 = arith.truncf %17 : vector<16x256xf32> to vector<16x256xbf16>
    %c0_19 = arith.constant 0 : index
    %c0_20 = arith.constant 0 : index
    %25 = vector.load %arg9[%c0_19, %c0_20] : memref<256x16xbf16, #tpu.memory_space<vmem>>, vector<256x16xbf16>
    %cst_21 = arith.constant dense<0.000000e+00> : vector<16x16xf32>
    %26 = tpu.matmul %24, %25, %cst_21 {dimension_numbers = #tpu.dot_dimension_numbers<[1], [0], [0], [1], [0, 0, 1, 1], [], []>} : vector<16x256xbf16>, vector<256x16xbf16>, vector<16x16xf32> -> vector<16x16xf32>
    %c0_22 = arith.constant 0 : index
    %c0_23 = arith.constant 0 : index
    %27 = vector.load %arg10[%c0_22, %c0_23] : memref<1x16xf32, #tpu.memory_space<vmem>>, vector<1x16xf32>
    %28 = vector.broadcast %27 : vector<1x16xf32> to vector<16x16xf32>
    %29 = arith.addf %26, %28 : vector<16x16xf32>
    %cst_24 = arith.constant 5.000000e-01 : f32
    %30 = vector.broadcast %cst_24 : f32 to vector<16x16xf32>
    %31 = arith.mulf %30, %29 : vector<16x16xf32>
    %32 = math.exp %31 : vector<16x16xf32>
    %33 = arith.mulf %1, %32 : vector<16x16xf32>
    %34 = arith.addf %23, %33 : vector<16x16xf32>
    %35 = arith.truncf %34 : vector<16x16xf32> to vector<16x16xbf16>
    %c0_25 = arith.constant 0 : index
    %c0_26 = arith.constant 0 : index
    %36 = vector.load %arg11[%c0_25, %c0_26] : memref<16x256xbf16, #tpu.memory_space<vmem>>, vector<16x256xbf16>
    %cst_27 = arith.constant dense<0.000000e+00> : vector<16x256xf32>
    %37 = tpu.matmul %35, %36, %cst_27 {dimension_numbers = #tpu.dot_dimension_numbers<[1], [0], [0], [1], [0, 0, 1, 1], [], []>} : vector<16x16xbf16>, vector<16x256xbf16>, vector<16x256xf32> -> vector<16x256xf32>
    %c0_28 = arith.constant 0 : index
    %c0_29 = arith.constant 0 : index
    %38 = vector.load %arg12[%c0_28, %c0_29] : memref<1x256xf32, #tpu.memory_space<vmem>>, vector<1x256xf32>
    %39 = vector.broadcast %38 : vector<1x256xf32> to vector<16x256xf32>
    %40 = arith.addf %37, %39 : vector<16x256xf32>
    %cst_30 = arith.constant 0.000000e+00 : f32
    %41 = vector.broadcast %cst_30 : f32 to vector<16x256xf32>
    %42 = arith.maximumf %40, %41 : vector<16x256xf32>
    %43 = arith.truncf %42 : vector<16x256xf32> to vector<16x256xbf16>
    %c0_31 = arith.constant 0 : index
    %c0_32 = arith.constant 0 : index
    %44 = vector.load %arg13[%c0_31, %c0_32] : memref<256x256xbf16, #tpu.memory_space<vmem>>, vector<256x256xbf16>
    %cst_33 = arith.constant dense<0.000000e+00> : vector<16x256xf32>
    %45 = tpu.matmul %43, %44, %cst_33 {dimension_numbers = #tpu.dot_dimension_numbers<[1], [0], [0], [1], [0, 0, 1, 1], [], []>} : vector<16x256xbf16>, vector<256x256xbf16>, vector<16x256xf32> -> vector<16x256xf32>
    %c0_34 = arith.constant 0 : index
    %c0_35 = arith.constant 0 : index
    %46 = vector.load %arg14[%c0_34, %c0_35] : memref<1x256xf32, #tpu.memory_space<vmem>>, vector<1x256xf32>
    %47 = vector.broadcast %46 : vector<1x256xf32> to vector<16x256xf32>
    %48 = arith.addf %45, %47 : vector<16x256xf32>
    %cst_36 = arith.constant 0.000000e+00 : f32
    %49 = vector.broadcast %cst_36 : f32 to vector<16x256xf32>
    %50 = arith.maximumf %48, %49 : vector<16x256xf32>
    %51 = arith.truncf %0 : vector<16x64xf32> to vector<16x64xbf16>
    %c0_37 = arith.constant 0 : index
    %c0_38 = arith.constant 0 : index
    %52 = vector.load %arg15[%c0_37, %c0_38] : memref<64x512xbf16, #tpu.memory_space<vmem>>, vector<64x512xbf16>
    %cst_39 = arith.constant dense<0.000000e+00> : vector<16x512xf32>
    %53 = tpu.matmul %51, %52, %cst_39 {dimension_numbers = #tpu.dot_dimension_numbers<[1], [0], [0], [1], [0, 0, 1, 1], [], []>} : vector<16x64xbf16>, vector<64x512xbf16>, vector<16x512xf32> -> vector<16x512xf32>
    %54 = arith.truncf %34 : vector<16x16xf32> to vector<16x16xbf16>
    %c0_40 = arith.constant 0 : index
    %c0_41 = arith.constant 0 : index
    %55 = vector.load %arg16[%c0_40, %c0_41] : memref<16x512xbf16, #tpu.memory_space<vmem>>, vector<16x512xbf16>
    %cst_42 = arith.constant dense<0.000000e+00> : vector<16x512xf32>
    %56 = tpu.matmul %54, %55, %cst_42 {dimension_numbers = #tpu.dot_dimension_numbers<[1], [0], [0], [1], [0, 0, 1, 1], [], []>} : vector<16x16xbf16>, vector<16x512xbf16>, vector<16x512xf32> -> vector<16x512xf32>
    %57 = arith.addf %53, %56 : vector<16x512xf32>
    %c0_43 = arith.constant 0 : index
    %c0_44 = arith.constant 0 : index
    %58 = vector.load %arg17[%c0_43, %c0_44] : memref<1x512xf32, #tpu.memory_space<vmem>>, vector<1x512xf32>
    %59 = vector.broadcast %58 : vector<1x512xf32> to vector<16x512xf32>
    %60 = arith.addf %57, %59 : vector<16x512xf32>
    %cst_45 = arith.constant 0.000000e+00 : f32
    %61 = vector.broadcast %cst_45 : f32 to vector<16x512xf32>
    %62 = arith.maximumf %60, %61 : vector<16x512xf32>
    %63 = arith.truncf %62 : vector<16x512xf32> to vector<16x512xbf16>
    %c0_46 = arith.constant 0 : index
    %c0_47 = arith.constant 0 : index
    %64 = vector.load %arg18[%c0_46, %c0_47] : memref<512x512xbf16, #tpu.memory_space<vmem>>, vector<512x512xbf16>
    %cst_48 = arith.constant dense<0.000000e+00> : vector<16x512xf32>
    %65 = tpu.matmul %63, %64, %cst_48 {dimension_numbers = #tpu.dot_dimension_numbers<[1], [0], [0], [1], [0, 0, 1, 1], [], []>} : vector<16x512xbf16>, vector<512x512xbf16>, vector<16x512xf32> -> vector<16x512xf32>
    %c0_49 = arith.constant 0 : index
    %c0_50 = arith.constant 0 : index
    %66 = vector.load %arg19[%c0_49, %c0_50] : memref<1x512xf32, #tpu.memory_space<vmem>>, vector<1x512xf32>
    %67 = vector.broadcast %66 : vector<1x512xf32> to vector<16x512xf32>
    %68 = arith.addf %65, %67 : vector<16x512xf32>
    %cst_51 = arith.constant 0.000000e+00 : f32
    %69 = vector.broadcast %cst_51 : f32 to vector<16x512xf32>
    %70 = arith.maximumf %68, %69 : vector<16x512xf32>
    %71 = arith.truncf %70 : vector<16x512xf32> to vector<16x512xbf16>
    %c0_52 = arith.constant 0 : index
    %c0_53 = arith.constant 0 : index
    %72 = vector.load %arg20[%c0_52, %c0_53] : memref<512x512xbf16, #tpu.memory_space<vmem>>, vector<512x512xbf16>
    %cst_54 = arith.constant dense<0.000000e+00> : vector<16x512xf32>
    %73 = tpu.matmul %71, %72, %cst_54 {dimension_numbers = #tpu.dot_dimension_numbers<[1], [0], [0], [1], [0, 0, 1, 1], [], []>} : vector<16x512xbf16>, vector<512x512xbf16>, vector<16x512xf32> -> vector<16x512xf32>
    %c0_55 = arith.constant 0 : index
    %c0_56 = arith.constant 0 : index
    %74 = vector.load %arg21[%c0_55, %c0_56] : memref<1x512xf32, #tpu.memory_space<vmem>>, vector<1x512xf32>
    %75 = vector.broadcast %74 : vector<1x512xf32> to vector<16x512xf32>
    %76 = arith.addf %73, %75 : vector<16x512xf32>
    %cst_57 = arith.constant 0.000000e+00 : f32
    %77 = vector.broadcast %cst_57 : f32 to vector<16x512xf32>
    %78 = arith.maximumf %76, %77 : vector<16x512xf32>
    %79 = arith.truncf %78 : vector<16x512xf32> to vector<16x512xbf16>
    %80 = arith.truncf %50 : vector<16x256xf32> to vector<16x256xbf16>
    %81 = arith.truncf %17 : vector<16x256xf32> to vector<16x256xbf16>
    %82 = tpu.concatenate %79, %80, %81 in 1 : vector<16x512xbf16>, vector<16x256xbf16>, vector<16x256xbf16> -> vector<16x1024xbf16>
    %c0_58 = arith.constant 0 : index
    %c0_59 = arith.constant 0 : index
    %83 = vector.load %arg22[%c0_58, %c0_59] : memref<1024x128xbf16, #tpu.memory_space<vmem>>, vector<1024x128xbf16>
    %cst_60 = arith.constant dense<0.000000e+00> : vector<16x128xf32>
    %84 = tpu.matmul %82, %83, %cst_60 {dimension_numbers = #tpu.dot_dimension_numbers<[1], [0], [0], [1], [0, 0, 1, 1], [], []>} : vector<16x1024xbf16>, vector<1024x128xbf16>, vector<16x128xf32> -> vector<16x128xf32>
    %c0_61 = arith.constant 0 : index
    %c0_62 = arith.constant 0 : index
    %85 = vector.load %arg23[%c0_61, %c0_62] : memref<1x128xf32, #tpu.memory_space<vmem>>, vector<1x128xf32>
    %86 = vector.broadcast %85 : vector<1x128xf32> to vector<16x128xf32>
    %87 = arith.addf %84, %86 : vector<16x128xf32>
    %88 = tpu.iota {dimensions = array<i32: 1>} : vector<16x128xi32>
    %cst_63 = arith.constant 0.000000e+00 : f32
    %89 = vector.broadcast %cst_63 : f32 to vector<16x128xf32>
    %90 = arith.subf %89, %87 : vector<16x128xf32>
    %91 = math.exp %90 : vector<16x128xf32>
    %cst_64 = arith.constant 1.000000e+00 : f32
    %92 = vector.broadcast %cst_64 : f32 to vector<16x128xf32>
    %93 = arith.addf %92, %91 : vector<16x128xf32>
    %94 = tpu.reciprocal %93 : vector<16x128xf32> -> vector<16x128xf32>
    %c64_i32 = arith.constant 64 : i32
    %95 = vector.broadcast %c64_i32 : i32 to vector<16x128xi32>
    %96 = arith.cmpi slt, %88, %95 : vector<16x128xi32>
    %97 = arith.select %96, %94, %87 : vector<16x128xi1>, vector<16x128xf32>
    %c0_65 = arith.constant 0 : index
    %c0_66 = arith.constant 0 : index
    %98 = vector.load %arg24[%c0_65, %c0_66] : memref<16x128xf32, #tpu.memory_space<vmem>>, vector<16x128xf32>
    tpu.vector_store %arg24[%c0_65, %c0_66], %97 {strides = array<i32>} : memref<16x128xf32, #tpu.memory_space<vmem>>, vector<16x128xf32>,
    return
  }
  func.func @transform_0(%arg0: i32) -> (i32, i32) {
    %c0_i32 = arith.constant 0 : i32
    %c0_i32_0 = arith.constant 0 : i32
    return %arg0, %c0_i32 : i32, i32
  }
  func.func @transform_1(%arg0: i32) -> (i32, i32) {
    %c0_i32 = arith.constant 0 : i32
    %c0_i32_0 = arith.constant 0 : i32
    return %arg0, %c0_i32 : i32, i32
  }
  func.func @transform_2(%arg0: i32) -> (i32, i32) {
    %c0_i32 = arith.constant 0 : i32
    %c0_i32_0 = arith.constant 0 : i32
    %c0_i32_1 = arith.constant 0 : i32
    return %c0_i32, %c0_i32_0 : i32, i32
  }
  func.func @transform_3(%arg0: i32) -> (i32, i32) {
    %c0_i32 = arith.constant 0 : i32
    %c0_i32_0 = arith.constant 0 : i32
    %c0_i32_1 = arith.constant 0 : i32
    return %c0_i32, %c0_i32_0 : i32, i32
  }
  func.func @transform_4(%arg0: i32) -> (i32, i32) {
    %c0_i32 = arith.constant 0 : i32
    %c0_i32_0 = arith.constant 0 : i32
    %c0_i32_1 = arith.constant 0 : i32
    return %c0_i32, %c0_i32_0 : i32, i32
  }
  func.func @transform_5(%arg0: i32) -> (i32, i32) {
    %c0_i32 = arith.constant 0 : i32
    %c0_i32_0 = arith.constant 0 : i32
    %c0_i32_1 = arith.constant 0 : i32
    return %c0_i32, %c0_i32_0 : i32, i32
  }
  func.func @transform_6(%arg0: i32) -> (i32, i32) {
    %c0_i32 = arith.constant 0 : i32
    %c0_i32_0 = arith.constant 0 : i32
    %c0_i32_1 = arith.constant 0 : i32
    return %c0_i32, %c0_i32_0 : i32, i32
  }
  func.func @transform_7(%arg0: i32) -> (i32, i32) {
    %c0_i32 = arith.constant 0 : i32
    %c0_i32_0 = arith.constant 0 : i32
    %c0_i32_1 = arith.constant 0 : i32
    return %c0_i32, %c0_i32_0 : i32, i32
  }
  func.func @transform_8(%arg0: i32) -> (i32, i32) {
    %c0_i32 = arith.constant 0 : i32
    %c0_i32_0 = arith.constant 0 : i32
    %c0_i32_1 = arith.constant 0 : i32
    return %c0_i32, %c0_i32_0 : i32, i32
  }
  func.func @transform_9(%arg0: i32) -> (i32, i32) {
    %c0_i32 = arith.constant 0 : i32
    %c0_i32_0 = arith.constant 0 : i32
    %c0_i32_1 = arith.constant 0 : i32
    return %c0_i32, %c0_i32_0 : i32, i32
  }
  func.func @transform_10(%arg0: i32) -> (i32, i32) {
    %c0_i32 = arith.constant 0 : i32
    %c0_i32_0 = arith.constant 0 : i32
    %c0_i32_1 = arith.constant 0 : i32
    return %c0_i32, %c0_i32_0 : i32, i32
  }
  func.func @transform_11(%arg0: i32) -> (i32, i32) {
    %c0_i32 = arith.constant 0 : i32
    %c0_i32_0 = arith.constant 0 : i32
    %c0_i32_1 = arith.constant 0 : i32
    return %c0_i32, %c0_i32_0 : i32, i32
  }
  func.func @transform_12(%arg0: i32) -> (i32, i32) {
    %c0_i32 = arith.constant 0 : i32
    %c0_i32_0 = arith.constant 0 : i32
    %c0_i32_1 = arith.constant 0 : i32
    return %c0_i32, %c0_i32_0 : i32, i32
  }
  func.func @transform_13(%arg0: i32) -> (i32, i32) {
    %c0_i32 = arith.constant 0 : i32
    %c0_i32_0 = arith.constant 0 : i32
    %c0_i32_1 = arith.constant 0 : i32
    return %c0_i32, %c0_i32_0 : i32, i32
  }
  func.func @transform_14(%arg0: i32) -> (i32, i32) {
    %c0_i32 = arith.constant 0 : i32
    %c0_i32_0 = arith.constant 0 : i32
    %c0_i32_1 = arith.constant 0 : i32
    return %c0_i32, %c0_i32_0 : i32, i32
  }
  func.func @transform_15(%arg0: i32) -> (i32, i32) {
    %c0_i32 = arith.constant 0 : i32
    %c0_i32_0 = arith.constant 0 : i32
    %c0_i32_1 = arith.constant 0 : i32
    return %c0_i32, %c0_i32_0 : i32, i32
  }
  func.func @transform_16(%arg0: i32) -> (i32, i32) {
    %c0_i32 = arith.constant 0 : i32
    %c0_i32_0 = arith.constant 0 : i32
    %c0_i32_1 = arith.constant 0 : i32
    return %c0_i32, %c0_i32_0 : i32, i32
  }
  func.func @transform_17(%arg0: i32) -> (i32, i32) {
    %c0_i32 = arith.constant 0 : i32
    %c0_i32_0 = arith.constant 0 : i32
    %c0_i32_1 = arith.constant 0 : i32
    return %c0_i32, %c0_i32_0 : i32, i32
  }
  func.func @transform_18(%arg0: i32) -> (i32, i32) {
    %c0_i32 = arith.constant 0 : i32
    %c0_i32_0 = arith.constant 0 : i32
    %c0_i32_1 = arith.constant 0 : i32
    return %c0_i32, %c0_i32_0 : i32, i32
  }
  func.func @transform_19(%arg0: i32) -> (i32, i32) {
    %c0_i32 = arith.constant 0 : i32
    %c0_i32_0 = arith.constant 0 : i32
    %c0_i32_1 = arith.constant 0 : i32
    return %c0_i32, %c0_i32_0 : i32, i32
  }
  func.func @transform_20(%arg0: i32) -> (i32, i32) {
    %c0_i32 = arith.constant 0 : i32
    %c0_i32_0 = arith.constant 0 : i32
    %c0_i32_1 = arith.constant 0 : i32
    return %c0_i32, %c0_i32_0 : i32, i32
  }
  func.func @transform_21(%arg0: i32) -> (i32, i32) {
    %c0_i32 = arith.constant 0 : i32
    %c0_i32_0 = arith.constant 0 : i32
    %c0_i32_1 = arith.constant 0 : i32
    return %c0_i32, %c0_i32_0 : i32, i32
  }
  func.func @transform_22(%arg0: i32) -> (i32, i32) {
    %c0_i32 = arith.constant 0 : i32
    %c0_i32_0 = arith.constant 0 : i32
    %c0_i32_1 = arith.constant 0 : i32
    return %c0_i32, %c0_i32_0 : i32, i32
  }
  func.func @transform_23(%arg0: i32) -> (i32, i32) {
    %c0_i32 = arith.constant 0 : i32
    %c0_i32_0 = arith.constant 0 : i32
    return %arg0, %c0_i32 : i32, i32
  }
}

</mosaic_0001>

<llo_original>
// kernel: tpu_custom_call.1
$region0: #{tpu_custom_call.1}
  #allocation0 [shape = 'u32[]', space=smem, size = 0x4, offset = 0x4, fixed_abs, tag = 'smem constant byte address 0x4 - core index']
  #allocation1 [shape = 'u32[144,128]{1,0:T(1,128)}', space=vmem, size = 0x12000, scoped, tag = 'internal scratch']
  %s0 = inlined_call_operand.hbm [shape: f32[16,64], index: 0, kind: input, shape index: {}]
  %s1 = inlined_call_operand.hbm [shape: f32[16,16], index: 1, kind: input, shape index: {}]
  %s2 = inlined_call_operand.hbm [shape: bf16[64,256], index: 2, kind: input, shape index: {}]
  %s3 = inlined_call_operand.hbm [shape: f32[1,256], index: 3, kind: input, shape index: {}]
  %s4 = inlined_call_operand.vmem [shape: bf16[256,256], index: 4, kind: input, shape index: {}]
  %s5 = inlined_call_operand.hbm [shape: f32[1,256], index: 5, kind: input, shape index: {}]
  %s6 = inlined_call_operand.vmem [shape: bf16[256,16], index: 6, kind: input, shape index: {}]
  %s7 = inlined_call_operand.vmem [shape: f32[1,16], index: 7, kind: input, shape index: {}]
  %s8 = inlined_call_operand.vmem [shape: bf16[256,16], index: 8, kind: input, shape index: {}]
  %s9 = inlined_call_operand.hbm [shape: f32[1,16], index: 9, kind: input, shape index: {}]
  %s10 = inlined_call_operand.vmem [shape: bf16[16,256], index: 10, kind: input, shape index: {}]
  %s11 = inlined_call_operand.hbm [shape: f32[1,256], index: 11, kind: input, shape index: {}]
  %s12 = inlined_call_operand.hbm [shape: bf16[256,256], index: 12, kind: input, shape index: {}]
  %s13 = inlined_call_operand.hbm [shape: f32[1,256], index: 13, kind: input, shape index: {}]
  %s14 = inlined_call_operand.hbm [shape: bf16[64,512], index: 14, kind: input, shape index: {}]
  %s15 = inlined_call_operand.vmem [shape: bf16[16,512], index: 15, kind: input, shape index: {}]
  %s16 = inlined_call_operand.vmem [shape: f32[1,512], index: 16, kind: input, shape index: {}]
  %s17 = inlined_call_operand.hbm [shape: bf16[512,512], index: 17, kind: input, shape index: {}]
  %s18 = inlined_call_operand.vmem [shape: f32[1,512], index: 18, kind: input, shape index: {}]
  %s19 = inlined_call_operand.hbm [shape: bf16[512,512], index: 19, kind: input, shape index: {}]
  %s20 = inlined_call_operand.vmem [shape: f32[1,512], index: 20, kind: input, shape index: {}]
  %s21 = inlined_call_operand.hbm [shape: bf16[1024,128], index: 21, kind: input, shape index: {}]
  %s22 = inlined_call_operand.vmem [shape: f32[1,128], index: 22, kind: input, shape index: {}]
  %s23 = inlined_call_operand.hbm [shape: f32[16,128], index: 23, kind: output, shape index: {}]
  %s24 = sld [smem:[#allocation0]]
  $region154: #{tpu_custom_call.1} parent=0
    _
  %s26 = ssub.s32 1, %s24
  %s27 = scalar_select 0, %s26, %s24
  $region1: #{tpu_custom_call.1} parent=0
    #allocation2 [shape = 'u8[8192]{0}', space=vmem, size = 0x2000, scoped, tag = 'input window, operand 0, single buffered']
    #allocation3 [shape = 's32[1]{0}', space=sflag, size = 0x4, scoped, tag = 'scoped memory for tpu_custom_call.1']
    #allocation4 [shape = 's32[1]{0}', space=sflag, size = 0x4, scoped, tag = 'scoped memory for tpu_custom_call.1']
    #allocation5 [shape = 'u8[8192]{0}', space=vmem, size = 0x2000, scoped, tag = 'input window, operand 1, single buffered']
    #allocation6 [shape = 's32[1]{0}', space=sflag, size = 0x4, scoped, tag = 'scoped memory for tpu_custom_call.1']
    #allocation7 [shape = 'u8[32768]{0}', space=vmem, size = 0x8000, scoped, tag = 'input window, operand 2, single buffered']
    #allocation8 [shape = 'u8[1024]{0}', space=vmem, size = 0x400, scoped, tag = 'input window, operand 3, single buffered']
    #allocation9 [shape = 's32[1]{0}', space=sflag, size = 0x4, scoped, tag = 'scoped memory for tpu_custom_call.1']
    #allocation10 [shape = 'u8[1024]{0}', space=vmem, size = 0x400, scoped, tag = 'input window, operand 5, single buffered']
    #allocation11 [shape = 'u8[512]{0}', space=vmem, size = 0x400, scoped, tag = 'input window, operand 9, single buffered']
    #allocation12 [shape = 's32[1]{0}', space=sflag, size = 0x4, scoped, tag = 'scoped memory for tpu_custom_call.1']
    #allocation13 [shape = 'u8[1024]{0}', space=vmem, size = 0x400, scoped, tag = 'input window, operand 11, single buffered']
    #allocation14 [shape = 'u8[131072]{0}', space=vmem, size = 0x20000, scoped, tag = 'input window, operand 12, single buffered']
    #allocation15 [shape = 's32[1]{0}', space=sflag, size = 0x4, scoped, tag = 'scoped memory for tpu_custom_call.1']
    #allocation16 [shape = 'u8[1024]{0}', space=vmem, size = 0x400, scoped, tag = 'input window, operand 13, single buffered']
    #allocation17 [shape = 'u8[65536]{0}', space=vmem, size = 0x10000, scoped, tag = 'input window, operand 14, single buffered']
    #allocation18 [shape = 's32[1]{0}', space=sflag, size = 0x4, scoped, tag = 'scoped memory for tpu_custom_call.1']
    #allocation19 [shape = 'u8[524288]{0}', space=vmem, size = 0x80000, scoped, tag = 'input window, operand 17, single buffered']
    #allocation20 [shape = 'u8[524288]{0}', space=vmem, size = 0x80000, scoped, tag = 'input window, operand 19, single buffered']
    #allocation21 [shape = 's32[1]{0}', space=sflag, size = 0x4, scoped, tag = 'scoped memory for tpu_custom_call.1']
    #allocation22 [shape = 'u8[262144]{0}', space=vmem, size = 0x40000, scoped, tag = 'input window, operand 21, single buffered']
    #allocation23 [shape = 'u8[8192]{0}', space=vmem, size = 0x2000, scoped, tag = 'output window, operand 0, single buffered']
    %28 = vsyncpa [#allocation3], 0
    %29 = vsyncpa [#allocation6], 0
    %30 = vsyncpa [#allocation9], 0
    %31 = vsyncpa [#allocation12], 0
    %32 = vsyncpa [#allocation15], 0
    %33 = vsyncpa [#allocation18], 0
    %34 = vsyncpa [#allocation21], 0
    %35 = vsyncpa [#allocation4], 0
    // Predicated region
    $region2: #{tpu_custom_call.1} parent=1 // pred_check
      _
    $region3: #{tpu_custom_call.1} parent=1 // pred_check_branch
      %37 = sbr.rel (0) target = $region5
    $region4: #{tpu_custom_call.1} parent=1 // pred_region
      %s39 = ssub.s32 256, 256
      %40 = vsyncadd [#allocation3], %s39
      %s41 = sshll.u32 [#allocation2], 4
      %s42 = int_to_ptr.vmem [resolvable:$true] %s41
      %47 = dma.hbm_to_vmem [thread:$0]  %s0, 256, %s42, [#allocation3], 128, 128, 8
    $region5: #{tpu_custom_call.1} parent=1 // pred_fallthru
      _
    // Predicated region
    $region6: #{tpu_custom_call.1} parent=1 // pred_check
      _
    $region7: #{tpu_custom_call.1} parent=1 // pred_check_branch
      %49 = sbr.rel (0) target = $region9
    $region8: #{tpu_custom_call.1} parent=1 // pred_region
      %s51 = ssub.s32 256, 256
      %52 = vsyncadd [#allocation6], %s51
      %s53 = sshll.u32 [#allocation5], 4
      %s54 = int_to_ptr.vmem [resolvable:$true] %s53
      %59 = dma.hbm_to_vmem [thread:$0]  %s1, 256, %s54, [#allocation6], 128, 128, 8
    $region9: #{tpu_custom_call.1} parent=1 // pred_fallthru
      _
    // Predicated region
    $region10: #{tpu_custom_call.1} parent=1 // pred_check
      _
    $region11: #{tpu_custom_call.1} parent=1 // pred_check_branch
      %61 = sbr.rel (0) target = $region13
    $region12: #{tpu_custom_call.1} parent=1 // pred_region
      %s63 = ssub.s32 1024, 1024
      %64 = vsyncadd [#allocation6], %s63
      %s65 = sshll.u32 [#allocation7], 4
      %s66 = int_to_ptr.vmem [resolvable:$true] %s65
      %71 = dma.hbm_to_vmem [thread:$0]  %s2, 1024, %s66, [#allocation6], 128, 128, 8
    $region13: #{tpu_custom_call.1} parent=1 // pred_fallthru
      _
    // Predicated region
    $region14: #{tpu_custom_call.1} parent=1 // pred_check
      _
    $region15: #{tpu_custom_call.1} parent=1 // pred_check_branch
      %73 = sbr.rel (0) target = $region17
    $region16: #{tpu_custom_call.1} parent=1 // pred_region
      %s75 = ssub.s32 32, 32
      %76 = vsyncadd [#allocation9], %s75
      %s78 = sshll.u32 [#allocation8], 4
      %s79 = int_to_ptr.vmem [resolvable:$true] %s78
      %81 = dma.hbm_to_vmem [thread:$0]  %s3, 32, %s79, [#allocation9]
    $region17: #{tpu_custom_call.1} parent=1 // pred_fallthru
      _
    // Predicated region
    $region18: #{tpu_custom_call.1} parent=1 // pred_check
      _
    $region19: #{tpu_custom_call.1} parent=1 // pred_check_branch
      %83 = sbr.rel (0) target = $region21
    $region20: #{tpu_custom_call.1} parent=1 // pred_region
      _
    $region21: #{tpu_custom_call.1} parent=1 // pred_fallthru
      _
    // Predicated region
    $region22: #{tpu_custom_call.1} parent=1 // pred_check
      _
    $region23: #{tpu_custom_call.1} parent=1 // pred_check_branch
      %85 = sbr.rel (0) target = $region25
    $region24: #{tpu_custom_call.1} parent=1 // pred_region
      %s87 = ssub.s32 32, 32
      %88 = vsyncadd [#allocation9], %s87
      %s90 = sshll.u32 [#allocation10], 4
      %s91 = int_to_ptr.vmem [resolvable:$true] %s90
      %93 = dma.hbm_to_vmem [thread:$0]  %s5, 32, %s91, [#allocation9]
    $region25: #{tpu_custom_call.1} parent=1 // pred_fallthru
      _
    // Predicated region
    $region26: #{tpu_custom_call.1} parent=1 // pred_check
      _
    $region27: #{tpu_custom_call.1} parent=1 // pred_check_branch
      %95 = sbr.rel (0) target = $region29
    $region28: #{tpu_custom_call.1} parent=1 // pred_region
      _
    $region29: #{tpu_custom_call.1} parent=1 // pred_fallthru
      _
    // Predicated region
    $region30: #{tpu_custom_call.1} parent=1 // pred_check
      _
    $region31: #{tpu_custom_call.1} parent=1 // pred_check_branch
      %97 = sbr.rel (0) target = $region33
    $region32: #{tpu_custom_call.1} parent=1 // pred_region
      _
    $region33: #{tpu_custom_call.1} parent=1 // pred_fallthru
      _
    // Predicated region
    $region34: #{tpu_custom_call.1} parent=1 // pred_check
      _
    $region35: #{tpu_custom_call.1} parent=1 // pred_check_branch
      %99 = sbr.rel (0) target = $region37
    $region36: #{tpu_custom_call.1} parent=1 // pred_region
      _
    $region37: #{tpu_custom_call.1} parent=1 // pred_fallthru
      _
    // Predicated region
    $region38: #{tpu_custom_call.1} parent=1 // pred_check
      _
    $region39: #{tpu_custom_call.1} parent=1 // pred_check_branch
      %101 = sbr.rel (0) target = $region41
    $region40: #{tpu_custom_call.1} parent=1 // pred_region
      %s103 = ssub.s32 16, 16
      %104 = vsyncadd [#allocation12], %s103
      %s106 = sshll.u32 [#allocation11], 4
      %s107 = int_to_ptr.vmem [resolvable:$true] %s106
      %109 = dma.hbm_to_vmem [thread:$0]  %s9, 16, %s107, [#allocation12]
    $region41: #{tpu_custom_call.1} parent=1 // pred_fallthru
      _
    // Predicated region
    $region42: #{tpu_custom_call.1} parent=1 // pred_check
      _
    $region43: #{tpu_custom_call.1} parent=1 // pred_check_branch
      %111 = sbr.rel (0) target = $region45
    $region44: #{tpu_custom_call.1} parent=1 // pred_region
      _
    $region45: #{tpu_custom_call.1} parent=1 // pred_fallthru
      _
    // Predicated region
    $region46: #{tpu_custom_call.1} parent=1 // pred_check
      _
    $region47: #{tpu_custom_call.1} parent=1 // pred_check_branch
      %113 = sbr.rel (0) target = $region49
    $region48: #{tpu_custom_call.1} parent=1 // pred_region
      %s115 = ssub.s32 32, 32
      %116 = vsyncadd [#allocation12], %s115
      %s118 = sshll.u32 [#allocation13], 4
      %s119 = int_to_ptr.vmem [resolvable:$true] %s118
      %121 = dma.hbm_to_vmem [thread:$0]  %s11, 32, %s119, [#allocation12]
    $region49: #{tpu_custom_call.1} parent=1 // pred_fallthru
      _
    // Predicated region
    $region50: #{tpu_custom_call.1} parent=1 // pred_check
      _
    $region51: #{tpu_custom_call.1} parent=1 // pred_check_branch
      %123 = sbr.rel (0) target = $region53
    $region52: #{tpu_custom_call.1} parent=1 // pred_region
      %s125 = ssub.s32 4096, 4096
      %126 = vsyncadd [#allocation15], %s125
      %s127 = sshll.u32 [#allocation14], 4
      %s128 = int_to_ptr.vmem [resolvable:$true] %s127
      %133 = dma.hbm_to_vmem [thread:$0]  %s12, 4096, %s128, [#allocation15], 128, 128, 8
    $region53: #{tpu_custom_call.1} parent=1 // pred_fallthru
      _
    // Predicated region
    $region54: #{tpu_custom_call.1} parent=1 // pred_check
      _
    $region55: #{tpu_custom_call.1} parent=1 // pred_check_branch
      %135 = sbr.rel (0) target = $region57
    $region56: #{tpu_custom_call.1} parent=1 // pred_region
      %s137 = ssub.s32 32, 32
      %138 = vsyncadd [#allocation15], %s137
      %s140 = sshll.u32 [#allocation16], 4
      %s141 = int_to_ptr.vmem [resolvable:$true] %s140
      %143 = dma.hbm_to_vmem [thread:$0]  %s13, 32, %s141, [#allocation15]
    $region57: #{tpu_custom_call.1} parent=1 // pred_fallthru
      _
    // Predicated region
    $region58: #{tpu_custom_call.1} parent=1 // pred_check
      _
    $region59: #{tpu_custom_call.1} parent=1 // pred_check_branch
      %145 = sbr.rel (0) target = $region61
    $region60: #{tpu_custom_call.1} parent=1 // pred_region
      %s147 = ssub.s32 2048, 2048
      %148 = vsyncadd [#allocation18], %s147
      %s149 = sshll.u32 [#allocation17], 4
      %s150 = int_to_ptr.vmem [resolvable:$true] %s149
      %155 = dma.hbm_to_vmem [thread:$0]  %s14, 2048, %s150, [#allocation18], 256, 256, 16
    $region61: #{tpu_custom_call.1} parent=1 // pred_fallthru
      _
    // Predicated region
    $region62: #{tpu_custom_call.1} parent=1 // pred_check
      _
    $region63: #{tpu_custom_call.1} parent=1 // pred_check_branch
      %157 = sbr.rel (0) target = $region65
    $region64: #{tpu_custom_call.1} parent=1 // pred_region
      _
    $region65: #{tpu_custom_call.1} parent=1 // pred_fallthru
      _
    // Predicated region
    $region66: #{tpu_custom_call.1} parent=1 // pred_check
      _
    $region67: #{tpu_custom_call.1} parent=1 // pred_check_branch
      %159 = sbr.rel (0) target = $region69
    $region68: #{tpu_custom_call.1} parent=1 // pred_region
      _
    $region69: #{tpu_custom_call.1} parent=1 // pred_fallthru
      _
    // Predicated region
    $region70: #{tpu_custom_call.1} parent=1 // pred_check
      _
    $region71: #{tpu_custom_call.1} parent=1 // pred_check_branch
      %161 = sbr.rel (0) target = $region73
    $region72: #{tpu_custom_call.1} parent=1 // pred_region
      %s163 = ssub.s32 16384, 16384
      %164 = vsyncadd [#allocation18], %s163
      %s165 = sshll.u32 [#allocation19], 4
      %s166 = int_to_ptr.vmem [resolvable:$true] %s165
      %171 = dma.hbm_to_vmem [thread:$0]  %s17, 16384, %s166, [#allocation18], 256, 256, 16
    $region73: #{tpu_custom_call.1} parent=1 // pred_fallthru
      _
    // Predicated region
    $region74: #{tpu_custom_call.1} parent=1 // pred_check
      _
    $region75: #{tpu_custom_call.1} parent=1 // pred_check_branch
      %173 = sbr.rel (0) target = $region77
    $region76: #{tpu_custom_call.1} parent=1 // pred_region
      _
    $region77: #{tpu_custom_call.1} parent=1 // pred_fallthru
      _
    // Predicated region
    $region78: #{tpu_custom_call.1} parent=1 // pred_check
      _
    $region79: #{tpu_custom_call.1} parent=1 // pred_check_branch
      %175 = sbr.rel (0) target = $region81
    $region80: #{tpu_custom_call.1} parent=1 // pred_region
      %s177 = ssub.s32 16384, 16384
      %178 = vsyncadd [#allocation21], %s177
      %s179 = sshll.u32 [#allocation20], 4
      %s180 = int_to_ptr.vmem [resolvable:$true] %s179
      %185 = dma.hbm_to_vmem [thread:$0]  %s19, 16384, %s180, [#allocation21], 256, 256, 16
    $region81: #{tpu_custom_call.1} parent=1 // pred_fallthru
      _
    // Predicated region
    $region82: #{tpu_custom_call.1} parent=1 // pred_check
      _
    $region83: #{tpu_custom_call.1} parent=1 // pred_check_branch
      %187 = sbr.rel (0) target = $region85
    $region84: #{tpu_custom_call.1} parent=1 // pred_region
      _
    $region85: #{tpu_custom_call.1} parent=1 // pred_fallthru
      _
    // Predicated region
    $region86: #{tpu_custom_call.1} parent=1 // pred_check
      _
    $region87: #{tpu_custom_call.1} parent=1 // pred_check_branch
      %189 = sbr.rel (0) target = $region89
    $region88: #{tpu_custom_call.1} parent=1 // pred_region
      %s191 = ssub.s32 8192, 8192
      %192 = vsyncadd [#allocation21], %s191
      %s193 = sshll.u32 [#allocation22], 4
      %s194 = int_to_ptr.vmem [resolvable:$true] %s193
      %199 = dma.hbm_to_vmem [thread:$0]  %s21, 8192, %s194, [#allocation21], 64, 64, 4
    $region89: #{tpu_custom_call.1} parent=1 // pred_fallthru
      _
    // Predicated region
    $region90: #{tpu_custom_call.1} parent=1 // pred_check
      _
    $region91: #{tpu_custom_call.1} parent=1 // pred_check_branch
      %201 = sbr.rel (0) target = $region93
    $region92: #{tpu_custom_call.1} parent=1 // pred_region
      _
    $region93: #{tpu_custom_call.1} parent=1 // pred_fallthru
      _
    // Predicated region
    $region94: #{tpu_custom_call.1} parent=1 // pred_check
      _
    $region95: #{tpu_custom_call.1} parent=1 // pred_check_branch
      %203 = sbr.rel (0) target = $region97
    $region96: #{tpu_custom_call.1} parent=1 // pred_region
      %204 = dma.done [#allocation3], 256
    $region97: #{tpu_custom_call.1} parent=1 // pred_fallthru
      _
    // Predicated region
    $region98: #{tpu_custom_call.1} parent=1 // pred_check
      _
    $region99: #{tpu_custom_call.1} parent=1 // pred_check_branch
      %206 = sbr.rel (0) target = $region101
    $region100: #{tpu_custom_call.1} parent=1 // pred_region
      %207 = dma.done [#allocation6], 256
    $region101: #{tpu_custom_call.1} parent=1 // pred_fallthru
      _
    // Predicated region
    $region102: #{tpu_custom_call.1} parent=1 // pred_check
      _
    $region103: #{tpu_custom_call.1} parent=1 // pred_check_branch
      %209 = sbr.rel (0) target = $region105
    $region104: #{tpu_custom_call.1} parent=1 // pred_region
      %210 = dma.done [#allocation6], 1024
    $region105: #{tpu_custom_call.1} parent=1 // pred_fallthru
      _
    // Predicated region
    $region106: #{tpu_custom_call.1} parent=1 // pred_check
      _
    $region107: #{tpu_custom_call.1} parent=1 // pred_check_branch
      %212 = sbr.rel (0) target = $region109
    $region108: #{tpu_custom_call.1} parent=1 // pred_region
      %213 = dma.done [#allocation9], 32
    $region109: #{tpu_custom_call.1} parent=1 // pred_fallthru
      _
    // Predicated region
    $region110: #{tpu_custom_call.1} parent=1 // pred_check
      _
    $region111: #{tpu_custom_call.1} parent=1 // pred_check_branch
      %215 = sbr.rel (0) target = $region113
    $region112: #{tpu_custom_call.1} parent=1 // pred_region
      %216 = dma.done [#allocation9], 32
    $region113: #{tpu_custom_call.1} parent=1 // pred_fallthru
      _
    // Predicated region
    $region114: #{tpu_custom_call.1} parent=1 // pred_check
      _
    $region115: #{tpu_custom_call.1} parent=1 // pred_check_branch
      %218 = sbr.rel (0) target = $region117
    $region116: #{tpu_custom_call.1} parent=1 // pred_region
      %219 = dma.done [#allocation12], 16
    $region117: #{tpu_custom_call.1} parent=1 // pred_fallthru
      _
    // Predicated region
    $region118: #{tpu_custom_call.1} parent=1 // pred_check
      _
    $region119: #{tpu_custom_call.1} parent=1 // pred_check_branch
      %221 = sbr.rel (0) target = $region121
    $region120: #{tpu_custom_call.1} parent=1 // pred_region
      %222 = dma.done [#allocation12], 32
    $region121: #{tpu_custom_call.1} parent=1 // pred_fallthru
      _
    // Predicated region
    $region122: #{tpu_custom_call.1} parent=1 // pred_check
      _
    $region123: #{tpu_custom_call.1} parent=1 // pred_check_branch
      %224 = sbr.rel (0) target = $region125
    $region124: #{tpu_custom_call.1} parent=1 // pred_region
      %225 = dma.done [#allocation15], 4096
    $region125: #{tpu_custom_call.1} parent=1 // pred_fallthru
      _
    // Predicated region
    $region126: #{tpu_custom_call.1} parent=1 // pred_check
      _
    $region127: #{tpu_custom_call.1} parent=1 // pred_check_branch
      %227 = sbr.rel (0) target = $region129
    $region128: #{tpu_custom_call.1} parent=1 // pred_region
      %228 = dma.done [#allocation15], 32
    $region129: #{tpu_custom_call.1} parent=1 // pred_fallthru
      _
    // Predicated region
    $region130: #{tpu_custom_call.1} parent=1 // pred_check
      _
    $region131: #{tpu_custom_call.1} parent=1 // pred_check_branch
      %230 = sbr.rel (0) target = $region133
    $region132: #{tpu_custom_call.1} parent=1 // pred_region
      %231 = dma.done [#allocation18], 2048
    $region133: #{tpu_custom_call.1} parent=1 // pred_fallthru
      _
    // Predicated region
    $region134: #{tpu_custom_call.1} parent=1 // pred_check
      _
    $region135: #{tpu_custom_call.1} parent=1 // pred_check_branch
      %233 = sbr.rel (0) target = $region137
    $region136: #{tpu_custom_call.1} parent=1 // pred_region
      %234 = dma.done [#allocation18], 16384
    $region137: #{tpu_custom_call.1} parent=1 // pred_fallthru
      _
    // Predicated region
    $region138: #{tpu_custom_call.1} parent=1 // pred_check
      _
    $region139: #{tpu_custom_call.1} parent=1 // pred_check_branch
      %236 = sbr.rel (0) target = $region141
    $region140: #{tpu_custom_call.1} parent=1 // pred_region
      %237 = dma.done [#allocation21], 16384
    $region141: #{tpu_custom_call.1} parent=1 // pred_fallthru
      _
    // Predicated region
    $region142: #{tpu_custom_call.1} parent=1 // pred_check
      _
    $region143: #{tpu_custom_call.1} parent=1 // pred_check_branch
      %239 = sbr.rel (0) target = $region145
    $region144: #{tpu_custom_call.1} parent=1 // pred_region
      %240 = dma.done [#allocation21], 8192
    $region145: #{tpu_custom_call.1} parent=1 // pred_fallthru
      _
    %v242 = vld [vmem:[#allocation2] sm:$0xff]
    %v243 = vld [vmem:[#allocation2 + $0x8] sm:$0xff]
    %v244 = vld [vmem:[#allocation5] sm:$0xff]
    %v245 = vld [vmem:[#allocation5 + $0x8] sm:$0xff]
    %v246 = vpack.c.bf16 %v243, %v242
    %v247 = vld [vmem:[#allocation7] sm:$0xff]
    %v248 = vld [vmem:[#allocation7 + $0x8] sm:$0xff]
    %v249 = vld [vmem:[#allocation7 + $0x10] sm:$0xff]
    %v250 = vld [vmem:[#allocation7 + $0x18] sm:$0xff]
    %v251 = vld [vmem:[#allocation7 + $0x20] sm:$0xff]
    %v252 = vld [vmem:[#allocation7 + $0x28] sm:$0xff]
    %v253 = vld [vmem:[#allocation7 + $0x30] sm:$0xff]
    %v254 = vld [vmem:[#allocation7 + $0x38] sm:$0xff]
    %v255 = vld [vmem:[#allocation8] sm:$0x3]
    %v257 = vlaneseq
    %v258 = vshrl.u32 %v257, 7
    %v259 = vsub.s32 0, %v258
    %v260 = vrot.slane %v255, %v259
    %v261 = vlaneseq
    %v262 = vshrl.u32 %v261, 7
    %v263 = vsub.s32 1, %v262
    %v264 = vrot.slane %v255, %v263
    %v275 = vunpack.c.l.b16 %v247
    %v276 = vunpack.c.h.b16 %v247
    %v277 = vunpack.c.l.b16 %v248
    %v278 = vunpack.c.h.b16 %v248
    %v279 = vunpack.c.l.b16 %v249
    %v280 = vunpack.c.h.b16 %v249
    %v281 = vunpack.c.l.b16 %v250
    %v282 = vunpack.c.h.b16 %v250
    %v283 = vunpack.c.l.b16 %v251
    %v284 = vunpack.c.h.b16 %v251
    %v285 = vunpack.c.l.b16 %v252
    %v286 = vunpack.c.h.b16 %v252
    %v287 = vunpack.c.l.b16 %v253
    %v288 = vunpack.c.h.b16 %v253
    %v289 = vunpack.c.l.b16 %v254
    %v290 = vunpack.c.h.b16 %v254
    %v291 = vpack.c.b16 %v277, %v275
    %v292 = vpack.c.b16 %v278, %v276
    %v293 = vpack.c.b16 %v281, %v279
    %v294 = vpack.c.b16 %v282, %v280
    %v295 = vpack.c.b16 %v285, %v283
    %v296 = vpack.c.b16 %v286, %v284
    %v297 = vpack.c.b16 %v289, %v287
    %v298 = vpack.c.b16 %v290, %v288
    %vm307 = vcmask 523264
    %v309 = vsel %vm307, %v246, 0
    %311 = vmatprep.subr.bf16.mxu0 0
    %312 = vmatpush1.bf16.msra.mxu0 0
    %313 = vmatprep.subr.bf16.mxu0 0
    %314 = vmatpush1.bf16.msra.mxu0 0
    %315 = vmatprep.subr.bf16.mxu0 0
    %316 = vmatpush1.bf16.msra.mxu0 0
    %317 = vmatprep.subr.bf16.mxu0 0
    %318 = vmatpush1.bf16.msra.mxu0 0
    %319 = vmatprep.subr.bf16.mxu0 %v298
    %320 = vmatpush1.bf16.msra.mxu0 %v297
    %321 = vmatprep.subr.bf16.mxu0 %v296
    %322 = vmatpush1.bf16.msra.mxu0 %v295
    %323 = vmatprep.subr.bf16.mxu0 %v294
    %324 = vmatpush1.bf16.msra.mxu0 %v293
    %325 = vmatprep.subr.bf16.mxu0 %v292
    %326 = vmatpush1.bf16.msra.mxu0 %v291
    %327 = vmatprep.subr.bf16.mxu0 0
    %328 = vmatpush2.bf16.msra.mxu0 0
    %329 = vmatprep.subr.bf16.mxu0 0
    %330 = vmatpush2.bf16.msra.mxu0 0
    %331 = vmatprep.subr.bf16.mxu0 0
    %332 = vmatpush2.bf16.msra.mxu0 0
    %333 = vmatprep.subr.bf16.mxu0 0
    %334 = vmatpush2.bf16.msra.mxu0 0
    %335 = vmatprep.subr.bf16.mxu0 0
    %336 = vmatpush2.bf16.msra.mxu0 0
    %337 = vmatprep.subr.bf16.mxu0 0
    %338 = vmatpush2.bf16.msra.mxu0 0
    %339 = vmatprep.subr.bf16.mxu0 0
    %340 = vmatpush2.bf16.msra.mxu0 0
    %341 = vmatprep.subr.bf16.mxu0 0
    %342 = vmatpush2.bf16.msra.mxu0 0
    %343 = vmatprep.mubr.bf16.mxu0 0
    %344 = vmatmul.mubr.bf16.gmra.mxu0 %v309
    %v345 = vpop.f32.mrf.mxu0
    %v346 = vadd.f32 %v260, %v345
    %v347 = vpop.f32.mrf.mxu0
    %v348 = vadd.f32 %v264, %v347
    %v349 = vpop.f32.mrf.mxu0
    %v350 = vadd.f32 %v260, %v349
    %v351 = vpop.f32.mrf.mxu0
    %v352 = vadd.f32 %v264, %v351
    %353 = vdwg.mxu0
    %v354 = vmax.f32 %v346, 0.0
    %v355 = vmax.f32 %v348, 0.0
    %v356 = vmax.f32 %v350, 0.0
    %v357 = vmax.f32 %v352, 0.0
    %v358 = vpack.c.bf16 %v356, %v354
    %v359 = vpack.c.bf16 %v357, %v355
    %v360 = vld [vmem:[%s4] sm:$0xff]
    %v361 = vld [vmem:[%s4 + $0x8] sm:$0xff]
    %v362 = vld [vmem:[%s4 + $0x10] sm:$0xff]
    %v363 = vld [vmem:[%s4 + $0x18] sm:$0xff]
    %v364 = vld [vmem:[%s4 + $0x20] sm:$0xff]
    %v365 = vld [vmem:[%s4 + $0x28] sm:$0xff]
    %v366 = vld [vmem:[%s4 + $0x30] sm:$0xff]
    %v367 = vld [vmem:[%s4 + $0x38] sm:$0xff]
    %v368 = vld [vmem:[%s4 + $0x40] sm:$0xff]
    %v369 = vld [vmem:[%s4 + $0x48] sm:$0xff]
    %v370 = vld [vmem:[%s4 + $0x50] sm:$0xff]
    %v371 = vld [vmem:[%s4 + $0x58] sm:$0xff]
    %v372 = vld [vmem:[%s4 + $0x60] sm:$0xff]
    %v373 = vld [vmem:[%s4 + $0x68] sm:$0xff]
    %v374 = vld [vmem:[%s4 + $0x70] sm:$0xff]
    %v375 = vld [vmem:[%s4 + $0x78] sm:$0xff]
    %v376 = vld [vmem:[%s4 + $0x80] sm:$0xff]
    %v377 = vld [vmem:[%s4 + $0x88] sm:$0xff]
    %v378 = vld [vmem:[%s4 + $0x90] sm:$0xff]
    %v379 = vld [vmem:[%s4 + $0x98] sm:$0xff]
    %v380 = vld [vmem:[%s4 + $0xa0] sm:$0xff]
    %v381 = vld [vmem:[%s4 + $0xa8] sm:$0xff]
    %v382 = vld [vmem:[%s4 + $0xb0] sm:$0xff]
    %v383 = vld [vmem:[%s4 + $0xb8] sm:$0xff]
    %v384 = vld [vmem:[%s4 + $0xc0] sm:$0xff]
    %v385 = vld [vmem:[%s4 + $0xc8] sm:$0xff]
    %v386 = vld [vmem:[%s4 + $0xd0] sm:$0xff]
    %v387 = vld [vmem:[%s4 + $0xd8] sm:$0xff]
    %v388 = vld [vmem:[%s4 + $0xe0] sm:$0xff]
    %v389 = vld [vmem:[%s4 + $0xe8] sm:$0xff]
    %v390 = vld [vmem:[%s4 + $0xf0] sm:$0xff]
    %v391 = vld [vmem:[%s4 + $0xf8] sm:$0xff]
    %v392 = vld [vmem:[#allocation10] sm:$0x3]
    %v394 = vlaneseq
    %v395 = vshrl.u32 %v394, 7
    %v396 = vsub.s32 0, %v395
    %v397 = vrot.slane %v392, %v396
    %v398 = vlaneseq
    %v399 = vshrl.u32 %v398, 7
    %v400 = vsub.s32 1, %v399
    %v401 = vrot.slane %v392, %v400
    %v436 = vunpack.c.l.b16 %v360
    %v437 = vunpack.c.h.b16 %v360
    %v438 = vunpack.c.l.b16 %v361
    %v439 = vunpack.c.h.b16 %v361
    %v440 = vunpack.c.l.b16 %v362
    %v441 = vunpack.c.h.b16 %v362
    %v442 = vunpack.c.l.b16 %v363
    %v443 = vunpack.c.h.b16 %v363
    %v444 = vunpack.c.l.b16 %v364
    %v445 = vunpack.c.h.b16 %v364
    %v446 = vunpack.c.l.b16 %v365
    %v447 = vunpack.c.h.b16 %v365
    %v448 = vunpack.c.l.b16 %v366
    %v449 = vunpack.c.h.b16 %v366
    %v450 = vunpack.c.l.b16 %v367
    %v451 = vunpack.c.h.b16 %v367
    %v452 = vunpack.c.l.b16 %v368
    %v453 = vunpack.c.h.b16 %v368
    %v454 = vunpack.c.l.b16 %v369
    %v455 = vunpack.c.h.b16 %v369
    %v456 = vunpack.c.l.b16 %v370
    %v457 = vunpack.c.h.b16 %v370
    %v458 = vunpack.c.l.b16 %v371
    %v459 = vunpack.c.h.b16 %v371
    %v460 = vunpack.c.l.b16 %v372
    %v461 = vunpack.c.h.b16 %v372
    %v462 = vunpack.c.l.b16 %v373
    %v463 = vunpack.c.h.b16 %v373
    %v464 = vunpack.c.l.b16 %v374
    %v465 = vunpack.c.h.b16 %v374
    %v466 = vunpack.c.l.b16 %v375
    %v467 = vunpack.c.h.b16 %v375
    %v468 = vunpack.c.l.b16 %v376
    %v469 = vunpack.c.h.b16 %v376
    %v470 = vunpack.c.l.b16 %v377
    %v471 = vunpack.c.h.b16 %v377
    %v472 = vunpack.c.l.b16 %v378
    %v473 = vunpack.c.h.b16 %v378
    %v474 = vunpack.c.l.b16 %v379
    %v475 = vunpack.c.h.b16 %v379
    %v476 = vunpack.c.l.b16 %v380
    %v477 = vunpack.c.h.b16 %v380
    %v478 = vunpack.c.l.b16 %v381
    %v479 = vunpack.c.h.b16 %v381
    %v480 = vunpack.c.l.b16 %v382
    %v481 = vunpack.c.h.b16 %v382
    %v482 = vunpack.c.l.b16 %v383
    %v483 = vunpack.c.h.b16 %v383
    %v484 = vunpack.c.l.b16 %v384
    %v485 = vunpack.c.h.b16 %v384
    %v486 = vunpack.c.l.b16 %v385
    %v487 = vunpack.c.h.b16 %v385
    %v488 = vunpack.c.l.b16 %v386
    %v489 = vunpack.c.h.b16 %v386
    %v490 = vunpack.c.l.b16 %v387
    %v491 = vunpack.c.h.b16 %v387
    %v492 = vunpack.c.l.b16 %v388
    %v493 = vunpack.c.h.b16 %v388
    %v494 = vunpack.c.l.b16 %v389
    %v495 = vunpack.c.h.b16 %v389
    %v496 = vunpack.c.l.b16 %v390
    %v497 = vunpack.c.h.b16 %v390
    %v498 = vunpack.c.l.b16 %v391
    %v499 = vunpack.c.h.b16 %v391
    %v500 = vpack.c.b16 %v438, %v436
    %v501 = vpack.c.b16 %v439, %v437
    %v502 = vpack.c.b16 %v442, %v440
    %v503 = vpack.c.b16 %v443, %v441
    %v504 = vpack.c.b16 %v446, %v444
    %v505 = vpack.c.b16 %v447, %v445
    %v506 = vpack.c.b16 %v450, %v448
    %v507 = vpack.c.b16 %v451, %v449
    %v508 = vpack.c.b16 %v454, %v452
    %v509 = vpack.c.b16 %v455, %v453
    %v510 = vpack.c.b16 %v458, %v456
    %v511 = vpack.c.b16 %v459, %v457
    %v512 = vpack.c.b16 %v462, %v460
    %v513 = vpack.c.b16 %v463, %v461
    %v514 = vpack.c.b16 %v466, %v464
    %v515 = vpack.c.b16 %v467, %v465
    %v516 = vpack.c.b16 %v470, %v468
    %v517 = vpack.c.b16 %v471, %v469
    %v518 = vpack.c.b16 %v474, %v472
    %v519 = vpack.c.b16 %v475, %v473
    %v520 = vpack.c.b16 %v478, %v476
    %v521 = vpack.c.b16 %v479, %v477
    %v522 = vpack.c.b16 %v482, %v480
    %v523 = vpack.c.b16 %v483, %v481
    %v524 = vpack.c.b16 %v486, %v484
    %v525 = vpack.c.b16 %v487, %v485
    %v526 = vpack.c.b16 %v490, %v488
    %v527 = vpack.c.b16 %v491, %v489
    %v528 = vpack.c.b16 %v494, %v492
    %v529 = vpack.c.b16 %v495, %v493
    %v530 = vpack.c.b16 %v498, %v496
    %v531 = vpack.c.b16 %v499, %v497
    %564 = vmatprep.subr.bf16.mxu0 %v515
    %565 = vmatpush1.bf16.msra.mxu0 %v514
    %566 = vmatprep.subr.bf16.mxu0 %v513
    %567 = vmatpush1.bf16.msra.mxu0 %v512
    %568 = vmatprep.subr.bf16.mxu0 %v511
    %569 = vmatpush1.bf16.msra.mxu0 %v510
    %570 = vmatprep.subr.bf16.mxu0 %v509
    %571 = vmatpush1.bf16.msra.mxu0 %v508
    %572 = vmatprep.subr.bf16.mxu0 %v507
    %573 = vmatpush1.bf16.msra.mxu0 %v506
    %574 = vmatprep.subr.bf16.mxu0 %v505
    %575 = vmatpush1.bf16.msra.mxu0 %v504
    %576 = vmatprep.subr.bf16.mxu0 %v503
    %577 = vmatpush1.bf16.msra.mxu0 %v502
    %578 = vmatprep.subr.bf16.mxu0 %v501
    %579 = vmatpush1.bf16.msra.mxu0 %v500
    %580 = vmatprep.subr.bf16.mxu0 %v531
    %581 = vmatpush2.bf16.msra.mxu0 %v530
    %582 = vmatprep.subr.bf16.mxu0 %v529
    %583 = vmatpush2.bf16.msra.mxu0 %v528
    %584 = vmatprep.subr.bf16.mxu0 %v527
    %585 = vmatpush2.bf16.msra.mxu0 %v526
    %586 = vmatprep.subr.bf16.mxu0 %v525
    %587 = vmatpush2.bf16.msra.mxu0 %v524
    %588 = vmatprep.subr.bf16.mxu0 %v523
    %589 = vmatpush2.bf16.msra.mxu0 %v522
    %590 = vmatprep.subr.bf16.mxu0 %v521
    %591 = vmatpush2.bf16.msra.mxu0 %v520
    %592 = vmatprep.subr.bf16.mxu0 %v519
    %593 = vmatpush2.bf16.msra.mxu0 %v518
    %594 = vmatprep.subr.bf16.mxu0 %v517
    %595 = vmatpush2.bf16.msra.mxu0 %v516
    %596 = vmatprep.mubr.bf16.mxu0 %v359
    %597 = vmatmul.mubr.bf16.gmra.mxu0 %v358
    %v598 = vpop.f32.mrf.mxu0
    %v599 = vadd.f32 %v397, %v598
    %v600 = vpop.f32.mrf.mxu0
    %v601 = vadd.f32 %v401, %v600
    %v602 = vpop.f32.mrf.mxu0
    %v603 = vadd.f32 %v397, %v602
    %v604 = vpop.f32.mrf.mxu0
    %v605 = vadd.f32 %v401, %v604
    %606 = vdwg.mxu0
    %v607 = vmax.f32 %v599, 0.0
    %v608 = vmax.f32 %v601, 0.0
    %v609 = vmax.f32 %v603, 0.0
    %v610 = vmax.f32 %v605, 0.0
    %v611 = vpack.c.bf16 %v609, %v607
    %v612 = vpack.c.bf16 %v610, %v608
    %v613 = vld [vmem:[%s6] sm:$0xf]
    %v614 = vld [vmem:[%s6 + $0x4] sm:$0xf]
    %v615 = vld [vmem:[%s6 + $0x8] sm:$0xf]
    %v616 = vld [vmem:[%s6 + $0xc] sm:$0xf]
    %v617 = vld [vmem:[%s6 + $0x10] sm:$0xf]
    %v618 = vld [vmem:[%s6 + $0x14] sm:$0xf]
    %v619 = vld [vmem:[%s6 + $0x18] sm:$0xf]
    %v620 = vld [vmem:[%s6 + $0x1c] sm:$0xf]
    %v621 = vld [vmem:[%s6 + $0x20] sm:$0xf]
    %v622 = vld [vmem:[%s6 + $0x24] sm:$0xf]
    %v623 = vld [vmem:[%s6 + $0x28] sm:$0xf]
    %v624 = vld [vmem:[%s6 + $0x2c] sm:$0xf]
    %v625 = vld [vmem:[%s6 + $0x30] sm:$0xf]
    %v626 = vld [vmem:[%s6 + $0x34] sm:$0xf]
    %v627 = vld [vmem:[%s6 + $0x38] sm:$0xf]
    %v628 = vld [vmem:[%s6 + $0x3c] sm:$0xf]
    %v629 = vld [vmem:[%s6 + $0x40] sm:$0xf]
    %v630 = vld [vmem:[%s6 + $0x44] sm:$0xf]
    %v631 = vld [vmem:[%s6 + $0x48] sm:$0xf]
    %v632 = vld [vmem:[%s6 + $0x4c] sm:$0xf]
    %v633 = vld [vmem:[%s6 + $0x50] sm:$0xf]
    %v634 = vld [vmem:[%s6 + $0x54] sm:$0xf]
    %v635 = vld [vmem:[%s6 + $0x58] sm:$0xf]
    %v636 = vld [vmem:[%s6 + $0x5c] sm:$0xf]
    %v637 = vld [vmem:[%s6 + $0x60] sm:$0xf]
    %v638 = vld [vmem:[%s6 + $0x64] sm:$0xf]
    %v639 = vld [vmem:[%s6 + $0x68] sm:$0xf]
    %v640 = vld [vmem:[%s6 + $0x6c] sm:$0xf]
    %v641 = vld [vmem:[%s6 + $0x70] sm:$0xf]
    %v642 = vld [vmem:[%s6 + $0x74] sm:$0xf]
    %v643 = vld [vmem:[%s6 + $0x78] sm:$0xf]
    %v644 = vld [vmem:[%s6 + $0x7c] sm:$0xf]
    %v645 = vld [vmem:[%s7] sm:$0x1]
    %v647 = vlaneseq
    %v648 = vshrl.u32 %v647, 7
    %v649 = vsub.s32 0, %v648
    %v650 = vrot.slane %v645, %v649
    %v684 = vunpack.c.l.b16 %v613
    %v685 = vunpack.c.l.b16 %v614
    %v686 = vunpack.c.l.b16 %v615
    %v687 = vunpack.c.l.b16 %v616
    %v688 = vunpack.c.l.b16 %v617
    %v689 = vunpack.c.l.b16 %v618
    %v690 = vunpack.c.l.b16 %v619
    %v691 = vunpack.c.l.b16 %v620
    %v692 = vunpack.c.l.b16 %v621
    %v693 = vunpack.c.l.b16 %v622
    %v694 = vunpack.c.l.b16 %v623
    %v695 = vunpack.c.l.b16 %v624
    %v696 = vunpack.c.l.b16 %v625
    %v697 = vunpack.c.l.b16 %v626
    %v698 = vunpack.c.l.b16 %v627
    %v699 = vunpack.c.l.b16 %v628
    %v700 = vunpack.c.l.b16 %v629
    %v701 = vunpack.c.l.b16 %v630
    %v702 = vunpack.c.l.b16 %v631
    %v703 = vunpack.c.l.b16 %v632
    %v704 = vunpack.c.l.b16 %v633
    %v705 = vunpack.c.l.b16 %v634
    %v706 = vunpack.c.l.b16 %v635
    %v707 = vunpack.c.l.b16 %v636
    %v708 = vunpack.c.l.b16 %v637
    %v709 = vunpack.c.l.b16 %v638
    %v710 = vunpack.c.l.b16 %v639
    %v711 = vunpack.c.l.b16 %v640
    %v712 = vunpack.c.l.b16 %v641
    %v713 = vunpack.c.l.b16 %v642
    %v714 = vunpack.c.l.b16 %v643
    %v715 = vunpack.c.l.b16 %v644
    %v716 = vpack.c.b16 %v685, %v684
    %v717 = vpack.c.b16 %v687, %v686
    %v718 = vpack.c.b16 %v689, %v688
    %v719 = vpack.c.b16 %v691, %v690
    %v720 = vpack.c.b16 %v693, %v692
    %v721 = vpack.c.b16 %v695, %v694
    %v722 = vpack.c.b16 %v697, %v696
    %v723 = vpack.c.b16 %v699, %v698
    %v724 = vpack.c.b16 %v701, %v700
    %v725 = vpack.c.b16 %v703, %v702
    %v726 = vpack.c.b16 %v705, %v704
    %v727 = vpack.c.b16 %v707, %v706
    %v728 = vpack.c.b16 %v709, %v708
    %v729 = vpack.c.b16 %v711, %v710
    %v730 = vpack.c.b16 %v713, %v712
    %v731 = vpack.c.b16 %v715, %v714
    %748 = vmatprep.subr.bf16.mxu0 0
    %749 = vmatpush1.bf16.msra.mxu0 %v723
    %750 = vmatprep.subr.bf16.mxu0 0
    %751 = vmatpush1.bf16.msra.mxu0 %v722
    %752 = vmatprep.subr.bf16.mxu0 0
    %753 = vmatpush1.bf16.msra.mxu0 %v721
    %754 = vmatprep.subr.bf16.mxu0 0
    %755 = vmatpush1.bf16.msra.mxu0 %v720
    %756 = vmatprep.subr.bf16.mxu0 0
    %757 = vmatpush1.bf16.msra.mxu0 %v719
    %758 = vmatprep.subr.bf16.mxu0 0
    %759 = vmatpush1.bf16.msra.mxu0 %v718
    %760 = vmatprep.subr.bf16.mxu0 0
    %761 = vmatpush1.bf16.msra.mxu0 %v717
    %762 = vmatprep.subr.bf16.mxu0 0
    %763 = vmatpush1.bf16.msra.mxu0 %v716
    %764 = vmatprep.subr.bf16.mxu0 0
    %765 = vmatpush2.bf16.msra.mxu0 %v731
    %766 = vmatprep.subr.bf16.mxu0 0
    %767 = vmatpush2.bf16.msra.mxu0 %v730
    %768 = vmatprep.subr.bf16.mxu0 0
    %769 = vmatpush2.bf16.msra.mxu0 %v729
    %770 = vmatprep.subr.bf16.mxu0 0
    %771 = vmatpush2.bf16.msra.mxu0 %v728
    %772 = vmatprep.subr.bf16.mxu0 0
    %773 = vmatpush2.bf16.msra.mxu0 %v727
    %774 = vmatprep.subr.bf16.mxu0 0
    %775 = vmatpush2.bf16.msra.mxu0 %v726
    %776 = vmatprep.subr.bf16.mxu0 0
    %777 = vmatpush2.bf16.msra.mxu0 %v725
    %778 = vmatprep.subr.bf16.mxu0 0
    %779 = vmatpush2.bf16.msra.mxu0 %v724
    %780 = vmatprep.mubr.bf16.mxu0 %v612
    %781 = vmatmul.mubr.bf16.gmra.mxu0 %v611
    %v782 = vpop.f32.mrf.mxu0
    %v783 = vadd.f32 %v650, %v782
    %v784 = vpop.f32.mrf.mxu0
    %v785 = vpop.f32.mrf.mxu0
    %v786 = vadd.f32 %v650, %v785
    %v787 = vpop.f32.mrf.mxu0
    %788 = vdwg.mxu0
    %v789 = vld [vmem:[%s8] sm:$0xf]
    %v790 = vld [vmem:[%s8 + $0x4] sm:$0xf]
    %v791 = vld [vmem:[%s8 + $0x8] sm:$0xf]
    %v792 = vld [vmem:[%s8 + $0xc] sm:$0xf]
    %v793 = vld [vmem:[%s8 + $0x10] sm:$0xf]
    %v794 = vld [vmem:[%s8 + $0x14] sm:$0xf]
    %v795 = vld [vmem:[%s8 + $0x18] sm:$0xf]
    %v796 = vld [vmem:[%s8 + $0x1c] sm:$0xf]
    %v797 = vld [vmem:[%s8 + $0x20] sm:$0xf]
    %v798 = vld [vmem:[%s8 + $0x24] sm:$0xf]
    %v799 = vld [vmem:[%s8 + $0x28] sm:$0xf]
    %v800 = vld [vmem:[%s8 + $0x2c] sm:$0xf]
    %v801 = vld [vmem:[%s8 + $0x30] sm:$0xf]
    %v802 = vld [vmem:[%s8 + $0x34] sm:$0xf]
    %v803 = vld [vmem:[%s8 + $0x38] sm:$0xf]
    %v804 = vld [vmem:[%s8 + $0x3c] sm:$0xf]
    %v805 = vld [vmem:[%s8 + $0x40] sm:$0xf]
    %v806 = vld [vmem:[%s8 + $0x44] sm:$0xf]
    %v807 = vld [vmem:[%s8 + $0x48] sm:$0xf]
    %v808 = vld [vmem:[%s8 + $0x4c] sm:$0xf]
    %v809 = vld [vmem:[%s8 + $0x50] sm:$0xf]
    %v810 = vld [vmem:[%s8 + $0x54] sm:$0xf]
    %v811 = vld [vmem:[%s8 + $0x58] sm:$0xf]
    %v812 = vld [vmem:[%s8 + $0x5c] sm:$0xf]
    %v813 = vld [vmem:[%s8 + $0x60] sm:$0xf]
    %v814 = vld [vmem:[%s8 + $0x64] sm:$0xf]
    %v815 = vld [vmem:[%s8 + $0x68] sm:$0xf]
    %v816 = vld [vmem:[%s8 + $0x6c] sm:$0xf]
    %v817 = vld [vmem:[%s8 + $0x70] sm:$0xf]
    %v818 = vld [vmem:[%s8 + $0x74] sm:$0xf]
    %v819 = vld [vmem:[%s8 + $0x78] sm:$0xf]
    %v820 = vld [vmem:[%s8 + $0x7c] sm:$0xf]
    %v821 = vld [vmem:[#allocation11] sm:$0x1]
    %v823 = vlaneseq
    %v824 = vshrl.u32 %v823, 7
    %v825 = vsub.s32 0, %v824
    %v826 = vrot.slane %v821, %v825
    %v860 = vunpack.c.l.b16 %v789
    %v861 = vunpack.c.l.b16 %v790
    %v862 = vunpack.c.l.b16 %v791
    %v863 = vunpack.c.l.b16 %v792
    %v864 = vunpack.c.l.b16 %v793
    %v865 = vunpack.c.l.b16 %v794
    %v866 = vunpack.c.l.b16 %v795
    %v867 = vunpack.c.l.b16 %v796
    %v868 = vunpack.c.l.b16 %v797
    %v869 = vunpack.c.l.b16 %v798
    %v870 = vunpack.c.l.b16 %v799
    %v871 = vunpack.c.l.b16 %v800
    %v872 = vunpack.c.l.b16 %v801
    %v873 = vunpack.c.l.b16 %v802
    %v874 = vunpack.c.l.b16 %v803
    %v875 = vunpack.c.l.b16 %v804
    %v876 = vunpack.c.l.b16 %v805
    %v877 = vunpack.c.l.b16 %v806
    %v878 = vunpack.c.l.b16 %v807
    %v879 = vunpack.c.l.b16 %v808
    %v880 = vunpack.c.l.b16 %v809
    %v881 = vunpack.c.l.b16 %v810
    %v882 = vunpack.c.l.b16 %v811
    %v883 = vunpack.c.l.b16 %v812
    %v884 = vunpack.c.l.b16 %v813
    %v885 = vunpack.c.l.b16 %v814
    %v886 = vunpack.c.l.b16 %v815
    %v887 = vunpack.c.l.b16 %v816
    %v888 = vunpack.c.l.b16 %v817
    %v889 = vunpack.c.l.b16 %v818
    %v890 = vunpack.c.l.b16 %v819
    %v891 = vunpack.c.l.b16 %v820
    %v892 = vpack.c.b16 %v861, %v860
    %v893 = vpack.c.b16 %v863, %v862
    %v894 = vpack.c.b16 %v865, %v864
    %v895 = vpack.c.b16 %v867, %v866
    %v896 = vpack.c.b16 %v869, %v868
    %v897 = vpack.c.b16 %v871, %v870
    %v898 = vpack.c.b16 %v873, %v872
    %v899 = vpack.c.b16 %v875, %v874
    %v900 = vpack.c.b16 %v877, %v876
    %v901 = vpack.c.b16 %v879, %v878
    %v902 = vpack.c.b16 %v881, %v880
    %v903 = vpack.c.b16 %v883, %v882
    %v904 = vpack.c.b16 %v885, %v884
    %v905 = vpack.c.b16 %v887, %v886
    %v906 = vpack.c.b16 %v889, %v888
    %v907 = vpack.c.b16 %v891, %v890
    %924 = vmatprep.subr.bf16.mxu0 0
    %925 = vmatpush1.bf16.msra.mxu0 %v899
    %926 = vmatprep.subr.bf16.mxu0 0
    %927 = vmatpush1.bf16.msra.mxu0 %v898
    %928 = vmatprep.subr.bf16.mxu0 0
    %929 = vmatpush1.bf16.msra.mxu0 %v897
    %930 = vmatprep.subr.bf16.mxu0 0
    %931 = vmatpush1.bf16.msra.mxu0 %v896
    %932 = vmatprep.subr.bf16.mxu0 0
    %933 = vmatpush1.bf16.msra.mxu0 %v895
    %934 = vmatprep.subr.bf16.mxu0 0
    %935 = vmatpush1.bf16.msra.mxu0 %v894
    %936 = vmatprep.subr.bf16.mxu0 0
    %937 = vmatpush1.bf16.msra.mxu0 %v893
    %938 = vmatprep.subr.bf16.mxu0 0
    %939 = vmatpush1.bf16.msra.mxu0 %v892
    %940 = vmatprep.subr.bf16.mxu0 0
    %941 = vmatpush2.bf16.msra.mxu0 %v907
    %942 = vmatprep.subr.bf16.mxu0 0
    %943 = vmatpush2.bf16.msra.mxu0 %v906
    %944 = vmatprep.subr.bf16.mxu0 0
    %945 = vmatpush2.bf16.msra.mxu0 %v905
    %946 = vmatprep.subr.bf16.mxu0 0
    %947 = vmatpush2.bf16.msra.mxu0 %v904
    %948 = vmatprep.subr.bf16.mxu0 0
    %949 = vmatpush2.bf16.msra.mxu0 %v903
    %950 = vmatprep.subr.bf16.mxu0 0
    %951 = vmatpush2.bf16.msra.mxu0 %v902
    %952 = vmatprep.subr.bf16.mxu0 0
    %953 = vmatpush2.bf16.msra.mxu0 %v901
    %954 = vmatprep.subr.bf16.mxu0 0
    %955 = vmatpush2.bf16.msra.mxu0 %v900
    %956 = vmatprep.mubr.bf16.mxu0 %v612
    %957 = vmatmul.mubr.bf16.gmra.mxu0 %v611
    %v958 = vpop.f32.mrf.mxu0
    %v959 = vadd.f32 %v826, %v958
    %v960 = vpop.f32.mrf.mxu0
    %v961 = vpop.f32.mrf.mxu0
    %v962 = vadd.f32 %v826, %v961
    %v963 = vpop.f32.mrf.mxu0
    %964 = vdwg.mxu0
    %v965 = vmul.f32 %v959, 0.5
    %v966 = vmul.f32 %v962, 0.5
    %v967 = vmul.f32 %v965, 1.442695
    %v968 = vpow.pop %v967
    %v969 = vmul.f32 %v966, 1.442695
    %v970 = vpow.pop %v969
    %v971 = vmul.f32 %v244, %v968
    %v972 = vmul.f32 %v245, %v970
    %v973 = vadd.f32 %v783, %v971
    %v974 = vadd.f32 %v786, %v972
    %v975 = vpack.c.bf16 %v974, %v973
    %v976 = vld [vmem:[%s10] sm:$0xff]
    %v977 = vld [vmem:[%s10 + $0x8] sm:$0xff]
    %v978 = vld [vmem:[#allocation13] sm:$0x3]
    %v980 = vlaneseq
    %v981 = vshrl.u32 %v980, 7
    %v982 = vsub.s32 0, %v981
    %v983 = vrot.slane %v978, %v982
    %v984 = vlaneseq
    %v985 = vshrl.u32 %v984, 7
    %v986 = vsub.s32 1, %v985
    %v987 = vrot.slane %v978, %v986
    %v992 = vunpack.c.l.b16 %v976
    %v993 = vunpack.c.h.b16 %v976
    %v994 = vunpack.c.l.b16 %v977
    %v995 = vunpack.c.h.b16 %v977
    %v996 = vpack.c.b16 %v994, %v992
    %v997 = vpack.c.b16 %v995, %v993
    %vm1000 = vcmask 130048
    %v1002 = vsel %vm1000, %v975, 0
    %1004 = vmatprep.subr.bf16.mxu0 0
    %1005 = vmatpush1.bf16.msra.mxu0 0
    %1006 = vmatprep.subr.bf16.mxu0 0
    %1007 = vmatpush1.bf16.msra.mxu0 0
    %1008 = vmatprep.subr.bf16.mxu0 0
    %1009 = vmatpush1.bf16.msra.mxu0 0
    %1010 = vmatprep.subr.bf16.mxu0 0
    %1011 = vmatpush1.bf16.msra.mxu0 0
    %1012 = vmatprep.subr.bf16.mxu0 0
    %1013 = vmatpush1.bf16.msra.mxu0 0
    %1014 = vmatprep.subr.bf16.mxu0 0
    %1015 = vmatpush1.bf16.msra.mxu0 0
    %1016 = vmatprep.subr.bf16.mxu0 0
    %1017 = vmatpush1.bf16.msra.mxu0 0
    %1018 = vmatprep.subr.bf16.mxu0 %v997
    %1019 = vmatpush1.bf16.msra.mxu0 %v996
    %1020 = vmatprep.subr.bf16.mxu0 0
    %1021 = vmatpush2.bf16.msra.mxu0 0
    %1022 = vmatprep.subr.bf16.mxu0 0
    %1023 = vmatpush2.bf16.msra.mxu0 0
    %1024 = vmatprep.subr.bf16.mxu0 0
    %1025 = vmatpush2.bf16.msra.mxu0 0
    %1026 = vmatprep.subr.bf16.mxu0 0
    %1027 = vmatpush2.bf16.msra.mxu0 0
    %1028 = vmatprep.subr.bf16.mxu0 0
    %1029 = vmatpush2.bf16.msra.mxu0 0
    %1030 = vmatprep.subr.bf16.mxu0 0
    %1031 = vmatpush2.bf16.msra.mxu0 0
    %1032 = vmatprep.subr.bf16.mxu0 0
    %1033 = vmatpush2.bf16.msra.mxu0 0
    %1034 = vmatprep.subr.bf16.mxu0 0
    %1035 = vmatpush2.bf16.msra.mxu0 0
    %1036 = vmatprep.mubr.bf16.mxu0 0
    %1037 = vmatmul.mubr.bf16.gmra.mxu0 %v1002
    %v1038 = vpop.f32.mrf.mxu0
    %v1039 = vadd.f32 %v983, %v1038
    %v1040 = vpop.f32.mrf.mxu0
    %v1041 = vadd.f32 %v987, %v1040
    %v1042 = vpop.f32.mrf.mxu0
    %v1043 = vadd.f32 %v983, %v1042
    %v1044 = vpop.f32.mrf.mxu0
    %v1045 = vadd.f32 %v987, %v1044
    %1046 = vdwg.mxu0
    %v1047 = vmax.f32 %v1039, 0.0
    %v1048 = vmax.f32 %v1041, 0.0
    %v1049 = vmax.f32 %v1043, 0.0
    %v1050 = vmax.f32 %v1045, 0.0
    %v1051 = vpack.c.bf16 %v1049, %v1047
    %v1052 = vpack.c.bf16 %v1050, %v1048
    %v1053 = vld [vmem:[#allocation14] sm:$0xff]
    %v1054 = vld [vmem:[#allocation14 + $0x8] sm:$0xff]
    %v1055 = vld [vmem:[#allocation14 + $0x10] sm:$0xff]
    %v1056 = vld [vmem:[#allocation14 + $0x18] sm:$0xff]
    %v1057 = vld [vmem:[#allocation14 + $0x20] sm:$0xff]
    %v1058 = vld [vmem:[#allocation14 + $0x28] sm:$0xff]
    %v1059 = vld [vmem:[#allocation14 + $0x30] sm:$0xff]
    %v1060 = vld [vmem:[#allocation14 + $0x38] sm:$0xff]
    %v1061 = vld [vmem:[#allocation14 + $0x40] sm:$0xff]
    %v1062 = vld [vmem:[#allocation14 + $0x48] sm:$0xff]
    %v1063 = vld [vmem:[#allocation14 + $0x50] sm:$0xff]
    %v1064 = vld [vmem:[#allocation14 + $0x58] sm:$0xff]
    %v1065 = vld [vmem:[#allocation14 + $0x60] sm:$0xff]
    %v1066 = vld [vmem:[#allocation14 + $0x68] sm:$0xff]
    %v1067 = vld [vmem:[#allocation14 + $0x70] sm:$0xff]
    %v1068 = vld [vmem:[#allocation14 + $0x78] sm:$0xff]
    %v1069 = vld [vmem:[#allocation14 + $0x80] sm:$0xff]
    %v1070 = vld [vmem:[#allocation14 + $0x88] sm:$0xff]
    %v1071 = vld [vmem:[#allocation14 + $0x90] sm:$0xff]
    %v1072 = vld [vmem:[#allocation14 + $0x98] sm:$0xff]
    %v1073 = vld [vmem:[#allocation14 + $0xa0] sm:$0xff]
    %v1074 = vld [vmem:[#allocation14 + $0xa8] sm:$0xff]
    %v1075 = vld [vmem:[#allocation14 + $0xb0] sm:$0xff]
    %v1076 = vld [vmem:[#allocation14 + $0xb8] sm:$0xff]
    %v1077 = vld [vmem:[#allocation14 + $0xc0] sm:$0xff]
    %v1078 = vld [vmem:[#allocation14 + $0xc8] sm:$0xff]
    %v1079 = vld [vmem:[#allocation14 + $0xd0] sm:$0xff]
    %v1080 = vld [vmem:[#allocation14 + $0xd8] sm:$0xff]
    %v1081 = vld [vmem:[#allocation14 + $0xe0] sm:$0xff]
    %v1082 = vld [vmem:[#allocation14 + $0xe8] sm:$0xff]
    %v1083 = vld [vmem:[#allocation14 + $0xf0] sm:$0xff]
    %v1084 = vld [vmem:[#allocation14 + $0xf8] sm:$0xff]
    %v1085 = vld [vmem:[#allocation16] sm:$0x3]
    %v1087 = vlaneseq
    %v1088 = vshrl.u32 %v1087, 7
    %v1089 = vsub.s32 0, %v1088
    %v1090 = vrot.slane %v1085, %v1089
    %v1091 = vlaneseq
    %v1092 = vshrl.u32 %v1091, 7
    %v1093 = vsub.s32 1, %v1092
    %v1094 = vrot.slane %v1085, %v1093
    %v1129 = vunpack.c.l.b16 %v1053
    %v1130 = vunpack.c.h.b16 %v1053
    %v1131 = vunpack.c.l.b16 %v1054
    %v1132 = vunpack.c.h.b16 %v1054
    %v1133 = vunpack.c.l.b16 %v1055
    %v1134 = vunpack.c.h.b16 %v1055
    %v1135 = vunpack.c.l.b16 %v1056
    %v1136 = vunpack.c.h.b16 %v1056
    %v1137 = vunpack.c.l.b16 %v1057
    %v1138 = vunpack.c.h.b16 %v1057
    %v1139 = vunpack.c.l.b16 %v1058
    %v1140 = vunpack.c.h.b16 %v1058
    %v1141 = vunpack.c.l.b16 %v1059
    %v1142 = vunpack.c.h.b16 %v1059
    %v1143 = vunpack.c.l.b16 %v1060
    %v1144 = vunpack.c.h.b16 %v1060
    %v1145 = vunpack.c.l.b16 %v1061
    %v1146 = vunpack.c.h.b16 %v1061
    %v1147 = vunpack.c.l.b16 %v1062
    %v1148 = vunpack.c.h.b16 %v1062
    %v1149 = vunpack.c.l.b16 %v1063
    %v1150 = vunpack.c.h.b16 %v1063
    %v1151 = vunpack.c.l.b16 %v1064
    %v1152 = vunpack.c.h.b16 %v1064
    %v1153 = vunpack.c.l.b16 %v1065
    %v1154 = vunpack.c.h.b16 %v1065
    %v1155 = vunpack.c.l.b16 %v1066
    %v1156 = vunpack.c.h.b16 %v1066
    %v1157 = vunpack.c.l.b16 %v1067
    %v1158 = vunpack.c.h.b16 %v1067
    %v1159 = vunpack.c.l.b16 %v1068
    %v1160 = vunpack.c.h.b16 %v1068
    %v1161 = vunpack.c.l.b16 %v1069
    %v1162 = vunpack.c.h.b16 %v1069
    %v1163 = vunpack.c.l.b16 %v1070
    %v1164 = vunpack.c.h.b16 %v1070
    %v1165 = vunpack.c.l.b16 %v1071
    %v1166 = vunpack.c.h.b16 %v1071
    %v1167 = vunpack.c.l.b16 %v1072
    %v1168 = vunpack.c.h.b16 %v1072
    %v1169 = vunpack.c.l.b16 %v1073
    %v1170 = vunpack.c.h.b16 %v1073
    %v1171 = vunpack.c.l.b16 %v1074
    %v1172 = vunpack.c.h.b16 %v1074
    %v1173 = vunpack.c.l.b16 %v1075
    %v1174 = vunpack.c.h.b16 %v1075
    %v1175 = vunpack.c.l.b16 %v1076
    %v1176 = vunpack.c.h.b16 %v1076
    %v1177 = vunpack.c.l.b16 %v1077
    %v1178 = vunpack.c.h.b16 %v1077
    %v1179 = vunpack.c.l.b16 %v1078
    %v1180 = vunpack.c.h.b16 %v1078
    %v1181 = vunpack.c.l.b16 %v1079
    %v1182 = vunpack.c.h.b16 %v1079
    %v1183 = vunpack.c.l.b16 %v1080
    %v1184 = vunpack.c.h.b16 %v1080
    %v1185 = vunpack.c.l.b16 %v1081
    %v1186 = vunpack.c.h.b16 %v1081
    %v1187 = vunpack.c.l.b16 %v1082
    %v1188 = vunpack.c.h.b16 %v1082
    %v1189 = vunpack.c.l.b16 %v1083
    %v1190 = vunpack.c.h.b16 %v1083
    %v1191 = vunpack.c.l.b16 %v1084
    %v1192 = vunpack.c.h.b16 %v1084
    %v1193 = vpack.c.b16 %v1131, %v1129
    %v1194 = vpack.c.b16 %v1132, %v1130
    %v1195 = vpack.c.b16 %v1135, %v1133
    %v1196 = vpack.c.b16 %v1136, %v1134
    %v1197 = vpack.c.b16 %v1139, %v1137
    %v1198 = vpack.c.b16 %v1140, %v1138
    %v1199 = vpack.c.b16 %v1143, %v1141
    %v1200 = vpack.c.b16 %v1144, %v1142
    %v1201 = vpack.c.b16 %v1147, %v1145
    %v1202 = vpack.c.b16 %v1148, %v1146
    %v1203 = vpack.c.b16 %v1151, %v1149
    %v1204 = vpack.c.b16 %v1152, %v1150
    %v1205 = vpack.c.b16 %v1155, %v1153
    %v1206 = vpack.c.b16 %v1156, %v1154
    %v1207 = vpack.c.b16 %v1159, %v1157
    %v1208 = vpack.c.b16 %v1160, %v1158
    %v1209 = vpack.c.b16 %v1163, %v1161
    %v1210 = vpack.c.b16 %v1164, %v1162
    %v1211 = vpack.c.b16 %v1167, %v1165
    %v1212 = vpack.c.b16 %v1168, %v1166
    %v1213 = vpack.c.b16 %v1171, %v1169
    %v1214 = vpack.c.b16 %v1172, %v1170
    %v1215 = vpack.c.b16 %v1175, %v1173
    %v1216 = vpack.c.b16 %v1176, %v1174
    %v1217 = vpack.c.b16 %v1179, %v1177
    %v1218 = vpack.c.b16 %v1180, %v1178
    %v1219 = vpack.c.b16 %v1183, %v1181
    %v1220 = vpack.c.b16 %v1184, %v1182
    %v1221 = vpack.c.b16 %v1187, %v1185
    %v1222 = vpack.c.b16 %v1188, %v1186
    %v1223 = vpack.c.b16 %v1191, %v1189
    %v1224 = vpack.c.b16 %v1192, %v1190
    %1257 = vmatprep.subr.bf16.mxu0 %v1208
    %1258 = vmatpush1.bf16.msra.mxu0 %v1207
    %1259 = vmatprep.subr.bf16.mxu0 %v1206
    %1260 = vmatpush1.bf16.msra.mxu0 %v1205
    %1261 = vmatprep.subr.bf16.mxu0 %v1204
    %1262 = vmatpush1.bf16.msra.mxu0 %v1203
    %1263 = vmatprep.subr.bf16.mxu0 %v1202
    %1264 = vmatpush1.bf16.msra.mxu0 %v1201
    %1265 = vmatprep.subr.bf16.mxu0 %v1200
    %1266 = vmatpush1.bf16.msra.mxu0 %v1199
    %1267 = vmatprep.subr.bf16.mxu0 %v1198
    %1268 = vmatpush1.bf16.msra.mxu0 %v1197
    %1269 = vmatprep.subr.bf16.mxu0 %v1196
    %1270 = vmatpush1.bf16.msra.mxu0 %v1195
    %1271 = vmatprep.subr.bf16.mxu0 %v1194
    %1272 = vmatpush1.bf16.msra.mxu0 %v1193
    %1273 = vmatprep.subr.bf16.mxu0 %v1224
    %1274 = vmatpush2.bf16.msra.mxu0 %v1223
    %1275 = vmatprep.subr.bf16.mxu0 %v1222
    %1276 = vmatpush2.bf16.msra.mxu0 %v1221
    %1277 = vmatprep.subr.bf16.mxu0 %v1220
    %1278 = vmatpush2.bf16.msra.mxu0 %v1219
    %1279 = vmatprep.subr.bf16.mxu0 %v1218
    %1280 = vmatpush2.bf16.msra.mxu0 %v1217
    %1281 = vmatprep.subr.bf16.mxu0 %v1216
    %1282 = vmatpush2.bf16.msra.mxu0 %v1215
    %1283 = vmatprep.subr.bf16.mxu0 %v1214
    %1284 = vmatpush2.bf16.msra.mxu0 %v1213
    %1285 = vmatprep.subr.bf16.mxu0 %v1212
    %1286 = vmatpush2.bf16.msra.mxu0 %v1211
    %1287 = vmatprep.subr.bf16.mxu0 %v1210
    %1288 = vmatpush2.bf16.msra.mxu0 %v1209
    %1289 = vmatprep.mubr.bf16.mxu0 %v1052
    %1290 = vmatmul.mubr.bf16.gmra.mxu0 %v1051
    %v1291 = vpop.f32.mrf.mxu0
    %v1292 = vadd.f32 %v1090, %v1291
    %v1293 = vpop.f32.mrf.mxu0
    %v1294 = vadd.f32 %v1094, %v1293
    %v1295 = vpop.f32.mrf.mxu0
    %v1296 = vadd.f32 %v1090, %v1295
    %v1297 = vpop.f32.mrf.mxu0
    %v1298 = vadd.f32 %v1094, %v1297
    %1299 = vdwg.mxu0
    %v1300 = vmax.f32 %v1292, 0.0
    %v1301 = vmax.f32 %v1294, 0.0
    %v1302 = vmax.f32 %v1296, 0.0
    %v1303 = vmax.f32 %v1298, 0.0
    %v1304 = vld [vmem:[#allocation17] sm:$0xff]
    %v1305 = vld [vmem:[#allocation17 + $0x8] sm:$0xff]
    %v1306 = vld [vmem:[#allocation17 + $0x10] sm:$0xff]
    %v1307 = vld [vmem:[#allocation17 + $0x18] sm:$0xff]
    %v1308 = vld [vmem:[#allocation17 + $0x20] sm:$0xff]
    %v1309 = vld [vmem:[#allocation17 + $0x28] sm:$0xff]
    %v1310 = vld [vmem:[#allocation17 + $0x30] sm:$0xff]
    %v1311 = vld [vmem:[#allocation17 + $0x38] sm:$0xff]
    %v1312 = vld [vmem:[#allocation17 + $0x40] sm:$0xff]
    %v1313 = vld [vmem:[#allocation17 + $0x48] sm:$0xff]
    %v1314 = vld [vmem:[#allocation17 + $0x50] sm:$0xff]
    %v1315 = vld [vmem:[#allocation17 + $0x58] sm:$0xff]
    %v1316 = vld [vmem:[#allocation17 + $0x60] sm:$0xff]
    %v1317 = vld [vmem:[#allocation17 + $0x68] sm:$0xff]
    %v1318 = vld [vmem:[#allocation17 + $0x70] sm:$0xff]
    %v1319 = vld [vmem:[#allocation17 + $0x78] sm:$0xff]
    %v1320 = vld [vmem:[%s15] sm:$0xff]
    %v1321 = vld [vmem:[%s15 + $0x8] sm:$0xff]
    %v1322 = vld [vmem:[%s15 + $0x10] sm:$0xff]
    %v1323 = vld [vmem:[%s15 + $0x18] sm:$0xff]
    %v1328 = vunpack.c.l.b16 %v1320
    %v1329 = vunpack.c.h.b16 %v1320
    %v1330 = vunpack.c.l.b16 %v1321
    %v1331 = vunpack.c.h.b16 %v1321
    %v1332 = vunpack.c.l.b16 %v1322
    %v1333 = vunpack.c.h.b16 %v1322
    %v1334 = vunpack.c.l.b16 %v1323
    %v1335 = vunpack.c.h.b16 %v1323
    %v1336 = vpack.c.b16 %v1332, %v1328
    %v1337 = vpack.c.b16 %v1333, %v1329
    %v1338 = vpack.c.b16 %v1334, %v1330
    %v1339 = vpack.c.b16 %v1335, %v1331
    %1344 = vmatprep.subr.bf16.mxu0 0
    %1345 = vmatpush1.bf16.msra.mxu0 0
    %1346 = vmatprep.subr.bf16.mxu0 0
    %1347 = vmatpush1.bf16.msra.mxu0 0
    %1348 = vmatprep.subr.bf16.mxu0 0
    %1349 = vmatpush1.bf16.msra.mxu0 0
    %1350 = vmatprep.subr.bf16.mxu0 0
    %1351 = vmatpush1.bf16.msra.mxu0 0
    %1352 = vmatprep.subr.bf16.mxu0 0
    %1353 = vmatpush1.bf16.msra.mxu0 0
    %1354 = vmatprep.subr.bf16.mxu0 0
    %1355 = vmatpush1.bf16.msra.mxu0 0
    %1356 = vmatprep.subr.bf16.mxu0 0
    %1357 = vmatpush1.bf16.msra.mxu0 0
    %1358 = vmatprep.subr.bf16.mxu0 %v1337
    %1359 = vmatpush1.bf16.msra.mxu0 %v1336
    %1360 = vmatprep.subr.bf16.mxu0 0
    %1361 = vmatpush2.bf16.msra.mxu0 0
    %1362 = vmatprep.subr.bf16.mxu0 0
    %1363 = vmatpush2.bf16.msra.mxu0 0
    %1364 = vmatprep.subr.bf16.mxu0 0
    %1365 = vmatpush2.bf16.msra.mxu0 0
    %1366 = vmatprep.subr.bf16.mxu0 0
    %1367 = vmatpush2.bf16.msra.mxu0 0
    %1368 = vmatprep.subr.bf16.mxu0 0
    %1369 = vmatpush2.bf16.msra.mxu0 0
    %1370 = vmatprep.subr.bf16.mxu0 0
    %1371 = vmatpush2.bf16.msra.mxu0 0
    %1372 = vmatprep.subr.bf16.mxu0 0
    %1373 = vmatpush2.bf16.msra.mxu0 0
    %1374 = vmatprep.subr.bf16.mxu0 0
    %1375 = vmatpush2.bf16.msra.mxu0 0
    %1376 = vmatprep.mubr.bf16.mxu0 0
    %1377 = vmatmul.mubr.bf16.gmra.mxu0 %v1002
    %v1378 = vpop.f32.mrf.mxu0
    %v1379 = vadd.f32 0.0, %v1378
    %v1380 = vpop.f32.mrf.mxu0
    %v1381 = vadd.f32 0.0, %v1380
    %v1382 = vpop.f32.mrf.mxu0
    %v1383 = vadd.f32 0.0, %v1382
    %v1384 = vpop.f32.mrf.mxu0
    %v1385 = vadd.f32 0.0, %v1384
    %1386 = vdwg.mxu0
    %1387 = vmatprep.subr.bf16.mxu0 0
    %1388 = vmatpush1.bf16.msra.mxu0 0
    %1389 = vmatprep.subr.bf16.mxu0 0
    %1390 = vmatpush1.bf16.msra.mxu0 0
    %1391 = vmatprep.subr.bf16.mxu0 0
    %1392 = vmatpush1.bf16.msra.mxu0 0
    %1393 = vmatprep.subr.bf16.mxu0 0
    %1394 = vmatpush1.bf16.msra.mxu0 0
    %1395 = vmatprep.subr.bf16.mxu0 0
    %1396 = vmatpush1.bf16.msra.mxu0 0
    %1397 = vmatprep.subr.bf16.mxu0 0
    %1398 = vmatpush1.bf16.msra.mxu0 0
    %1399 = vmatprep.subr.bf16.mxu0 0
    %1400 = vmatpush1.bf16.msra.mxu0 0
    %1401 = vmatprep.subr.bf16.mxu0 %v1339
    %1402 = vmatpush1.bf16.msra.mxu0 %v1338
    %1403 = vmatprep.subr.bf16.mxu0 0
    %1404 = vmatpush2.bf16.msra.mxu0 0
    %1405 = vmatprep.subr.bf16.mxu0 0
    %1406 = vmatpush2.bf16.msra.mxu0 0
    %1407 = vmatprep.subr.bf16.mxu0 0
    %1408 = vmatpush2.bf16.msra.mxu0 0
    %1409 = vmatprep.subr.bf16.mxu0 0
    %1410 = vmatpush2.bf16.msra.mxu0 0
    %1411 = vmatprep.subr.bf16.mxu0 0
    %1412 = vmatpush2.bf16.msra.mxu0 0
    %1413 = vmatprep.subr.bf16.mxu0 0
    %1414 = vmatpush2.bf16.msra.mxu0 0
    %1415 = vmatprep.subr.bf16.mxu0 0
    %1416 = vmatpush2.bf16.msra.mxu0 0
    %1417 = vmatprep.subr.bf16.mxu0 0
    %1418 = vmatpush2.bf16.msra.mxu0 0
    %1419 = vmatprep.mubr.bf16.mxu0 0
    %1420 = vmatmul.mubr.bf16.gmra.mxu0 %v1002
    %v1421 = vpop.f32.mrf.mxu0
    %v1422 = vadd.f32 0.0, %v1421
    %v1423 = vpop.f32.mrf.mxu0
    %v1424 = vadd.f32 0.0, %v1423
    %v1425 = vpop.f32.mrf.mxu0
    %v1426 = vadd.f32 0.0, %v1425
    %v1427 = vpop.f32.mrf.mxu0
    %v1428 = vadd.f32 0.0, %v1427
    %1429 = vdwg.mxu0
    %v1446 = vunpack.c.l.b16 %v1304
    %v1447 = vunpack.c.h.b16 %v1304
    %v1448 = vunpack.c.l.b16 %v1305
    %v1449 = vunpack.c.h.b16 %v1305
    %v1450 = vunpack.c.l.b16 %v1306
    %v1451 = vunpack.c.h.b16 %v1306
    %v1452 = vunpack.c.l.b16 %v1307
    %v1453 = vunpack.c.h.b16 %v1307
    %v1454 = vunpack.c.l.b16 %v1308
    %v1455 = vunpack.c.h.b16 %v1308
    %v1456 = vunpack.c.l.b16 %v1309
    %v1457 = vunpack.c.h.b16 %v1309
    %v1458 = vunpack.c.l.b16 %v1310
    %v1459 = vunpack.c.h.b16 %v1310
    %v1460 = vunpack.c.l.b16 %v1311
    %v1461 = vunpack.c.h.b16 %v1311
    %v1462 = vunpack.c.l.b16 %v1312
    %v1463 = vunpack.c.h.b16 %v1312
    %v1464 = vunpack.c.l.b16 %v1313
    %v1465 = vunpack.c.h.b16 %v1313
    %v1466 = vunpack.c.l.b16 %v1314
    %v1467 = vunpack.c.h.b16 %v1314
    %v1468 = vunpack.c.l.b16 %v1315
    %v1469 = vunpack.c.h.b16 %v1315
    %v1470 = vunpack.c.l.b16 %v1316
    %v1471 = vunpack.c.h.b16 %v1316
    %v1472 = vunpack.c.l.b16 %v1317
    %v1473 = vunpack.c.h.b16 %v1317
    %v1474 = vunpack.c.l.b16 %v1318
    %v1475 = vunpack.c.h.b16 %v1318
    %v1476 = vunpack.c.l.b16 %v1319
    %v1477 = vunpack.c.h.b16 %v1319
    %v1478 = vpack.c.b16 %v1450, %v1446
    %v1479 = vpack.c.b16 %v1451, %v1447
    %v1480 = vpack.c.b16 %v1452, %v1448
    %v1481 = vpack.c.b16 %v1453, %v1449
    %v1482 = vpack.c.b16 %v1458, %v1454
    %v1483 = vpack.c.b16 %v1459, %v1455
    %v1484 = vpack.c.b16 %v1460, %v1456
    %v1485 = vpack.c.b16 %v1461, %v1457
    %v1486 = vpack.c.b16 %v1466, %v1462
    %v1487 = vpack.c.b16 %v1467, %v1463
    %v1488 = vpack.c.b16 %v1468, %v1464
    %v1489 = vpack.c.b16 %v1469, %v1465
    %v1490 = vpack.c.b16 %v1474, %v1470
    %v1491 = vpack.c.b16 %v1475, %v1471
    %v1492 = vpack.c.b16 %v1476, %v1472
    %v1493 = vpack.c.b16 %v1477, %v1473
    %1510 = vmatprep.subr.bf16.mxu0 0
    %1511 = vmatpush1.bf16.msra.mxu0 0
    %1512 = vmatprep.subr.bf16.mxu0 0
    %1513 = vmatpush1.bf16.msra.mxu0 0
    %1514 = vmatprep.subr.bf16.mxu0 0
    %1515 = vmatpush1.bf16.msra.mxu0 0
    %1516 = vmatprep.subr.bf16.mxu0 0
    %1517 = vmatpush1.bf16.msra.mxu0 0
    %1518 = vmatprep.subr.bf16.mxu0 %v1491
    %1519 = vmatpush1.bf16.msra.mxu0 %v1490
    %1520 = vmatprep.subr.bf16.mxu0 %v1487
    %1521 = vmatpush1.bf16.msra.mxu0 %v1486
    %1522 = vmatprep.subr.bf16.mxu0 %v1483
    %1523 = vmatpush1.bf16.msra.mxu0 %v1482
    %1524 = vmatprep.subr.bf16.mxu0 %v1479
    %1525 = vmatpush1.bf16.msra.mxu0 %v1478
    %1526 = vmatprep.subr.bf16.mxu0 0
    %1527 = vmatpush2.bf16.msra.mxu0 0
    %1528 = vmatprep.subr.bf16.mxu0 0
    %1529 = vmatpush2.bf16.msra.mxu0 0
    %1530 = vmatprep.subr.bf16.mxu0 0
    %1531 = vmatpush2.bf16.msra.mxu0 0
    %1532 = vmatprep.subr.bf16.mxu0 0
    %1533 = vmatpush2.bf16.msra.mxu0 0
    %1534 = vmatprep.subr.bf16.mxu0 0
    %1535 = vmatpush2.bf16.msra.mxu0 0
    %1536 = vmatprep.subr.bf16.mxu0 0
    %1537 = vmatpush2.bf16.msra.mxu0 0
    %1538 = vmatprep.subr.bf16.mxu0 0
    %1539 = vmatpush2.bf16.msra.mxu0 0
    %1540 = vmatprep.subr.bf16.mxu0 0
    %1541 = vmatpush2.bf16.msra.mxu0 0
    %1542 = vmatprep.mubr.bf16.mxu0 0
    %1543 = vmatmul.mubr.bf16.gmra.mxu0 %v309
    %v1544 = vpop.f32.mrf.mxu0
    %v1545 = vadd.f32 %v1379, %v1544
    %v1546 = vpop.f32.mrf.mxu0
    %v1547 = vadd.f32 %v1381, %v1546
    %v1548 = vpop.f32.mrf.mxu0
    %v1549 = vadd.f32 %v1383, %v1548
    %v1550 = vpop.f32.mrf.mxu0
    %v1551 = vadd.f32 %v1385, %v1550
    %1552 = vdwg.mxu0
    %1553 = vmatprep.subr.bf16.mxu0 0
    %1554 = vmatpush1.bf16.msra.mxu0 0
    %1555 = vmatprep.subr.bf16.mxu0 0
    %1556 = vmatpush1.bf16.msra.mxu0 0
    %1557 = vmatprep.subr.bf16.mxu0 0
    %1558 = vmatpush1.bf16.msra.mxu0 0
    %1559 = vmatprep.subr.bf16.mxu0 0
    %1560 = vmatpush1.bf16.msra.mxu0 0
    %1561 = vmatprep.subr.bf16.mxu0 %v1493
    %1562 = vmatpush1.bf16.msra.mxu0 %v1492
    %1563 = vmatprep.subr.bf16.mxu0 %v1489
    %1564 = vmatpush1.bf16.msra.mxu0 %v1488
    %1565 = vmatprep.subr.bf16.mxu0 %v1485
    %1566 = vmatpush1.bf16.msra.mxu0 %v1484
    %1567 = vmatprep.subr.bf16.mxu0 %v1481
    %1568 = vmatpush1.bf16.msra.mxu0 %v1480
    %1569 = vmatprep.subr.bf16.mxu0 0
    %1570 = vmatpush2.bf16.msra.mxu0 0
    %1571 = vmatprep.subr.bf16.mxu0 0
    %1572 = vmatpush2.bf16.msra.mxu0 0
    %1573 = vmatprep.subr.bf16.mxu0 0
    %1574 = vmatpush2.bf16.msra.mxu0 0
    %1575 = vmatprep.subr.bf16.mxu0 0
    %1576 = vmatpush2.bf16.msra.mxu0 0
    %1577 = vmatprep.subr.bf16.mxu0 0
    %1578 = vmatpush2.bf16.msra.mxu0 0
    %1579 = vmatprep.subr.bf16.mxu0 0
    %1580 = vmatpush2.bf16.msra.mxu0 0
    %1581 = vmatprep.subr.bf16.mxu0 0
    %1582 = vmatpush2.bf16.msra.mxu0 0
    %1583 = vmatprep.subr.bf16.mxu0 0
    %1584 = vmatpush2.bf16.msra.mxu0 0
    %1585 = vmatprep.mubr.bf16.mxu0 0
    %1586 = vmatmul.mubr.bf16.gmra.mxu0 %v309
    %v1587 = vpop.f32.mrf.mxu0
    %v1588 = vadd.f32 %v1422, %v1587
    %v1589 = vpop.f32.mrf.mxu0
    %v1590 = vadd.f32 %v1424, %v1589
    %v1591 = vpop.f32.mrf.mxu0
    %v1592 = vadd.f32 %v1426, %v1591
    %v1593 = vpop.f32.mrf.mxu0
    %v1594 = vadd.f32 %v1428, %v1593
    %1595 = vdwg.mxu0
    %v1596 = vld [vmem:[%s16] sm:$0xf]
    %v1598 = vlaneseq
    %v1599 = vshrl.u32 %v1598, 7
    %v1600 = vsub.s32 0, %v1599
    %v1601 = vrot.slane %v1596, %v1600
    %v1602 = vlaneseq
    %v1603 = vshrl.u32 %v1602, 7
    %v1604 = vsub.s32 1, %v1603
    %v1605 = vrot.slane %v1596, %v1604
    %v1606 = vlaneseq
    %v1607 = vshrl.u32 %v1606, 7
    %v1608 = vsub.s32 2, %v1607
    %v1609 = vrot.slane %v1596, %v1608
    %v1610 = vlaneseq
    %v1611 = vshrl.u32 %v1610, 7
    %v1612 = vsub.s32 3, %v1611
    %v1613 = vrot.slane %v1596, %v1612
    %v1618 = vadd.f32 %v1545, %v1601
    %v1619 = vadd.f32 %v1547, %v1605
    %v1620 = vadd.f32 %v1588, %v1609
    %v1621 = vadd.f32 %v1590, %v1613
    %v1622 = vadd.f32 %v1549, %v1601
    %v1623 = vadd.f32 %v1551, %v1605
    %v1624 = vadd.f32 %v1592, %v1609
    %v1625 = vadd.f32 %v1594, %v1613
    %v1626 = vmax.f32 %v1618, 0.0
    %v1627 = vmax.f32 %v1619, 0.0
    %v1628 = vmax.f32 %v1620, 0.0
    %v1629 = vmax.f32 %v1621, 0.0
    %v1630 = vmax.f32 %v1622, 0.0
    %v1631 = vmax.f32 %v1623, 0.0
    %v1632 = vmax.f32 %v1624, 0.0
    %v1633 = vmax.f32 %v1625, 0.0
    %v1634 = vpack.c.bf16 %v1630, %v1626
    %v1635 = vpack.c.bf16 %v1631, %v1627
    %v1636 = vpack.c.bf16 %v1632, %v1628
    %v1637 = vpack.c.bf16 %v1633, %v1629
    %v1638 = vld [vmem:[#allocation19] sm:$0xff]
    %v1639 = vld [vmem:[#allocation19 + $0x8] sm:$0xff]
    %v1640 = vld [vmem:[#allocation19 + $0x10] sm:$0xff]
    %v1641 = vld [vmem:[#allocation19 + $0x18] sm:$0xff]
    %v1642 = vld [vmem:[#allocation19 + $0x20] sm:$0xff]
    %v1643 = vld [vmem:[#allocation19 + $0x28] sm:$0xff]
    %v1644 = vld [vmem:[#allocation19 + $0x30] sm:$0xff]
    %v1645 = vld [vmem:[#allocation19 + $0x38] sm:$0xff]
    %v1646 = vld [vmem:[#allocation19 + $0x40] sm:$0xff]
    %v1647 = vld [vmem:[#allocation19 + $0x48] sm:$0xff]
    %v1648 = vld [vmem:[#allocation19 + $0x50] sm:$0xff]
    %v1649 = vld [vmem:[#allocation19 + $0x58] sm:$0xff]
    %v1650 = vld [vmem:[#allocation19 + $0x60] sm:$0xff]
    %v1651 = vld [vmem:[#allocation19 + $0x68] sm:$0xff]
    %v1652 = vld [vmem:[#allocation19 + $0x70] sm:$0xff]
    %v1653 = vld [vmem:[#allocation19 + $0x78] sm:$0xff]
    %v1654 = vld [vmem:[#allocation19 + $0x80] sm:$0xff]
    %v1655 = vld [vmem:[#allocation19 + $0x88] sm:$0xff]
    %v1656 = vld [vmem:[#allocation19 + $0x90] sm:$0xff]
    %v1657 = vld [vmem:[#allocation19 + $0x98] sm:$0xff]
    %v1658 = vld [vmem:[#allocation19 + $0xa0] sm:$0xff]
    %v1659 = vld [vmem:[#allocation19 + $0xa8] sm:$0xff]
    %v1660 = vld [vmem:[#allocation19 + $0xb0] sm:$0xff]
    %v1661 = vld [vmem:[#allocation19 + $0xb8] sm:$0xff]
    %v1662 = vld [vmem:[#allocation19 + $0xc0] sm:$0xff]
    %v1663 = vld [vmem:[#allocation19 + $0xc8] sm:$0xff]
    %v1664 = vld [vmem:[#allocation19 + $0xd0] sm:$0xff]
    %v1665 = vld [vmem:[#allocation19 + $0xd8] sm:$0xff]
    %v1666 = vld [vmem:[#allocation19 + $0xe0] sm:$0xff]
    %v1667 = vld [vmem:[#allocation19 + $0xe8] sm:$0xff]
    %v1668 = vld [vmem:[#allocation19 + $0xf0] sm:$0xff]
    %v1669 = vld [vmem:[#allocation19 + $0xf8] sm:$0xff]
    %v1670 = vld [vmem:[#allocation19 + $0x100] sm:$0xff]
    %v1671 = vld [vmem:[#allocation19 + $0x108] sm:$0xff]
    %v1672 = vld [vmem:[#allocation19 + $0x110] sm:$0xff]
    %v1673 = vld [vmem:[#allocation19 + $0x118] sm:$0xff]
    %v1674 = vld [vmem:[#allocation19 + $0x120] sm:$0xff]
    %v1675 = vld [vmem:[#allocation19 + $0x128] sm:$0xff]
    %v1676 = vld [vmem:[#allocation19 + $0x130] sm:$0xff]
    %v1677 = vld [vmem:[#allocation19 + $0x138] sm:$0xff]
    %v1678 = vld [vmem:[#allocation19 + $0x140] sm:$0xff]
    %v1679 = vld [vmem:[#allocation19 + $0x148] sm:$0xff]
    %v1680 = vld [vmem:[#allocation19 + $0x150] sm:$0xff]
    %v1681 = vld [vmem:[#allocation19 + $0x158] sm:$0xff]
    %v1682 = vld [vmem:[#allocation19 + $0x160] sm:$0xff]
    %v1683 = vld [vmem:[#allocation19 + $0x168] sm:$0xff]
    %v1684 = vld [vmem:[#allocation19 + $0x170] sm:$0xff]
    %v1685 = vld [vmem:[#allocation19 + $0x178] sm:$0xff]
    %v1686 = vld [vmem:[#allocation19 + $0x180] sm:$0xff]
    %v1687 = vld [vmem:[#allocation19 + $0x188] sm:$0xff]
    %v1688 = vld [vmem:[#allocation19 + $0x190] sm:$0xff]
    %v1689 = vld [vmem:[#allocation19 + $0x198] sm:$0xff]
    %v1690 = vld [vmem:[#allocation19 + $0x1a0] sm:$0xff]
    %v1691 = vld [vmem:[#allocation19 + $0x1a8] sm:$0xff]
    %v1692 = vld [vmem:[#allocation19 + $0x1b0] sm:$0xff]
    %v1693 = vld [vmem:[#allocation19 + $0x1b8] sm:$0xff]
    %v1694 = vld [vmem:[#allocation19 + $0x1c0] sm:$0xff]
    %v1695 = vld [vmem:[#allocation19 + $0x1c8] sm:$0xff]
    %v1696 = vld [vmem:[#allocation19 + $0x1d0] sm:$0xff]
    %v1697 = vld [vmem:[#allocation19 + $0x1d8] sm:$0xff]
    %v1698 = vld [vmem:[#allocation19 + $0x1e0] sm:$0xff]
    %v1699 = vld [vmem:[#allocation19 + $0x1e8] sm:$0xff]
    %v1700 = vld [vmem:[#allocation19 + $0x1f0] sm:$0xff]
    %v1701 = vld [vmem:[#allocation19 + $0x1f8] sm:$0xff]
    %v1702 = vld [vmem:[#allocation19 + $0x200] sm:$0xff]
    %v1703 = vld [vmem:[#allocation19 + $0x208] sm:$0xff]
    %v1704 = vld [vmem:[#allocation19 + $0x210] sm:$0xff]
    %v1705 = vld [vmem:[#allocation19 + $0x218] sm:$0xff]
    %v1706 = vld [vmem:[#allocation19 + $0x220] sm:$0xff]
    %v1707 = vld [vmem:[#allocation19 + $0x228] sm:$0xff]
    %v1708 = vld [vmem:[#allocation19 + $0x230] sm:$0xff]
    %v1709 = vld [vmem:[#allocation19 + $0x238] sm:$0xff]
    %v1710 = vld [vmem:[#allocation19 + $0x240] sm:$0xff]
    %v1711 = vld [vmem:[#allocation19 + $0x248] sm:$0xff]
    %v1712 = vld [vmem:[#allocation19 + $0x250] sm:$0xff]
    %v1713 = vld [vmem:[#allocation19 + $0x258] sm:$0xff]
    %v1714 = vld [vmem:[#allocation19 + $0x260] sm:$0xff]
    %v1715 = vld [vmem:[#allocation19 + $0x268] sm:$0xff]
    %v1716 = vld [vmem:[#allocation19 + $0x270] sm:$0xff]
    %v1717 = vld [vmem:[#allocation19 + $0x278] sm:$0xff]
    %v1718 = vld [vmem:[#allocation19 + $0x280] sm:$0xff]
    %v1719 = vld [vmem:[#allocation19 + $0x288] sm:$0xff]
    %v1720 = vld [vmem:[#allocation19 + $0x290] sm:$0xff]
    %v1721 = vld [vmem:[#allocation19 + $0x298] sm:$0xff]
    %v1722 = vld [vmem:[#allocation19 + $0x2a0] sm:$0xff]
    %v1723 = vld [vmem:[#allocation19 + $0x2a8] sm:$0xff]
    %v1724 = vld [vmem:[#allocation19 + $0x2b0] sm:$0xff]
    %v1725 = vld [vmem:[#allocation19 + $0x2b8] sm:$0xff]
    %v1726 = vld [vmem:[#allocation19 + $0x2c0] sm:$0xff]
    %v1727 = vld [vmem:[#allocation19 + $0x2c8] sm:$0xff]
    %v1728 = vld [vmem:[#allocation19 + $0x2d0] sm:$0xff]
    %v1729 = vld [vmem:[#allocation19 + $0x2d8] sm:$0xff]
    %v1730 = vld [vmem:[#allocation19 + $0x2e0] sm:$0xff]
    %v1731 = vld [vmem:[#allocation19 + $0x2e8] sm:$0xff]
    %v1732 = vld [vmem:[#allocation19 + $0x2f0] sm:$0xff]
    %v1733 = vld [vmem:[#allocation19 + $0x2f8] sm:$0xff]
    %v1734 = vld [vmem:[#allocation19 + $0x300] sm:$0xff]
    %v1735 = vld [vmem:[#allocation19 + $0x308] sm:$0xff]
    %v1736 = vld [vmem:[#allocation19 + $0x310] sm:$0xff]
    %v1737 = vld [vmem:[#allocation19 + $0x318] sm:$0xff]
    %v1738 = vld [vmem:[#allocation19 + $0x320] sm:$0xff]
    %v1739 = vld [vmem:[#allocation19 + $0x328] sm:$0xff]
    %v1740 = vld [vmem:[#allocation19 + $0x330] sm:$0xff]
    %v1741 = vld [vmem:[#allocation19 + $0x338] sm:$0xff]
    %v1742 = vld [vmem:[#allocation19 + $0x340] sm:$0xff]
    %v1743 = vld [vmem:[#allocation19 + $0x348] sm:$0xff]
    %v1744 = vld [vmem:[#allocation19 + $0x350] sm:$0xff]
    %v1745 = vld [vmem:[#allocation19 + $0x358] sm:$0xff]
    %v1746 = vld [vmem:[#allocation19 + $0x360] sm:$0xff]
    %v1747 = vld [vmem:[#allocation19 + $0x368] sm:$0xff]
    %v1748 = vld [vmem:[#allocation19 + $0x370] sm:$0xff]
    %v1749 = vld [vmem:[#allocation19 + $0x378] sm:$0xff]
    %v1750 = vld [vmem:[#allocation19 + $0x380] sm:$0xff]
    %v1751 = vld [vmem:[#allocation19 + $0x388] sm:$0xff]
    %v1752 = vld [vmem:[#allocation19 + $0x390] sm:$0xff]
    %v1753 = vld [vmem:[#allocation19 + $0x398] sm:$0xff]
    %v1754 = vld [vmem:[#allocation19 + $0x3a0] sm:$0xff]
    %v1755 = vld [vmem:[#allocation19 + $0x3a8] sm:$0xff]
    %v1756 = vld [vmem:[#allocation19 + $0x3b0] sm:$0xff]
    %v1757 = vld [vmem:[#allocation19 + $0x3b8] sm:$0xff]
    %v1758 = vld [vmem:[#allocation19 + $0x3c0] sm:$0xff]
    %v1759 = vld [vmem:[#allocation19 + $0x3c8] sm:$0xff]
    %v1760 = vld [vmem:[#allocation19 + $0x3d0] sm:$0xff]
    %v1761 = vld [vmem:[#allocation19 + $0x3d8] sm:$0xff]
    %v1762 = vld [vmem:[#allocation19 + $0x3e0] sm:$0xff]
    %v1763 = vld [vmem:[#allocation19 + $0x3e8] sm:$0xff]
    %v1764 = vld [vmem:[#allocation19 + $0x3f0] sm:$0xff]
    %v1765 = vld [vmem:[#allocation19 + $0x3f8] sm:$0xff]
    %v1766 = vld [vmem:[%s18] sm:$0xf]
    %v1768 = vlaneseq
    %v1769 = vshrl.u32 %v1768, 7
    %v1770 = vsub.s32 0, %v1769
    %v1771 = vrot.slane %v1766, %v1770
    %v1772 = vlaneseq
    %v1773 = vshrl.u32 %v1772, 7
    %v1774 = vsub.s32 1, %v1773
    %v1775 = vrot.slane %v1766, %v1774
    %v1776 = vlaneseq
    %v1777 = vshrl.u32 %v1776, 7
    %v1778 = vsub.s32 2, %v1777
    %v1779 = vrot.slane %v1766, %v1778
    %v1780 = vlaneseq
    %v1781 = vshrl.u32 %v1780, 7
    %v1782 = vsub.s32 3, %v1781
    %v1783 = vrot.slane %v1766, %v1782
    %v1916 = vunpack.c.l.b16 %v1638
    %v1917 = vunpack.c.h.b16 %v1638
    %v1918 = vunpack.c.l.b16 %v1639
    %v1919 = vunpack.c.h.b16 %v1639
    %v1920 = vunpack.c.l.b16 %v1640
    %v1921 = vunpack.c.h.b16 %v1640
    %v1922 = vunpack.c.l.b16 %v1641
    %v1923 = vunpack.c.h.b16 %v1641
    %v1924 = vunpack.c.l.b16 %v1642
    %v1925 = vunpack.c.h.b16 %v1642
    %v1926 = vunpack.c.l.b16 %v1643
    %v1927 = vunpack.c.h.b16 %v1643
    %v1928 = vunpack.c.l.b16 %v1644
    %v1929 = vunpack.c.h.b16 %v1644
    %v1930 = vunpack.c.l.b16 %v1645
    %v1931 = vunpack.c.h.b16 %v1645
    %v1932 = vunpack.c.l.b16 %v1646
    %v1933 = vunpack.c.h.b16 %v1646
    %v1934 = vunpack.c.l.b16 %v1647
    %v1935 = vunpack.c.h.b16 %v1647
    %v1936 = vunpack.c.l.b16 %v1648
    %v1937 = vunpack.c.h.b16 %v1648
    %v1938 = vunpack.c.l.b16 %v1649
    %v1939 = vunpack.c.h.b16 %v1649
    %v1940 = vunpack.c.l.b16 %v1650
    %v1941 = vunpack.c.h.b16 %v1650
    %v1942 = vunpack.c.l.b16 %v1651
    %v1943 = vunpack.c.h.b16 %v1651
    %v1944 = vunpack.c.l.b16 %v1652
    %v1945 = vunpack.c.h.b16 %v1652
    %v1946 = vunpack.c.l.b16 %v1653
    %v1947 = vunpack.c.h.b16 %v1653
    %v1948 = vunpack.c.l.b16 %v1654
    %v1949 = vunpack.c.h.b16 %v1654
    %v1950 = vunpack.c.l.b16 %v1655
    %v1951 = vunpack.c.h.b16 %v1655
    %v1952 = vunpack.c.l.b16 %v1656
    %v1953 = vunpack.c.h.b16 %v1656
    %v1954 = vunpack.c.l.b16 %v1657
    %v1955 = vunpack.c.h.b16 %v1657
    %v1956 = vunpack.c.l.b16 %v1658
    %v1957 = vunpack.c.h.b16 %v1658
    %v1958 = vunpack.c.l.b16 %v1659
    %v1959 = vunpack.c.h.b16 %v1659
    %v1960 = vunpack.c.l.b16 %v1660
    %v1961 = vunpack.c.h.b16 %v1660
    %v1962 = vunpack.c.l.b16 %v1661
    %v1963 = vunpack.c.h.b16 %v1661
    %v1964 = vunpack.c.l.b16 %v1662
    %v1965 = vunpack.c.h.b16 %v1662
    %v1966 = vunpack.c.l.b16 %v1663
    %v1967 = vunpack.c.h.b16 %v1663
    %v1968 = vunpack.c.l.b16 %v1664
    %v1969 = vunpack.c.h.b16 %v1664
    %v1970 = vunpack.c.l.b16 %v1665
    %v1971 = vunpack.c.h.b16 %v1665
    %v1972 = vunpack.c.l.b16 %v1666
    %v1973 = vunpack.c.h.b16 %v1666
    %v1974 = vunpack.c.l.b16 %v1667
    %v1975 = vunpack.c.h.b16 %v1667
    %v1976 = vunpack.c.l.b16 %v1668
    %v1977 = vunpack.c.h.b16 %v1668
    %v1978 = vunpack.c.l.b16 %v1669
    %v1979 = vunpack.c.h.b16 %v1669
    %v1980 = vunpack.c.l.b16 %v1670
    %v1981 = vunpack.c.h.b16 %v1670
    %v1982 = vunpack.c.l.b16 %v1671
    %v1983 = vunpack.c.h.b16 %v1671
    %v1984 = vunpack.c.l.b16 %v1672
    %v1985 = vunpack.c.h.b16 %v1672
    %v1986 = vunpack.c.l.b16 %v1673
    %v1987 = vunpack.c.h.b16 %v1673
    %v1988 = vunpack.c.l.b16 %v1674
    %v1989 = vunpack.c.h.b16 %v1674
    %v1990 = vunpack.c.l.b16 %v1675
    %v1991 = vunpack.c.h.b16 %v1675
    %v1992 = vunpack.c.l.b16 %v1676
    %v1993 = vunpack.c.h.b16 %v1676
    %v1994 = vunpack.c.l.b16 %v1677
    %v1995 = vunpack.c.h.b16 %v1677
    %v1996 = vunpack.c.l.b16 %v1678
    %v1997 = vunpack.c.h.b16 %v1678
    %v1998 = vunpack.c.l.b16 %v1679
    %v1999 = vunpack.c.h.b16 %v1679
    %v2000 = vunpack.c.l.b16 %v1680
    %v2001 = vunpack.c.h.b16 %v1680
    %v2002 = vunpack.c.l.b16 %v1681
    %v2003 = vunpack.c.h.b16 %v1681
    %v2004 = vunpack.c.l.b16 %v1682
    %v2005 = vunpack.c.h.b16 %v1682
    %v2006 = vunpack.c.l.b16 %v1683
    %v2007 = vunpack.c.h.b16 %v1683
    %v2008 = vunpack.c.l.b16 %v1684
    %v2009 = vunpack.c.h.b16 %v1684
    %v2010 = vunpack.c.l.b16 %v1685
    %v2011 = vunpack.c.h.b16 %v1685
    %v2012 = vunpack.c.l.b16 %v1686
    %v2013 = vunpack.c.h.b16 %v1686
    %v2014 = vunpack.c.l.b16 %v1687
    %v2015 = vunpack.c.h.b16 %v1687
    %v2016 = vunpack.c.l.b16 %v1688
    %v2017 = vunpack.c.h.b16 %v1688
    %v2018 = vunpack.c.l.b16 %v1689
    %v2019 = vunpack.c.h.b16 %v1689
    %v2020 = vunpack.c.l.b16 %v1690
    %v2021 = vunpack.c.h.b16 %v1690
    %v2022 = vunpack.c.l.b16 %v1691
    %v2023 = vunpack.c.h.b16 %v1691
    %v2024 = vunpack.c.l.b16 %v1692
    %v2025 = vunpack.c.h.b16 %v1692
    %v2026 = vunpack.c.l.b16 %v1693
    %v2027 = vunpack.c.h.b16 %v1693
    %v2028 = vunpack.c.l.b16 %v1694
    %v2029 = vunpack.c.h.b16 %v1694
    %v2030 = vunpack.c.l.b16 %v1695
    %v2031 = vunpack.c.h.b16 %v1695
    %v2032 = vunpack.c.l.b16 %v1696
    %v2033 = vunpack.c.h.b16 %v1696
    %v2034 = vunpack.c.l.b16 %v1697
    %v2035 = vunpack.c.h.b16 %v1697
    %v2036 = vunpack.c.l.b16 %v1698
    %v2037 = vunpack.c.h.b16 %v1698
    %v2038 = vunpack.c.l.b16 %v1699
    %v2039 = vunpack.c.h.b16 %v1699
    %v2040 = vunpack.c.l.b16 %v1700
    %v2041 = vunpack.c.h.b16 %v1700
    %v2042 = vunpack.c.l.b16 %v1701
    %v2043 = vunpack.c.h.b16 %v1701
    %v2044 = vunpack.c.l.b16 %v1702
    %v2045 = vunpack.c.h.b16 %v1702
    %v2046 = vunpack.c.l.b16 %v1703
    %v2047 = vunpack.c.h.b16 %v1703
    %v2048 = vunpack.c.l.b16 %v1704
    %v2049 = vunpack.c.h.b16 %v1704
    %v2050 = vunpack.c.l.b16 %v1705
    %v2051 = vunpack.c.h.b16 %v1705
    %v2052 = vunpack.c.l.b16 %v1706
    %v2053 = vunpack.c.h.b16 %v1706
    %v2054 = vunpack.c.l.b16 %v1707
    %v2055 = vunpack.c.h.b16 %v1707
    %v2056 = vunpack.c.l.b16 %v1708
    %v2057 = vunpack.c.h.b16 %v1708
    %v2058 = vunpack.c.l.b16 %v1709
    %v2059 = vunpack.c.h.b16 %v1709
    %v2060 = vunpack.c.l.b16 %v1710
    %v2061 = vunpack.c.h.b16 %v1710
    %v2062 = vunpack.c.l.b16 %v1711
    %v2063 = vunpack.c.h.b16 %v1711
    %v2064 = vunpack.c.l.b16 %v1712
    %v2065 = vunpack.c.h.b16 %v1712
    %v2066 = vunpack.c.l.b16 %v1713
    %v2067 = vunpack.c.h.b16 %v1713
    %v2068 = vunpack.c.l.b16 %v1714
    %v2069 = vunpack.c.h.b16 %v1714
    %v2070 = vunpack.c.l.b16 %v1715
    %v2071 = vunpack.c.h.b16 %v1715
    %v2072 = vunpack.c.l.b16 %v1716
    %v2073 = vunpack.c.h.b16 %v1716
    %v2074 = vunpack.c.l.b16 %v1717
    %v2075 = vunpack.c.h.b16 %v1717
    %v2076 = vunpack.c.l.b16 %v1718
    %v2077 = vunpack.c.h.b16 %v1718
    %v2078 = vunpack.c.l.b16 %v1719
    %v2079 = vunpack.c.h.b16 %v1719
    %v2080 = vunpack.c.l.b16 %v1720
    %v2081 = vunpack.c.h.b16 %v1720
    %v2082 = vunpack.c.l.b16 %v1721
    %v2083 = vunpack.c.h.b16 %v1721
    %v2084 = vunpack.c.l.b16 %v1722
    %v2085 = vunpack.c.h.b16 %v1722
    %v2086 = vunpack.c.l.b16 %v1723
    %v2087 = vunpack.c.h.b16 %v1723
    %v2088 = vunpack.c.l.b16 %v1724
    %v2089 = vunpack.c.h.b16 %v1724
    %v2090 = vunpack.c.l.b16 %v1725
    %v2091 = vunpack.c.h.b16 %v1725
    %v2092 = vunpack.c.l.b16 %v1726
    %v2093 = vunpack.c.h.b16 %v1726
    %v2094 = vunpack.c.l.b16 %v1727
    %v2095 = vunpack.c.h.b16 %v1727
    %v2096 = vunpack.c.l.b16 %v1728
    %v2097 = vunpack.c.h.b16 %v1728
    %v2098 = vunpack.c.l.b16 %v1729
    %v2099 = vunpack.c.h.b16 %v1729
    %v2100 = vunpack.c.l.b16 %v1730
    %v2101 = vunpack.c.h.b16 %v1730
    %v2102 = vunpack.c.l.b16 %v1731
    %v2103 = vunpack.c.h.b16 %v1731
    %v2104 = vunpack.c.l.b16 %v1732
    %v2105 = vunpack.c.h.b16 %v1732
    %v2106 = vunpack.c.l.b16 %v1733
    %v2107 = vunpack.c.h.b16 %v1733
    %v2108 = vunpack.c.l.b16 %v1734
    %v2109 = vunpack.c.h.b16 %v1734
    %v2110 = vunpack.c.l.b16 %v1735
    %v2111 = vunpack.c.h.b16 %v1735
    %v2112 = vunpack.c.l.b16 %v1736
    %v2113 = vunpack.c.h.b16 %v1736
    %v2114 = vunpack.c.l.b16 %v1737
    %v2115 = vunpack.c.h.b16 %v1737
    %v2116 = vunpack.c.l.b16 %v1738
    %v2117 = vunpack.c.h.b16 %v1738
    %v2118 = vunpack.c.l.b16 %v1739
    %v2119 = vunpack.c.h.b16 %v1739
    %v2120 = vunpack.c.l.b16 %v1740
    %v2121 = vunpack.c.h.b16 %v1740
    %v2122 = vunpack.c.l.b16 %v1741
    %v2123 = vunpack.c.h.b16 %v1741
    %v2124 = vunpack.c.l.b16 %v1742
    %v2125 = vunpack.c.h.b16 %v1742
    %v2126 = vunpack.c.l.b16 %v1743
    %v2127 = vunpack.c.h.b16 %v1743
    %v2128 = vunpack.c.l.b16 %v1744
    %v2129 = vunpack.c.h.b16 %v1744
    %v2130 = vunpack.c.l.b16 %v1745
    %v2131 = vunpack.c.h.b16 %v1745
    %v2132 = vunpack.c.l.b16 %v1746
    %v2133 = vunpack.c.h.b16 %v1746
    %v2134 = vunpack.c.l.b16 %v1747
    %v2135 = vunpack.c.h.b16 %v1747
    %v2136 = vunpack.c.l.b16 %v1748
    %v2137 = vunpack.c.h.b16 %v1748
    %v2138 = vunpack.c.l.b16 %v1749
    %v2139 = vunpack.c.h.b16 %v1749
    %v2140 = vunpack.c.l.b16 %v1750
    %v2141 = vunpack.c.h.b16 %v1750
    %v2142 = vunpack.c.l.b16 %v1751
    %v2143 = vunpack.c.h.b16 %v1751
    %v2144 = vunpack.c.l.b16 %v1752
    %v2145 = vunpack.c.h.b16 %v1752
    %v2146 = vunpack.c.l.b16 %v1753
    %v2147 = vunpack.c.h.b16 %v1753
    %v2148 = vunpack.c.l.b16 %v1754
    %v2149 = vunpack.c.h.b16 %v1754
    %v2150 = vunpack.c.l.b16 %v1755
    %v2151 = vunpack.c.h.b16 %v1755
    %v2152 = vunpack.c.l.b16 %v1756
    %v2153 = vunpack.c.h.b16 %v1756
    %v2154 = vunpack.c.l.b16 %v1757
    %v2155 = vunpack.c.h.b16 %v1757
    %v2156 = vunpack.c.l.b16 %v1758
    %v2157 = vunpack.c.h.b16 %v1758
    %v2158 = vunpack.c.l.b16 %v1759
    %v2159 = vunpack.c.h.b16 %v1759
    %v2160 = vunpack.c.l.b16 %v1760
    %v2161 = vunpack.c.h.b16 %v1760
    %v2162 = vunpack.c.l.b16 %v1761
    %v2163 = vunpack.c.h.b16 %v1761
    %v2164 = vunpack.c.l.b16 %v1762
    %v2165 = vunpack.c.h.b16 %v1762
    %v2166 = vunpack.c.l.b16 %v1763
    %v2167 = vunpack.c.h.b16 %v1763
    %v2168 = vunpack.c.l.b16 %v1764
    %v2169 = vunpack.c.h.b16 %v1764
    %v2170 = vunpack.c.l.b16 %v1765
    %v2171 = vunpack.c.h.b16 %v1765
    %v2172 = vpack.c.b16 %v1920, %v1916
    %v2173 = vpack.c.b16 %v1921, %v1917
    %v2174 = vpack.c.b16 %v1922, %v1918
    %v2175 = vpack.c.b16 %v1923, %v1919
    %v2176 = vpack.c.b16 %v1928, %v1924
    %v2177 = vpack.c.b16 %v1929, %v1925
    %v2178 = vpack.c.b16 %v1930, %v1926
    %v2179 = vpack.c.b16 %v1931, %v1927
    %v2180 = vpack.c.b16 %v1936, %v1932
    %v2181 = vpack.c.b16 %v1937, %v1933
    %v2182 = vpack.c.b16 %v1938, %v1934
    %v2183 = vpack.c.b16 %v1939, %v1935
    %v2184 = vpack.c.b16 %v1944, %v1940
    %v2185 = vpack.c.b16 %v1945, %v1941
    %v2186 = vpack.c.b16 %v1946, %v1942
    %v2187 = vpack.c.b16 %v1947, %v1943
    %v2188 = vpack.c.b16 %v1952, %v1948
    %v2189 = vpack.c.b16 %v1953, %v1949
    %v2190 = vpack.c.b16 %v1954, %v1950
    %v2191 = vpack.c.b16 %v1955, %v1951
    %v2192 = vpack.c.b16 %v1960, %v1956
    %v2193 = vpack.c.b16 %v1961, %v1957
    %v2194 = vpack.c.b16 %v1962, %v1958
    %v2195 = vpack.c.b16 %v1963, %v1959
    %v2196 = vpack.c.b16 %v1968, %v1964
    %v2197 = vpack.c.b16 %v1969, %v1965
    %v2198 = vpack.c.b16 %v1970, %v1966
    %v2199 = vpack.c.b16 %v1971, %v1967
    %v2200 = vpack.c.b16 %v1976, %v1972
    %v2201 = vpack.c.b16 %v1977, %v1973
    %v2202 = vpack.c.b16 %v1978, %v1974
    %v2203 = vpack.c.b16 %v1979, %v1975
    %v2204 = vpack.c.b16 %v1984, %v1980
    %v2205 = vpack.c.b16 %v1985, %v1981
    %v2206 = vpack.c.b16 %v1986, %v1982
    %v2207 = vpack.c.b16 %v1987, %v1983
    %v2208 = vpack.c.b16 %v1992, %v1988
    %v2209 = vpack.c.b16 %v1993, %v1989
    %v2210 = vpack.c.b16 %v1994, %v1990
    %v2211 = vpack.c.b16 %v1995, %v1991
    %v2212 = vpack.c.b16 %v2000, %v1996
    %v2213 = vpack.c.b16 %v2001, %v1997
    %v2214 = vpack.c.b16 %v2002, %v1998
    %v2215 = vpack.c.b16 %v2003, %v1999
    %v2216 = vpack.c.b16 %v2008, %v2004
    %v2217 = vpack.c.b16 %v2009, %v2005
    %v2218 = vpack.c.b16 %v2010, %v2006
    %v2219 = vpack.c.b16 %v2011, %v2007
    %v2220 = vpack.c.b16 %v2016, %v2012
    %v2221 = vpack.c.b16 %v2017, %v2013
    %v2222 = vpack.c.b16 %v2018, %v2014
    %v2223 = vpack.c.b16 %v2019, %v2015
    %v2224 = vpack.c.b16 %v2024, %v2020
    %v2225 = vpack.c.b16 %v2025, %v2021
    %v2226 = vpack.c.b16 %v2026, %v2022
    %v2227 = vpack.c.b16 %v2027, %v2023
    %v2228 = vpack.c.b16 %v2032, %v2028
    %v2229 = vpack.c.b16 %v2033, %v2029
    %v2230 = vpack.c.b16 %v2034, %v2030
    %v2231 = vpack.c.b16 %v2035, %v2031
    %v2232 = vpack.c.b16 %v2040, %v2036
    %v2233 = vpack.c.b16 %v2041, %v2037
    %v2234 = vpack.c.b16 %v2042, %v2038
    %v2235 = vpack.c.b16 %v2043, %v2039
    %v2236 = vpack.c.b16 %v2048, %v2044
    %v2237 = vpack.c.b16 %v2049, %v2045
    %v2238 = vpack.c.b16 %v2050, %v2046
    %v2239 = vpack.c.b16 %v2051, %v2047
    %v2240 = vpack.c.b16 %v2056, %v2052
    %v2241 = vpack.c.b16 %v2057, %v2053
    %v2242 = vpack.c.b16 %v2058, %v2054
    %v2243 = vpack.c.b16 %v2059, %v2055
    %v2244 = vpack.c.b16 %v2064, %v2060
    %v2245 = vpack.c.b16 %v2065, %v2061
    %v2246 = vpack.c.b16 %v2066, %v2062
    %v2247 = vpack.c.b16 %v2067, %v2063
    %v2248 = vpack.c.b16 %v2072, %v2068
    %v2249 = vpack.c.b16 %v2073, %v2069
    %v2250 = vpack.c.b16 %v2074, %v2070
    %v2251 = vpack.c.b16 %v2075, %v2071
    %v2252 = vpack.c.b16 %v2080, %v2076
    %v2253 = vpack.c.b16 %v2081, %v2077
    %v2254 = vpack.c.b16 %v2082, %v2078
    %v2255 = vpack.c.b16 %v2083, %v2079
    %v2256 = vpack.c.b16 %v2088, %v2084
    %v2257 = vpack.c.b16 %v2089, %v2085
    %v2258 = vpack.c.b16 %v2090, %v2086
    %v2259 = vpack.c.b16 %v2091, %v2087
    %v2260 = vpack.c.b16 %v2096, %v2092
    %v2261 = vpack.c.b16 %v2097, %v2093
    %v2262 = vpack.c.b16 %v2098, %v2094
    %v2263 = vpack.c.b16 %v2099, %v2095
    %v2264 = vpack.c.b16 %v2104, %v2100
    %v2265 = vpack.c.b16 %v2105, %v2101
    %v2266 = vpack.c.b16 %v2106, %v2102
    %v2267 = vpack.c.b16 %v2107, %v2103
    %v2268 = vpack.c.b16 %v2112, %v2108
    %v2269 = vpack.c.b16 %v2113, %v2109
    %v2270 = vpack.c.b16 %v2114, %v2110
    %v2271 = vpack.c.b16 %v2115, %v2111
    %v2272 = vpack.c.b16 %v2120, %v2116
    %v2273 = vpack.c.b16 %v2121, %v2117
    %v2274 = vpack.c.b16 %v2122, %v2118
    %v2275 = vpack.c.b16 %v2123, %v2119
    %v2276 = vpack.c.b16 %v2128, %v2124
    %v2277 = vpack.c.b16 %v2129, %v2125
    %v2278 = vpack.c.b16 %v2130, %v2126
    %v2279 = vpack.c.b16 %v2131, %v2127
    %v2280 = vpack.c.b16 %v2136, %v2132
    %v2281 = vpack.c.b16 %v2137, %v2133
    %v2282 = vpack.c.b16 %v2138, %v2134
    %v2283 = vpack.c.b16 %v2139, %v2135
    %v2284 = vpack.c.b16 %v2144, %v2140
    %v2285 = vpack.c.b16 %v2145, %v2141
    %v2286 = vpack.c.b16 %v2146, %v2142
    %v2287 = vpack.c.b16 %v2147, %v2143
    %v2288 = vpack.c.b16 %v2152, %v2148
    %v2289 = vpack.c.b16 %v2153, %v2149
    %v2290 = vpack.c.b16 %v2154, %v2150
    %v2291 = vpack.c.b16 %v2155, %v2151
    %v2292 = vpack.c.b16 %v2160, %v2156
    %v2293 = vpack.c.b16 %v2161, %v2157
    %v2294 = vpack.c.b16 %v2162, %v2158
    %v2295 = vpack.c.b16 %v2163, %v2159
    %v2296 = vpack.c.b16 %v2168, %v2164
    %v2297 = vpack.c.b16 %v2169, %v2165
    %v2298 = vpack.c.b16 %v2170, %v2166
    %v2299 = vpack.c.b16 %v2171, %v2167
    %2428 = vmatprep.subr.bf16.mxu0 %v2201
    %2429 = vmatpush1.bf16.msra.mxu0 %v2200
    %2430 = vmatprep.subr.bf16.mxu0 %v2197
    %2431 = vmatpush1.bf16.msra.mxu0 %v2196
    %2432 = vmatprep.subr.bf16.mxu0 %v2193
    %2433 = vmatpush1.bf16.msra.mxu0 %v2192
    %2434 = vmatprep.subr.bf16.mxu0 %v2189
    %2435 = vmatpush1.bf16.msra.mxu0 %v2188
    %2436 = vmatprep.subr.bf16.mxu0 %v2185
    %2437 = vmatpush1.bf16.msra.mxu0 %v2184
    %2438 = vmatprep.subr.bf16.mxu0 %v2181
    %2439 = vmatpush1.bf16.msra.mxu0 %v2180
    %2440 = vmatprep.subr.bf16.mxu0 %v2177
    %2441 = vmatpush1.bf16.msra.mxu0 %v2176
    %2442 = vmatprep.subr.bf16.mxu0 %v2173
    %2443 = vmatpush1.bf16.msra.mxu0 %v2172
    %2444 = vmatprep.subr.bf16.mxu0 %v2233
    %2445 = vmatpush2.bf16.msra.mxu0 %v2232
    %2446 = vmatprep.subr.bf16.mxu0 %v2229
    %2447 = vmatpush2.bf16.msra.mxu0 %v2228
    %2448 = vmatprep.subr.bf16.mxu0 %v2225
    %2449 = vmatpush2.bf16.msra.mxu0 %v2224
    %2450 = vmatprep.subr.bf16.mxu0 %v2221
    %2451 = vmatpush2.bf16.msra.mxu0 %v2220
    %2452 = vmatprep.subr.bf16.mxu0 %v2217
    %2453 = vmatpush2.bf16.msra.mxu0 %v2216
    %2454 = vmatprep.subr.bf16.mxu0 %v2213
    %2455 = vmatpush2.bf16.msra.mxu0 %v2212
    %2456 = vmatprep.subr.bf16.mxu0 %v2209
    %2457 = vmatpush2.bf16.msra.mxu0 %v2208
    %2458 = vmatprep.subr.bf16.mxu0 %v2205
    %2459 = vmatpush2.bf16.msra.mxu0 %v2204
    %2460 = vmatprep.mubr.bf16.mxu0 %v1635
    %2461 = vmatmul.mubr.bf16.gmra.mxu0 %v1634
    %v2462 = vpop.f32.mrf.mxu0
    %v2463 = vadd.f32 %v1771, %v2462
    %v2464 = vpop.f32.mrf.mxu0
    %v2465 = vadd.f32 %v1775, %v2464
    %v2466 = vpop.f32.mrf.mxu0
    %v2467 = vadd.f32 %v1771, %v2466
    %v2468 = vpop.f32.mrf.mxu0
    %v2469 = vadd.f32 %v1775, %v2468
    %2470 = vdwg.mxu0
    %2471 = vmatprep.subr.bf16.mxu0 %v2265
    %2472 = vmatpush1.bf16.msra.mxu0 %v2264
    %2473 = vmatprep.subr.bf16.mxu0 %v2261
    %2474 = vmatpush1.bf16.msra.mxu0 %v2260
    %2475 = vmatprep.subr.bf16.mxu0 %v2257
    %2476 = vmatpush1.bf16.msra.mxu0 %v2256
    %2477 = vmatprep.subr.bf16.mxu0 %v2253
    %2478 = vmatpush1.bf16.msra.mxu0 %v2252
    %2479 = vmatprep.subr.bf16.mxu0 %v2249
    %2480 = vmatpush1.bf16.msra.mxu0 %v2248
    %2481 = vmatprep.subr.bf16.mxu0 %v2245
    %2482 = vmatpush1.bf16.msra.mxu0 %v2244
    %2483 = vmatprep.subr.bf16.mxu0 %v2241
    %2484 = vmatpush1.bf16.msra.mxu0 %v2240
    %2485 = vmatprep.subr.bf16.mxu0 %v2237
    %2486 = vmatpush1.bf16.msra.mxu0 %v2236
    %2487 = vmatprep.subr.bf16.mxu0 %v2297
    %2488 = vmatpush2.bf16.msra.mxu0 %v2296
    %2489 = vmatprep.subr.bf16.mxu0 %v2293
    %2490 = vmatpush2.bf16.msra.mxu0 %v2292
    %2491 = vmatprep.subr.bf16.mxu0 %v2289
    %2492 = vmatpush2.bf16.msra.mxu0 %v2288
    %2493 = vmatprep.subr.bf16.mxu0 %v2285
    %2494 = vmatpush2.bf16.msra.mxu0 %v2284
    %2495 = vmatprep.subr.bf16.mxu0 %v2281
    %2496 = vmatpush2.bf16.msra.mxu0 %v2280
    %2497 = vmatprep.subr.bf16.mxu0 %v2277
    %2498 = vmatpush2.bf16.msra.mxu0 %v2276
    %2499 = vmatprep.subr.bf16.mxu0 %v2273
    %2500 = vmatpush2.bf16.msra.mxu0 %v2272
    %2501 = vmatprep.subr.bf16.mxu0 %v2269
    %2502 = vmatpush2.bf16.msra.mxu0 %v2268
    %2503 = vmatprep.mubr.bf16.mxu0 %v1637
    %2504 = vmatmul.mubr.bf16.gmra.mxu0 %v1636
    %v2505 = vpop.f32.mrf.mxu0
    %v2506 = vadd.f32 %v2463, %v2505
    %v2507 = vpop.f32.mrf.mxu0
    %v2508 = vadd.f32 %v2465, %v2507
    %v2509 = vpop.f32.mrf.mxu0
    %v2510 = vadd.f32 %v2467, %v2509
    %v2511 = vpop.f32.mrf.mxu0
    %v2512 = vadd.f32 %v2469, %v2511
    %2513 = vdwg.mxu0
    %2514 = vmatprep.subr.bf16.mxu0 %v2203
    %2515 = vmatpush1.bf16.msra.mxu0 %v2202
    %2516 = vmatprep.subr.bf16.mxu0 %v2199
    %2517 = vmatpush1.bf16.msra.mxu0 %v2198
    %2518 = vmatprep.subr.bf16.mxu0 %v2195
    %2519 = vmatpush1.bf16.msra.mxu0 %v2194
    %2520 = vmatprep.subr.bf16.mxu0 %v2191
    %2521 = vmatpush1.bf16.msra.mxu0 %v2190
    %2522 = vmatprep.subr.bf16.mxu0 %v2187
    %2523 = vmatpush1.bf16.msra.mxu0 %v2186
    %2524 = vmatprep.subr.bf16.mxu0 %v2183
    %2525 = vmatpush1.bf16.msra.mxu0 %v2182
    %2526 = vmatprep.subr.bf16.mxu0 %v2179
    %2527 = vmatpush1.bf16.msra.mxu0 %v2178
    %2528 = vmatprep.subr.bf16.mxu0 %v2175
    %2529 = vmatpush1.bf16.msra.mxu0 %v2174
    %2530 = vmatprep.subr.bf16.mxu0 %v2235
    %2531 = vmatpush2.bf16.msra.mxu0 %v2234
    %2532 = vmatprep.subr.bf16.mxu0 %v2231
    %2533 = vmatpush2.bf16.msra.mxu0 %v2230
    %2534 = vmatprep.subr.bf16.mxu0 %v2227
    %2535 = vmatpush2.bf16.msra.mxu0 %v2226
    %2536 = vmatprep.subr.bf16.mxu0 %v2223
    %2537 = vmatpush2.bf16.msra.mxu0 %v2222
    %2538 = vmatprep.subr.bf16.mxu0 %v2219
    %2539 = vmatpush2.bf16.msra.mxu0 %v2218
    %2540 = vmatprep.subr.bf16.mxu0 %v2215
    %2541 = vmatpush2.bf16.msra.mxu0 %v2214
    %2542 = vmatprep.subr.bf16.mxu0 %v2211
    %2543 = vmatpush2.bf16.msra.mxu0 %v2210
    %2544 = vmatprep.subr.bf16.mxu0 %v2207
    %2545 = vmatpush2.bf16.msra.mxu0 %v2206
    %2546 = vmatprep.mubr.bf16.mxu0 %v1635
    %2547 = vmatmul.mubr.bf16.gmra.mxu0 %v1634
    %v2548 = vpop.f32.mrf.mxu0
    %v2549 = vadd.f32 %v1779, %v2548
    %v2550 = vpop.f32.mrf.mxu0
    %v2551 = vadd.f32 %v1783, %v2550
    %v2552 = vpop.f32.mrf.mxu0
    %v2553 = vadd.f32 %v1779, %v2552
    %v2554 = vpop.f32.mrf.mxu0
    %v2555 = vadd.f32 %v1783, %v2554
    %2556 = vdwg.mxu0
    %2557 = vmatprep.subr.bf16.mxu0 %v2267
    %2558 = vmatpush1.bf16.msra.mxu0 %v2266
    %2559 = vmatprep.subr.bf16.mxu0 %v2263
    %2560 = vmatpush1.bf16.msra.mxu0 %v2262
    %2561 = vmatprep.subr.bf16.mxu0 %v2259
    %2562 = vmatpush1.bf16.msra.mxu0 %v2258
    %2563 = vmatprep.subr.bf16.mxu0 %v2255
    %2564 = vmatpush1.bf16.msra.mxu0 %v2254
    %2565 = vmatprep.subr.bf16.mxu0 %v2251
    %2566 = vmatpush1.bf16.msra.mxu0 %v2250
    %2567 = vmatprep.subr.bf16.mxu0 %v2247
    %2568 = vmatpush1.bf16.msra.mxu0 %v2246
    %2569 = vmatprep.subr.bf16.mxu0 %v2243
    %2570 = vmatpush1.bf16.msra.mxu0 %v2242
    %2571 = vmatprep.subr.bf16.mxu0 %v2239
    %2572 = vmatpush1.bf16.msra.mxu0 %v2238
    %2573 = vmatprep.subr.bf16.mxu0 %v2299
    %2574 = vmatpush2.bf16.msra.mxu0 %v2298
    %2575 = vmatprep.subr.bf16.mxu0 %v2295
    %2576 = vmatpush2.bf16.msra.mxu0 %v2294
    %2577 = vmatprep.subr.bf16.mxu0 %v2291
    %2578 = vmatpush2.bf16.msra.mxu0 %v2290
    %2579 = vmatprep.subr.bf16.mxu0 %v2287
    %2580 = vmatpush2.bf16.msra.mxu0 %v2286
    %2581 = vmatprep.subr.bf16.mxu0 %v2283
    %2582 = vmatpush2.bf16.msra.mxu0 %v2282
    %2583 = vmatprep.subr.bf16.mxu0 %v2279
    %2584 = vmatpush2.bf16.msra.mxu0 %v2278
    %2585 = vmatprep.subr.bf16.mxu0 %v2275
    %2586 = vmatpush2.bf16.msra.mxu0 %v2274
    %2587 = vmatprep.subr.bf16.mxu0 %v2271
    %2588 = vmatpush2.bf16.msra.mxu0 %v2270
    %2589 = vmatprep.mubr.bf16.mxu0 %v1637
    %2590 = vmatmul.mubr.bf16.gmra.mxu0 %v1636
    %v2591 = vpop.f32.mrf.mxu0
    %v2592 = vadd.f32 %v2549, %v2591
    %v2593 = vpop.f32.mrf.mxu0
    %v2594 = vadd.f32 %v2551, %v2593
    %v2595 = vpop.f32.mrf.mxu0
    %v2596 = vadd.f32 %v2553, %v2595
    %v2597 = vpop.f32.mrf.mxu0
    %v2598 = vadd.f32 %v2555, %v2597
    %2599 = vdwg.mxu0
    %v2600 = vmax.f32 %v2506, 0.0
    %v2601 = vmax.f32 %v2508, 0.0
    %v2602 = vmax.f32 %v2592, 0.0
    %v2603 = vmax.f32 %v2594, 0.0
    %v2604 = vmax.f32 %v2510, 0.0
    %v2605 = vmax.f32 %v2512, 0.0
    %v2606 = vmax.f32 %v2596, 0.0
    %v2607 = vmax.f32 %v2598, 0.0
    %v2608 = vpack.c.bf16 %v2604, %v2600
    %v2609 = vpack.c.bf16 %v2605, %v2601
    %v2610 = vpack.c.bf16 %v2606, %v2602
    %v2611 = vpack.c.bf16 %v2607, %v2603
    %v2612 = vld [vmem:[#allocation20] sm:$0xff]
    %v2613 = vld [vmem:[#allocation20 + $0x8] sm:$0xff]
    %v2614 = vld [vmem:[#allocation20 + $0x10] sm:$0xff]
    %v2615 = vld [vmem:[#allocation20 + $0x18] sm:$0xff]
    %v2616 = vld [vmem:[#allocation20 + $0x20] sm:$0xff]
    %v2617 = vld [vmem:[#allocation20 + $0x28] sm:$0xff]
    %v2618 = vld [vmem:[#allocation20 + $0x30] sm:$0xff]
    %v2619 = vld [vmem:[#allocation20 + $0x38] sm:$0xff]
    %v2620 = vld [vmem:[#allocation20 + $0x40] sm:$0xff]
    %v2621 = vld [vmem:[#allocation20 + $0x48] sm:$0xff]
    %v2622 = vld [vmem:[#allocation20 + $0x50] sm:$0xff]
    %v2623 = vld [vmem:[#allocation20 + $0x58] sm:$0xff]
    %v2624 = vld [vmem:[#allocation20 + $0x60] sm:$0xff]
    %v2625 = vld [vmem:[#allocation20 + $0x68] sm:$0xff]
    %v2626 = vld [vmem:[#allocation20 + $0x70] sm:$0xff]
    %v2627 = vld [vmem:[#allocation20 + $0x78] sm:$0xff]
    %v2628 = vld [vmem:[#allocation20 + $0x80] sm:$0xff]
    %v2629 = vld [vmem:[#allocation20 + $0x88] sm:$0xff]
    %v2630 = vld [vmem:[#allocation20 + $0x90] sm:$0xff]
    %v2631 = vld [vmem:[#allocation20 + $0x98] sm:$0xff]
    %v2632 = vld [vmem:[#allocation20 + $0xa0] sm:$0xff]
    %v2633 = vld [vmem:[#allocation20 + $0xa8] sm:$0xff]
    %v2634 = vld [vmem:[#allocation20 + $0xb0] sm:$0xff]
    %v2635 = vld [vmem:[#allocation20 + $0xb8] sm:$0xff]
    %v2636 = vld [vmem:[#allocation20 + $0xc0] sm:$0xff]
    %v2637 = vld [vmem:[#allocation20 + $0xc8] sm:$0xff]
    %v2638 = vld [vmem:[#allocation20 + $0xd0] sm:$0xff]
    %v2639 = vld [vmem:[#allocation20 + $0xd8] sm:$0xff]
    %v2640 = vld [vmem:[#allocation20 + $0xe0] sm:$0xff]
    %v2641 = vld [vmem:[#allocation20 + $0xe8] sm:$0xff]
    %v2642 = vld [vmem:[#allocation20 + $0xf0] sm:$0xff]
    %v2643 = vld [vmem:[#allocation20 + $0xf8] sm:$0xff]
    %v2644 = vld [vmem:[#allocation20 + $0x100] sm:$0xff]
    %v2645 = vld [vmem:[#allocation20 + $0x108] sm:$0xff]
    %v2646 = vld [vmem:[#allocation20 + $0x110] sm:$0xff]
    %v2647 = vld [vmem:[#allocation20 + $0x118] sm:$0xff]
    %v2648 = vld [vmem:[#allocation20 + $0x120] sm:$0xff]
    %v2649 = vld [vmem:[#allocation20 + $0x128] sm:$0xff]
    %v2650 = vld [vmem:[#allocation20 + $0x130] sm:$0xff]
    %v2651 = vld [vmem:[#allocation20 + $0x138] sm:$0xff]
    %v2652 = vld [vmem:[#allocation20 + $0x140] sm:$0xff]
    %v2653 = vld [vmem:[#allocation20 + $0x148] sm:$0xff]
    %v2654 = vld [vmem:[#allocation20 + $0x150] sm:$0xff]
    %v2655 = vld [vmem:[#allocation20 + $0x158] sm:$0xff]
    %v2656 = vld [vmem:[#allocation20 + $0x160] sm:$0xff]
    %v2657 = vld [vmem:[#allocation20 + $0x168] sm:$0xff]
    %v2658 = vld [vmem:[#allocation20 + $0x170] sm:$0xff]
    %v2659 = vld [vmem:[#allocation20 + $0x178] sm:$0xff]
    %v2660 = vld [vmem:[#allocation20 + $0x180] sm:$0xff]
    %v2661 = vld [vmem:[#allocation20 + $0x188] sm:$0xff]
    %v2662 = vld [vmem:[#allocation20 + $0x190] sm:$0xff]
    %v2663 = vld [vmem:[#allocation20 + $0x198] sm:$0xff]
    %v2664 = vld [vmem:[#allocation20 + $0x1a0] sm:$0xff]
    %v2665 = vld [vmem:[#allocation20 + $0x1a8] sm:$0xff]
    %v2666 = vld [vmem:[#allocation20 + $0x1b0] sm:$0xff]
    %v2667 = vld [vmem:[#allocation20 + $0x1b8] sm:$0xff]
    %v2668 = vld [vmem:[#allocation20 + $0x1c0] sm:$0xff]
    %v2669 = vld [vmem:[#allocation20 + $0x1c8] sm:$0xff]
    %v2670 = vld [vmem:[#allocation20 + $0x1d0] sm:$0xff]
    %v2671 = vld [vmem:[#allocation20 + $0x1d8] sm:$0xff]
    %v2672 = vld [vmem:[#allocation20 + $0x1e0] sm:$0xff]
    %v2673 = vld [vmem:[#allocation20 + $0x1e8] sm:$0xff]
    %v2674 = vld [vmem:[#allocation20 + $0x1f0] sm:$0xff]
    %v2675 = vld [vmem:[#allocation20 + $0x1f8] sm:$0xff]
    %v2676 = vld [vmem:[#allocation20 + $0x200] sm:$0xff]
    %v2677 = vld [vmem:[#allocation20 + $0x208] sm:$0xff]
    %v2678 = vld [vmem:[#allocation20 + $0x210] sm:$0xff]
    %v2679 = vld [vmem:[#allocation20 + $0x218] sm:$0xff]
    %v2680 = vld [vmem:[#allocation20 + $0x220] sm:$0xff]
    %v2681 = vld [vmem:[#allocation20 + $0x228] sm:$0xff]
    %v2682 = vld [vmem:[#allocation20 + $0x230] sm:$0xff]
    %v2683 = vld [vmem:[#allocation20 + $0x238] sm:$0xff]
    %v2684 = vld [vmem:[#allocation20 + $0x240] sm:$0xff]
    %v2685 = vld [vmem:[#allocation20 + $0x248] sm:$0xff]
    %v2686 = vld [vmem:[#allocation20 + $0x250] sm:$0xff]
    %v2687 = vld [vmem:[#allocation20 + $0x258] sm:$0xff]
    %v2688 = vld [vmem:[#allocation20 + $0x260] sm:$0xff]
    %v2689 = vld [vmem:[#allocation20 + $0x268] sm:$0xff]
    %v2690 = vld [vmem:[#allocation20 + $0x270] sm:$0xff]
    %v2691 = vld [vmem:[#allocation20 + $0x278] sm:$0xff]
    %v2692 = vld [vmem:[#allocation20 + $0x280] sm:$0xff]
    %v2693 = vld [vmem:[#allocation20 + $0x288] sm:$0xff]
    %v2694 = vld [vmem:[#allocation20 + $0x290] sm:$0xff]
    %v2695 = vld [vmem:[#allocation20 + $0x298] sm:$0xff]
    %v2696 = vld [vmem:[#allocation20 + $0x2a0] sm:$0xff]
    %v2697 = vld [vmem:[#allocation20 + $0x2a8] sm:$0xff]
    %v2698 = vld [vmem:[#allocation20 + $0x2b0] sm:$0xff]
    %v2699 = vld [vmem:[#allocation20 + $0x2b8] sm:$0xff]
    %v2700 = vld [vmem:[#allocation20 + $0x2c0] sm:$0xff]
    %v2701 = vld [vmem:[#allocation20 + $0x2c8] sm:$0xff]
    %v2702 = vld [vmem:[#allocation20 + $0x2d0] sm:$0xff]
    %v2703 = vld [vmem:[#allocation20 + $0x2d8] sm:$0xff]
    %v2704 = vld [vmem:[#allocation20 + $0x2e0] sm:$0xff]
    %v2705 = vld [vmem:[#allocation20 + $0x2e8] sm:$0xff]
    %v2706 = vld [vmem:[#allocation20 + $0x2f0] sm:$0xff]
    %v2707 = vld [vmem:[#allocation20 + $0x2f8] sm:$0xff]
    %v2708 = vld [vmem:[#allocation20 + $0x300] sm:$0xff]
    %v2709 = vld [vmem:[#allocation20 + $0x308] sm:$0xff]
    %v2710 = vld [vmem:[#allocation20 + $0x310] sm:$0xff]
    %v2711 = vld [vmem:[#allocation20 + $0x318] sm:$0xff]
    %v2712 = vld [vmem:[#allocation20 + $0x320] sm:$0xff]
    %v2713 = vld [vmem:[#allocation20 + $0x328] sm:$0xff]
    %v2714 = vld [vmem:[#allocation20 + $0x330] sm:$0xff]
    %v2715 = vld [vmem:[#allocation20 + $0x338] sm:$0xff]
    %v2716 = vld [vmem:[#allocation20 + $0x340] sm:$0xff]
    %v2717 = vld [vmem:[#allocation20 + $0x348] sm:$0xff]
    %v2718 = vld [vmem:[#allocation20 + $0x350] sm:$0xff]
    %v2719 = vld [vmem:[#allocation20 + $0x358] sm:$0xff]
    %v2720 = vld [vmem:[#allocation20 + $0x360] sm:$0xff]
    %v2721 = vld [vmem:[#allocation20 + $0x368] sm:$0xff]
    %v2722 = vld [vmem:[#allocation20 + $0x370] sm:$0xff]
    %v2723 = vld [vmem:[#allocation20 + $0x378] sm:$0xff]
    %v2724 = vld [vmem:[#allocation20 + $0x380] sm:$0xff]
    %v2725 = vld [vmem:[#allocation20 + $0x388] sm:$0xff]
    %v2726 = vld [vmem:[#allocation20 + $0x390] sm:$0xff]
    %v2727 = vld [vmem:[#allocation20 + $0x398] sm:$0xff]
    %v2728 = vld [vmem:[#allocation20 + $0x3a0] sm:$0xff]
    %v2729 = vld [vmem:[#allocation20 + $0x3a8] sm:$0xff]
    %v2730 = vld [vmem:[#allocation20 + $0x3b0] sm:$0xff]
    %v2731 = vld [vmem:[#allocation20 + $0x3b8] sm:$0xff]
    %v2732 = vld [vmem:[#allocation20 + $0x3c0] sm:$0xff]
    %v2733 = vld [vmem:[#allocation20 + $0x3c8] sm:$0xff]
    %v2734 = vld [vmem:[#allocation20 + $0x3d0] sm:$0xff]
    %v2735 = vld [vmem:[#allocation20 + $0x3d8] sm:$0xff]
    %v2736 = vld [vmem:[#allocation20 + $0x3e0] sm:$0xff]
    %v2737 = vld [vmem:[#allocation20 + $0x3e8] sm:$0xff]
    %v2738 = vld [vmem:[#allocation20 + $0x3f0] sm:$0xff]
    %v2739 = vld [vmem:[#allocation20 + $0x3f8] sm:$0xff]
    %v2740 = vld [vmem:[%s20] sm:$0xf]
    %v2742 = vlaneseq
    %v2743 = vshrl.u32 %v2742, 7
    %v2744 = vsub.s32 0, %v2743
    %v2745 = vrot.slane %v2740, %v2744
    %v2746 = vlaneseq
    %v2747 = vshrl.u32 %v2746, 7
    %v2748 = vsub.s32 1, %v2747
    %v2749 = vrot.slane %v2740, %v2748
    %v2750 = vlaneseq
    %v2751 = vshrl.u32 %v2750, 7
    %v2752 = vsub.s32 2, %v2751
    %v2753 = vrot.slane %v2740, %v2752
    %v2754 = vlaneseq
    %v2755 = vshrl.u32 %v2754, 7
    %v2756 = vsub.s32 3, %v2755
    %v2757 = vrot.slane %v2740, %v2756
    %v2890 = vunpack.c.l.b16 %v2612
    %v2891 = vunpack.c.h.b16 %v2612
    %v2892 = vunpack.c.l.b16 %v2613
    %v2893 = vunpack.c.h.b16 %v2613
    %v2894 = vunpack.c.l.b16 %v2614
    %v2895 = vunpack.c.h.b16 %v2614
    %v2896 = vunpack.c.l.b16 %v2615
    %v2897 = vunpack.c.h.b16 %v2615
    %v2898 = vunpack.c.l.b16 %v2616
    %v2899 = vunpack.c.h.b16 %v2616
    %v2900 = vunpack.c.l.b16 %v2617
    %v2901 = vunpack.c.h.b16 %v2617
    %v2902 = vunpack.c.l.b16 %v2618
    %v2903 = vunpack.c.h.b16 %v2618
    %v2904 = vunpack.c.l.b16 %v2619
    %v2905 = vunpack.c.h.b16 %v2619
    %v2906 = vunpack.c.l.b16 %v2620
    %v2907 = vunpack.c.h.b16 %v2620
    %v2908 = vunpack.c.l.b16 %v2621
    %v2909 = vunpack.c.h.b16 %v2621
    %v2910 = vunpack.c.l.b16 %v2622
    %v2911 = vunpack.c.h.b16 %v2622
    %v2912 = vunpack.c.l.b16 %v2623
    %v2913 = vunpack.c.h.b16 %v2623
    %v2914 = vunpack.c.l.b16 %v2624
    %v2915 = vunpack.c.h.b16 %v2624
    %v2916 = vunpack.c.l.b16 %v2625
    %v2917 = vunpack.c.h.b16 %v2625
    %v2918 = vunpack.c.l.b16 %v2626
    %v2919 = vunpack.c.h.b16 %v2626
    %v2920 = vunpack.c.l.b16 %v2627
    %v2921 = vunpack.c.h.b16 %v2627
    %v2922 = vunpack.c.l.b16 %v2628
    %v2923 = vunpack.c.h.b16 %v2628
    %v2924 = vunpack.c.l.b16 %v2629
    %v2925 = vunpack.c.h.b16 %v2629
    %v2926 = vunpack.c.l.b16 %v2630
    %v2927 = vunpack.c.h.b16 %v2630
    %v2928 = vunpack.c.l.b16 %v2631
    %v2929 = vunpack.c.h.b16 %v2631
    %v2930 = vunpack.c.l.b16 %v2632
    %v2931 = vunpack.c.h.b16 %v2632
    %v2932 = vunpack.c.l.b16 %v2633
    %v2933 = vunpack.c.h.b16 %v2633
    %v2934 = vunpack.c.l.b16 %v2634
    %v2935 = vunpack.c.h.b16 %v2634
    %v2936 = vunpack.c.l.b16 %v2635
    %v2937 = vunpack.c.h.b16 %v2635
    %v2938 = vunpack.c.l.b16 %v2636
    %v2939 = vunpack.c.h.b16 %v2636
    %v2940 = vunpack.c.l.b16 %v2637
    %v2941 = vunpack.c.h.b16 %v2637
    %v2942 = vunpack.c.l.b16 %v2638
    %v2943 = vunpack.c.h.b16 %v2638
    %v2944 = vunpack.c.l.b16 %v2639
    %v2945 = vunpack.c.h.b16 %v2639
    %v2946 = vunpack.c.l.b16 %v2640
    %v2947 = vunpack.c.h.b16 %v2640
    %v2948 = vunpack.c.l.b16 %v2641
    %v2949 = vunpack.c.h.b16 %v2641
    %v2950 = vunpack.c.l.b16 %v2642
    %v2951 = vunpack.c.h.b16 %v2642
    %v2952 = vunpack.c.l.b16 %v2643
    %v2953 = vunpack.c.h.b16 %v2643
    %v2954 = vunpack.c.l.b16 %v2644
    %v2955 = vunpack.c.h.b16 %v2644
    %v2956 = vunpack.c.l.b16 %v2645
    %v2957 = vunpack.c.h.b16 %v2645
    %v2958 = vunpack.c.l.b16 %v2646
    %v2959 = vunpack.c.h.b16 %v2646
    %v2960 = vunpack.c.l.b16 %v2647
    %v2961 = vunpack.c.h.b16 %v2647
    %v2962 = vunpack.c.l.b16 %v2648
    %v2963 = vunpack.c.h.b16 %v2648
    %v2964 = vunpack.c.l.b16 %v2649
    %v2965 = vunpack.c.h.b16 %v2649
    %v2966 = vunpack.c.l.b16 %v2650
    %v2967 = vunpack.c.h.b16 %v2650
    %v2968 = vunpack.c.l.b16 %v2651
    %v2969 = vunpack.c.h.b16 %v2651
    %v2970 = vunpack.c.l.b16 %v2652
    %v2971 = vunpack.c.h.b16 %v2652
    %v2972 = vunpack.c.l.b16 %v2653
    %v2973 = vunpack.c.h.b16 %v2653
    %v2974 = vunpack.c.l.b16 %v2654
    %v2975 = vunpack.c.h.b16 %v2654
    %v2976 = vunpack.c.l.b16 %v2655
    %v2977 = vunpack.c.h.b16 %v2655
    %v2978 = vunpack.c.l.b16 %v2656
    %v2979 = vunpack.c.h.b16 %v2656
    %v2980 = vunpack.c.l.b16 %v2657
    %v2981 = vunpack.c.h.b16 %v2657
    %v2982 = vunpack.c.l.b16 %v2658
    %v2983 = vunpack.c.h.b16 %v2658
    %v2984 = vunpack.c.l.b16 %v2659
    %v2985 = vunpack.c.h.b16 %v2659
    %v2986 = vunpack.c.l.b16 %v2660
    %v2987 = vunpack.c.h.b16 %v2660
    %v2988 = vunpack.c.l.b16 %v2661
    %v2989 = vunpack.c.h.b16 %v2661
    %v2990 = vunpack.c.l.b16 %v2662
    %v2991 = vunpack.c.h.b16 %v2662
    %v2992 = vunpack.c.l.b16 %v2663
    %v2993 = vunpack.c.h.b16 %v2663
    %v2994 = vunpack.c.l.b16 %v2664
    %v2995 = vunpack.c.h.b16 %v2664
    %v2996 = vunpack.c.l.b16 %v2665
    %v2997 = vunpack.c.h.b16 %v2665
    %v2998 = vunpack.c.l.b16 %v2666
    %v2999 = vunpack.c.h.b16 %v2666
    %v3000 = vunpack.c.l.b16 %v2667
    %v3001 = vunpack.c.h.b16 %v2667
    %v3002 = vunpack.c.l.b16 %v2668
    %v3003 = vunpack.c.h.b16 %v2668
    %v3004 = vunpack.c.l.b16 %v2669
    %v3005 = vunpack.c.h.b16 %v2669
    %v3006 = vunpack.c.l.b16 %v2670
    %v3007 = vunpack.c.h.b16 %v2670
    %v3008 = vunpack.c.l.b16 %v2671
    %v3009 = vunpack.c.h.b16 %v2671
    %v3010 = vunpack.c.l.b16 %v2672
    %v3011 = vunpack.c.h.b16 %v2672
    %v3012 = vunpack.c.l.b16 %v2673
    %v3013 = vunpack.c.h.b16 %v2673
    %v3014 = vunpack.c.l.b16 %v2674
    %v3015 = vunpack.c.h.b16 %v2674
    %v3016 = vunpack.c.l.b16 %v2675
    %v3017 = vunpack.c.h.b16 %v2675
    %v3018 = vunpack.c.l.b16 %v2676
    %v3019 = vunpack.c.h.b16 %v2676
    %v3020 = vunpack.c.l.b16 %v2677
    %v3021 = vunpack.c.h.b16 %v2677
    %v3022 = vunpack.c.l.b16 %v2678
    %v3023 = vunpack.c.h.b16 %v2678
    %v3024 = vunpack.c.l.b16 %v2679
    %v3025 = vunpack.c.h.b16 %v2679
    %v3026 = vunpack.c.l.b16 %v2680
    %v3027 = vunpack.c.h.b16 %v2680
    %v3028 = vunpack.c.l.b16 %v2681
    %v3029 = vunpack.c.h.b16 %v2681
    %v3030 = vunpack.c.l.b16 %v2682
    %v3031 = vunpack.c.h.b16 %v2682
    %v3032 = vunpack.c.l.b16 %v2683
    %v3033 = vunpack.c.h.b16 %v2683
    %v3034 = vunpack.c.l.b16 %v2684
    %v3035 = vunpack.c.h.b16 %v2684
    %v3036 = vunpack.c.l.b16 %v2685
    %v3037 = vunpack.c.h.b16 %v2685
    %v3038 = vunpack.c.l.b16 %v2686
    %v3039 = vunpack.c.h.b16 %v2686
    %v3040 = vunpack.c.l.b16 %v2687
    %v3041 = vunpack.c.h.b16 %v2687
    %v3042 = vunpack.c.l.b16 %v2688
    %v3043 = vunpack.c.h.b16 %v2688
    %v3044 = vunpack.c.l.b16 %v2689
    %v3045 = vunpack.c.h.b16 %v2689
    %v3046 = vunpack.c.l.b16 %v2690
    %v3047 = vunpack.c.h.b16 %v2690
    %v3048 = vunpack.c.l.b16 %v2691
    %v3049 = vunpack.c.h.b16 %v2691
    %v3050 = vunpack.c.l.b16 %v2692
    %v3051 = vunpack.c.h.b16 %v2692
    %v3052 = vunpack.c.l.b16 %v2693
    %v3053 = vunpack.c.h.b16 %v2693
    %v3054 = vunpack.c.l.b16 %v2694
    %v3055 = vunpack.c.h.b16 %v2694
    %v3056 = vunpack.c.l.b16 %v2695
    %v3057 = vunpack.c.h.b16 %v2695
    %v3058 = vunpack.c.l.b16 %v2696
    %v3059 = vunpack.c.h.b16 %v2696
    %v3060 = vunpack.c.l.b16 %v2697
    %v3061 = vunpack.c.h.b16 %v2697
    %v3062 = vunpack.c.l.b16 %v2698
    %v3063 = vunpack.c.h.b16 %v2698
    %v3064 = vunpack.c.l.b16 %v2699
    %v3065 = vunpack.c.h.b16 %v2699
    %v3066 = vunpack.c.l.b16 %v2700
    %v3067 = vunpack.c.h.b16 %v2700
    %v3068 = vunpack.c.l.b16 %v2701
    %v3069 = vunpack.c.h.b16 %v2701
    %v3070 = vunpack.c.l.b16 %v2702
    %v3071 = vunpack.c.h.b16 %v2702
    %v3072 = vunpack.c.l.b16 %v2703
    %v3073 = vunpack.c.h.b16 %v2703
    %v3074 = vunpack.c.l.b16 %v2704
    %v3075 = vunpack.c.h.b16 %v2704
    %v3076 = vunpack.c.l.b16 %v2705
    %v3077 = vunpack.c.h.b16 %v2705
    %v3078 = vunpack.c.l.b16 %v2706
    %v3079 = vunpack.c.h.b16 %v2706
    %v3080 = vunpack.c.l.b16 %v2707
    %v3081 = vunpack.c.h.b16 %v2707
    %v3082 = vunpack.c.l.b16 %v2708
    %v3083 = vunpack.c.h.b16 %v2708
    %v3084 = vunpack.c.l.b16 %v2709
    %v3085 = vunpack.c.h.b16 %v2709
    %v3086 = vunpack.c.l.b16 %v2710
    %v3087 = vunpack.c.h.b16 %v2710
    %v3088 = vunpack.c.l.b16 %v2711
    %v3089 = vunpack.c.h.b16 %v2711
    %v3090 = vunpack.c.l.b16 %v2712
    %v3091 = vunpack.c.h.b16 %v2712
    %v3092 = vunpack.c.l.b16 %v2713
    %v3093 = vunpack.c.h.b16 %v2713
    %v3094 = vunpack.c.l.b16 %v2714
    %v3095 = vunpack.c.h.b16 %v2714
    %v3096 = vunpack.c.l.b16 %v2715
    %v3097 = vunpack.c.h.b16 %v2715
    %v3098 = vunpack.c.l.b16 %v2716
    %v3099 = vunpack.c.h.b16 %v2716
    %v3100 = vunpack.c.l.b16 %v2717
    %v3101 = vunpack.c.h.b16 %v2717
    %v3102 = vunpack.c.l.b16 %v2718
    %v3103 = vunpack.c.h.b16 %v2718
    %v3104 = vunpack.c.l.b16 %v2719
    %v3105 = vunpack.c.h.b16 %v2719
    %v3106 = vunpack.c.l.b16 %v2720
    %v3107 = vunpack.c.h.b16 %v2720
    %v3108 = vunpack.c.l.b16 %v2721
    %v3109 = vunpack.c.h.b16 %v2721
    %v3110 = vunpack.c.l.b16 %v2722
    %v3111 = vunpack.c.h.b16 %v2722
    %v3112 = vunpack.c.l.b16 %v2723
    %v3113 = vunpack.c.h.b16 %v2723
    %v3114 = vunpack.c.l.b16 %v2724
    %v3115 = vunpack.c.h.b16 %v2724
    %v3116 = vunpack.c.l.b16 %v2725
    %v3117 = vunpack.c.h.b16 %v2725
    %v3118 = vunpack.c.l.b16 %v2726
    %v3119 = vunpack.c.h.b16 %v2726
    %v3120 = vunpack.c.l.b16 %v2727
    %v3121 = vunpack.c.h.b16 %v2727
    %v3122 = vunpack.c.l.b16 %v2728
    %v3123 = vunpack.c.h.b16 %v2728
    %v3124 = vunpack.c.l.b16 %v2729
    %v3125 = vunpack.c.h.b16 %v2729
    %v3126 = vunpack.c.l.b16 %v2730
    %v3127 = vunpack.c.h.b16 %v2730
    %v3128 = vunpack.c.l.b16 %v2731
    %v3129 = vunpack.c.h.b16 %v2731
    %v3130 = vunpack.c.l.b16 %v2732
    %v3131 = vunpack.c.h.b16 %v2732
    %v3132 = vunpack.c.l.b16 %v2733
    %v3133 = vunpack.c.h.b16 %v2733
    %v3134 = vunpack.c.l.b16 %v2734
    %v3135 = vunpack.c.h.b16 %v2734
    %v3136 = vunpack.c.l.b16 %v2735
    %v3137 = vunpack.c.h.b16 %v2735
    %v3138 = vunpack.c.l.b16 %v2736
    %v3139 = vunpack.c.h.b16 %v2736
    %v3140 = vunpack.c.l.b16 %v2737
    %v3141 = vunpack.c.h.b16 %v2737
    %v3142 = vunpack.c.l.b16 %v2738
    %v3143 = vunpack.c.h.b16 %v2738
    %v3144 = vunpack.c.l.b16 %v2739
    %v3145 = vunpack.c.h.b16 %v2739
    %v3146 = vpack.c.b16 %v2894, %v2890
    %v3147 = vpack.c.b16 %v2895, %v2891
    %v3148 = vpack.c.b16 %v2896, %v2892
    %v3149 = vpack.c.b16 %v2897, %v2893
    %v3150 = vpack.c.b16 %v2902, %v2898
    %v3151 = vpack.c.b16 %v2903, %v2899
    %v3152 = vpack.c.b16 %v2904, %v2900
    %v3153 = vpack.c.b16 %v2905, %v2901
    %v3154 = vpack.c.b16 %v2910, %v2906
    %v3155 = vpack.c.b16 %v2911, %v2907
    %v3156 = vpack.c.b16 %v2912, %v2908
    %v3157 = vpack.c.b16 %v2913, %v2909
    %v3158 = vpack.c.b16 %v2918, %v2914
    %v3159 = vpack.c.b16 %v2919, %v2915
    %v3160 = vpack.c.b16 %v2920, %v2916
    %v3161 = vpack.c.b16 %v2921, %v2917
    %v3162 = vpack.c.b16 %v2926, %v2922
    %v3163 = vpack.c.b16 %v2927, %v2923
    %v3164 = vpack.c.b16 %v2928, %v2924
    %v3165 = vpack.c.b16 %v2929, %v2925
    %v3166 = vpack.c.b16 %v2934, %v2930
    %v3167 = vpack.c.b16 %v2935, %v2931
    %v3168 = vpack.c.b16 %v2936, %v2932
    %v3169 = vpack.c.b16 %v2937, %v2933
    %v3170 = vpack.c.b16 %v2942, %v2938
    %v3171 = vpack.c.b16 %v2943, %v2939
    %v3172 = vpack.c.b16 %v2944, %v2940
    %v3173 = vpack.c.b16 %v2945, %v2941
    %v3174 = vpack.c.b16 %v2950, %v2946
    %v3175 = vpack.c.b16 %v2951, %v2947
    %v3176 = vpack.c.b16 %v2952, %v2948
    %v3177 = vpack.c.b16 %v2953, %v2949
    %v3178 = vpack.c.b16 %v2958, %v2954
    %v3179 = vpack.c.b16 %v2959, %v2955
    %v3180 = vpack.c.b16 %v2960, %v2956
    %v3181 = vpack.c.b16 %v2961, %v2957
    %v3182 = vpack.c.b16 %v2966, %v2962
    %v3183 = vpack.c.b16 %v2967, %v2963
    %v3184 = vpack.c.b16 %v2968, %v2964
    %v3185 = vpack.c.b16 %v2969, %v2965
    %v3186 = vpack.c.b16 %v2974, %v2970
    %v3187 = vpack.c.b16 %v2975, %v2971
    %v3188 = vpack.c.b16 %v2976, %v2972
    %v3189 = vpack.c.b16 %v2977, %v2973
    %v3190 = vpack.c.b16 %v2982, %v2978
    %v3191 = vpack.c.b16 %v2983, %v2979
    %v3192 = vpack.c.b16 %v2984, %v2980
    %v3193 = vpack.c.b16 %v2985, %v2981
    %v3194 = vpack.c.b16 %v2990, %v2986
    %v3195 = vpack.c.b16 %v2991, %v2987
    %v3196 = vpack.c.b16 %v2992, %v2988
    %v3197 = vpack.c.b16 %v2993, %v2989
    %v3198 = vpack.c.b16 %v2998, %v2994
    %v3199 = vpack.c.b16 %v2999, %v2995
    %v3200 = vpack.c.b16 %v3000, %v2996
    %v3201 = vpack.c.b16 %v3001, %v2997
    %v3202 = vpack.c.b16 %v3006, %v3002
    %v3203 = vpack.c.b16 %v3007, %v3003
    %v3204 = vpack.c.b16 %v3008, %v3004
    %v3205 = vpack.c.b16 %v3009, %v3005
    %v3206 = vpack.c.b16 %v3014, %v3010
    %v3207 = vpack.c.b16 %v3015, %v3011
    %v3208 = vpack.c.b16 %v3016, %v3012
    %v3209 = vpack.c.b16 %v3017, %v3013
    %v3210 = vpack.c.b16 %v3022, %v3018
    %v3211 = vpack.c.b16 %v3023, %v3019
    %v3212 = vpack.c.b16 %v3024, %v3020
    %v3213 = vpack.c.b16 %v3025, %v3021
    %v3214 = vpack.c.b16 %v3030, %v3026
    %v3215 = vpack.c.b16 %v3031, %v3027
    %v3216 = vpack.c.b16 %v3032, %v3028
    %v3217 = vpack.c.b16 %v3033, %v3029
    %v3218 = vpack.c.b16 %v3038, %v3034
    %v3219 = vpack.c.b16 %v3039, %v3035
    %v3220 = vpack.c.b16 %v3040, %v3036
    %v3221 = vpack.c.b16 %v3041, %v3037
    %v3222 = vpack.c.b16 %v3046, %v3042
    %v3223 = vpack.c.b16 %v3047, %v3043
    %v3224 = vpack.c.b16 %v3048, %v3044
    %v3225 = vpack.c.b16 %v3049, %v3045
    %v3226 = vpack.c.b16 %v3054, %v3050
    %v3227 = vpack.c.b16 %v3055, %v3051
    %v3228 = vpack.c.b16 %v3056, %v3052
    %v3229 = vpack.c.b16 %v3057, %v3053
    %v3230 = vpack.c.b16 %v3062, %v3058
    %v3231 = vpack.c.b16 %v3063, %v3059
    %v3232 = vpack.c.b16 %v3064, %v3060
    %v3233 = vpack.c.b16 %v3065, %v3061
    %v3234 = vpack.c.b16 %v3070, %v3066
    %v3235 = vpack.c.b16 %v3071, %v3067
    %v3236 = vpack.c.b16 %v3072, %v3068
    %v3237 = vpack.c.b16 %v3073, %v3069
    %v3238 = vpack.c.b16 %v3078, %v3074
    %v3239 = vpack.c.b16 %v3079, %v3075
    %v3240 = vpack.c.b16 %v3080, %v3076
    %v3241 = vpack.c.b16 %v3081, %v3077
    %v3242 = vpack.c.b16 %v3086, %v3082
    %v3243 = vpack.c.b16 %v3087, %v3083
    %v3244 = vpack.c.b16 %v3088, %v3084
    %v3245 = vpack.c.b16 %v3089, %v3085
    %v3246 = vpack.c.b16 %v3094, %v3090
    %v3247 = vpack.c.b16 %v3095, %v3091
    %v3248 = vpack.c.b16 %v3096, %v3092
    %v3249 = vpack.c.b16 %v3097, %v3093
    %v3250 = vpack.c.b16 %v3102, %v3098
    %v3251 = vpack.c.b16 %v3103, %v3099
    %v3252 = vpack.c.b16 %v3104, %v3100
    %v3253 = vpack.c.b16 %v3105, %v3101
    %v3254 = vpack.c.b16 %v3110, %v3106
    %v3255 = vpack.c.b16 %v3111, %v3107
    %v3256 = vpack.c.b16 %v3112, %v3108
    %v3257 = vpack.c.b16 %v3113, %v3109
    %v3258 = vpack.c.b16 %v3118, %v3114
    %v3259 = vpack.c.b16 %v3119, %v3115
    %v3260 = vpack.c.b16 %v3120, %v3116
    %v3261 = vpack.c.b16 %v3121, %v3117
    %v3262 = vpack.c.b16 %v3126, %v3122
    %v3263 = vpack.c.b16 %v3127, %v3123
    %v3264 = vpack.c.b16 %v3128, %v3124
    %v3265 = vpack.c.b16 %v3129, %v3125
    %v3266 = vpack.c.b16 %v3134, %v3130
    %v3267 = vpack.c.b16 %v3135, %v3131
    %v3268 = vpack.c.b16 %v3136, %v3132
    %v3269 = vpack.c.b16 %v3137, %v3133
    %v3270 = vpack.c.b16 %v3142, %v3138
    %v3271 = vpack.c.b16 %v3143, %v3139
    %v3272 = vpack.c.b16 %v3144, %v3140
    %v3273 = vpack.c.b16 %v3145, %v3141
    %3402 = vmatprep.subr.bf16.mxu0 %v3175
    %3403 = vmatpush1.bf16.msra.mxu0 %v3174
    %3404 = vmatprep.subr.bf16.mxu0 %v3171
    %3405 = vmatpush1.bf16.msra.mxu0 %v3170
    %3406 = vmatprep.subr.bf16.mxu0 %v3167
    %3407 = vmatpush1.bf16.msra.mxu0 %v3166
    %3408 = vmatprep.subr.bf16.mxu0 %v3163
    %3409 = vmatpush1.bf16.msra.mxu0 %v3162
    %3410 = vmatprep.subr.bf16.mxu0 %v3159
    %3411 = vmatpush1.bf16.msra.mxu0 %v3158
    %3412 = vmatprep.subr.bf16.mxu0 %v3155
    %3413 = vmatpush1.bf16.msra.mxu0 %v3154
    %3414 = vmatprep.subr.bf16.mxu0 %v3151
    %3415 = vmatpush1.bf16.msra.mxu0 %v3150
    %3416 = vmatprep.subr.bf16.mxu0 %v3147
    %3417 = vmatpush1.bf16.msra.mxu0 %v3146
    %3418 = vmatprep.subr.bf16.mxu0 %v3207
    %3419 = vmatpush2.bf16.msra.mxu0 %v3206
    %3420 = vmatprep.subr.bf16.mxu0 %v3203
    %3421 = vmatpush2.bf16.msra.mxu0 %v3202
    %3422 = vmatprep.subr.bf16.mxu0 %v3199
    %3423 = vmatpush2.bf16.msra.mxu0 %v3198
    %3424 = vmatprep.subr.bf16.mxu0 %v3195
    %3425 = vmatpush2.bf16.msra.mxu0 %v3194
    %3426 = vmatprep.subr.bf16.mxu0 %v3191
    %3427 = vmatpush2.bf16.msra.mxu0 %v3190
    %3428 = vmatprep.subr.bf16.mxu0 %v3187
    %3429 = vmatpush2.bf16.msra.mxu0 %v3186
    %3430 = vmatprep.subr.bf16.mxu0 %v3183
    %3431 = vmatpush2.bf16.msra.mxu0 %v3182
    %3432 = vmatprep.subr.bf16.mxu0 %v3179
    %3433 = vmatpush2.bf16.msra.mxu0 %v3178
    %3434 = vmatprep.mubr.bf16.mxu0 %v2609
    %3435 = vmatmul.mubr.bf16.gmra.mxu0 %v2608
    %v3436 = vpop.f32.mrf.mxu0
    %v3437 = vadd.f32 %v2745, %v3436
    %v3438 = vpop.f32.mrf.mxu0
    %v3439 = vadd.f32 %v2749, %v3438
    %v3440 = vpop.f32.mrf.mxu0
    %v3441 = vadd.f32 %v2745, %v3440
    %v3442 = vpop.f32.mrf.mxu0
    %v3443 = vadd.f32 %v2749, %v3442
    %3444 = vdwg.mxu0
    %3445 = vmatprep.subr.bf16.mxu0 %v3239
    %3446 = vmatpush1.bf16.msra.mxu0 %v3238
    %3447 = vmatprep.subr.bf16.mxu0 %v3235
    %3448 = vmatpush1.bf16.msra.mxu0 %v3234
    %3449 = vmatprep.subr.bf16.mxu0 %v3231
    %3450 = vmatpush1.bf16.msra.mxu0 %v3230
    %3451 = vmatprep.subr.bf16.mxu0 %v3227
    %3452 = vmatpush1.bf16.msra.mxu0 %v3226
    %3453 = vmatprep.subr.bf16.mxu0 %v3223
    %3454 = vmatpush1.bf16.msra.mxu0 %v3222
    %3455 = vmatprep.subr.bf16.mxu0 %v3219
    %3456 = vmatpush1.bf16.msra.mxu0 %v3218
    %3457 = vmatprep.subr.bf16.mxu0 %v3215
    %3458 = vmatpush1.bf16.msra.mxu0 %v3214
    %3459 = vmatprep.subr.bf16.mxu0 %v3211
    %3460 = vmatpush1.bf16.msra.mxu0 %v3210
    %3461 = vmatprep.subr.bf16.mxu0 %v3271
    %3462 = vmatpush2.bf16.msra.mxu0 %v3270
    %3463 = vmatprep.subr.bf16.mxu0 %v3267
    %3464 = vmatpush2.bf16.msra.mxu0 %v3266
    %3465 = vmatprep.subr.bf16.mxu0 %v3263
    %3466 = vmatpush2.bf16.msra.mxu0 %v3262
    %3467 = vmatprep.subr.bf16.mxu0 %v3259
    %3468 = vmatpush2.bf16.msra.mxu0 %v3258
    %3469 = vmatprep.subr.bf16.mxu0 %v3255
    %3470 = vmatpush2.bf16.msra.mxu0 %v3254
    %3471 = vmatprep.subr.bf16.mxu0 %v3251
    %3472 = vmatpush2.bf16.msra.mxu0 %v3250
    %3473 = vmatprep.subr.bf16.mxu0 %v3247
    %3474 = vmatpush2.bf16.msra.mxu0 %v3246
    %3475 = vmatprep.subr.bf16.mxu0 %v3243
    %3476 = vmatpush2.bf16.msra.mxu0 %v3242
    %3477 = vmatprep.mubr.bf16.mxu0 %v2611
    %3478 = vmatmul.mubr.bf16.gmra.mxu0 %v2610
    %v3479 = vpop.f32.mrf.mxu0
    %v3480 = vadd.f32 %v3437, %v3479
    %v3481 = vpop.f32.mrf.mxu0
    %v3482 = vadd.f32 %v3439, %v3481
    %v3483 = vpop.f32.mrf.mxu0
    %v3484 = vadd.f32 %v3441, %v3483
    %v3485 = vpop.f32.mrf.mxu0
    %v3486 = vadd.f32 %v3443, %v3485
    %3487 = vdwg.mxu0
    %3488 = vmatprep.subr.bf16.mxu0 %v3177
    %3489 = vmatpush1.bf16.msra.mxu0 %v3176
    %3490 = vmatprep.subr.bf16.mxu0 %v3173
    %3491 = vmatpush1.bf16.msra.mxu0 %v3172
    %3492 = vmatprep.subr.bf16.mxu0 %v3169
    %3493 = vmatpush1.bf16.msra.mxu0 %v3168
    %3494 = vmatprep.subr.bf16.mxu0 %v3165
    %3495 = vmatpush1.bf16.msra.mxu0 %v3164
    %3496 = vmatprep.subr.bf16.mxu0 %v3161
    %3497 = vmatpush1.bf16.msra.mxu0 %v3160
    %3498 = vmatprep.subr.bf16.mxu0 %v3157
    %3499 = vmatpush1.bf16.msra.mxu0 %v3156
    %3500 = vmatprep.subr.bf16.mxu0 %v3153
    %3501 = vmatpush1.bf16.msra.mxu0 %v3152
    %3502 = vmatprep.subr.bf16.mxu0 %v3149
    %3503 = vmatpush1.bf16.msra.mxu0 %v3148
    %3504 = vmatprep.subr.bf16.mxu0 %v3209
    %3505 = vmatpush2.bf16.msra.mxu0 %v3208
    %3506 = vmatprep.subr.bf16.mxu0 %v3205
    %3507 = vmatpush2.bf16.msra.mxu0 %v3204
    %3508 = vmatprep.subr.bf16.mxu0 %v3201
    %3509 = vmatpush2.bf16.msra.mxu0 %v3200
    %3510 = vmatprep.subr.bf16.mxu0 %v3197
    %3511 = vmatpush2.bf16.msra.mxu0 %v3196
    %3512 = vmatprep.subr.bf16.mxu0 %v3193
    %3513 = vmatpush2.bf16.msra.mxu0 %v3192
    %3514 = vmatprep.subr.bf16.mxu0 %v3189
    %3515 = vmatpush2.bf16.msra.mxu0 %v3188
    %3516 = vmatprep.subr.bf16.mxu0 %v3185
    %3517 = vmatpush2.bf16.msra.mxu0 %v3184
    %3518 = vmatprep.subr.bf16.mxu0 %v3181
    %3519 = vmatpush2.bf16.msra.mxu0 %v3180
    %3520 = vmatprep.mubr.bf16.mxu0 %v2609
    %3521 = vmatmul.mubr.bf16.gmra.mxu0 %v2608
    %v3522 = vpop.f32.mrf.mxu0
    %v3523 = vadd.f32 %v2753, %v3522
    %v3524 = vpop.f32.mrf.mxu0
    %v3525 = vadd.f32 %v2757, %v3524
    %v3526 = vpop.f32.mrf.mxu0
    %v3527 = vadd.f32 %v2753, %v3526
    %v3528 = vpop.f32.mrf.mxu0
    %v3529 = vadd.f32 %v2757, %v3528
    %3530 = vdwg.mxu0
    %3531 = vmatprep.subr.bf16.mxu0 %v3241
    %3532 = vmatpush1.bf16.msra.mxu0 %v3240
    %3533 = vmatprep.subr.bf16.mxu0 %v3237
    %3534 = vmatpush1.bf16.msra.mxu0 %v3236
    %3535 = vmatprep.subr.bf16.mxu0 %v3233
    %3536 = vmatpush1.bf16.msra.mxu0 %v3232
    %3537 = vmatprep.subr.bf16.mxu0 %v3229
    %3538 = vmatpush1.bf16.msra.mxu0 %v3228
    %3539 = vmatprep.subr.bf16.mxu0 %v3225
    %3540 = vmatpush1.bf16.msra.mxu0 %v3224
    %3541 = vmatprep.subr.bf16.mxu0 %v3221
    %3542 = vmatpush1.bf16.msra.mxu0 %v3220
    %3543 = vmatprep.subr.bf16.mxu0 %v3217
    %3544 = vmatpush1.bf16.msra.mxu0 %v3216
    %3545 = vmatprep.subr.bf16.mxu0 %v3213
    %3546 = vmatpush1.bf16.msra.mxu0 %v3212
    %3547 = vmatprep.subr.bf16.mxu0 %v3273
    %3548 = vmatpush2.bf16.msra.mxu0 %v3272
    %3549 = vmatprep.subr.bf16.mxu0 %v3269
    %3550 = vmatpush2.bf16.msra.mxu0 %v3268
    %3551 = vmatprep.subr.bf16.mxu0 %v3265
    %3552 = vmatpush2.bf16.msra.mxu0 %v3264
    %3553 = vmatprep.subr.bf16.mxu0 %v3261
    %3554 = vmatpush2.bf16.msra.mxu0 %v3260
    %3555 = vmatprep.subr.bf16.mxu0 %v3257
    %3556 = vmatpush2.bf16.msra.mxu0 %v3256
    %3557 = vmatprep.subr.bf16.mxu0 %v3253
    %3558 = vmatpush2.bf16.msra.mxu0 %v3252
    %3559 = vmatprep.subr.bf16.mxu0 %v3249
    %3560 = vmatpush2.bf16.msra.mxu0 %v3248
    %3561 = vmatprep.subr.bf16.mxu0 %v3245
    %3562 = vmatpush2.bf16.msra.mxu0 %v3244
    %3563 = vmatprep.mubr.bf16.mxu0 %v2611
    %3564 = vmatmul.mubr.bf16.gmra.mxu0 %v2610
    %v3565 = vpop.f32.mrf.mxu0
    %v3566 = vadd.f32 %v3523, %v3565
    %v3567 = vpop.f32.mrf.mxu0
    %v3568 = vadd.f32 %v3525, %v3567
    %v3569 = vpop.f32.mrf.mxu0
    %v3570 = vadd.f32 %v3527, %v3569
    %v3571 = vpop.f32.mrf.mxu0
    %v3572 = vadd.f32 %v3529, %v3571
    %3573 = vdwg.mxu0
    %v3574 = vmax.f32 %v3480, 0.0
    %v3575 = vmax.f32 %v3482, 0.0
    %v3576 = vmax.f32 %v3566, 0.0
    %v3577 = vmax.f32 %v3568, 0.0
    %v3578 = vmax.f32 %v3484, 0.0
    %v3579 = vmax.f32 %v3486, 0.0
    %v3580 = vmax.f32 %v3570, 0.0
    %v3581 = vmax.f32 %v3572, 0.0
    %v3582 = vpack.c.bf16 %v3578, %v3574
    %v3583 = vpack.c.bf16 %v3579, %v3575
    %v3584 = vpack.c.bf16 %v3580, %v3576
    %v3585 = vpack.c.bf16 %v3581, %v3577
    %v3586 = vpack.c.bf16 %v1302, %v1300
    %v3587 = vpack.c.bf16 %v1303, %v1301
    %v3588 = vld [vmem:[#allocation22] sm:$0xf]
    %v3589 = vld [vmem:[#allocation22 + $0x4] sm:$0xf]
    %v3590 = vld [vmem:[#allocation22 + $0x8] sm:$0xf]
    %v3591 = vld [vmem:[#allocation22 + $0xc] sm:$0xf]
    %v3592 = vld [vmem:[#allocation22 + $0x10] sm:$0xf]
    %v3593 = vld [vmem:[#allocation22 + $0x14] sm:$0xf]
    %v3594 = vld [vmem:[#allocation22 + $0x18] sm:$0xf]
    %v3595 = vld [vmem:[#allocation22 + $0x1c] sm:$0xf]
    %v3596 = vld [vmem:[#allocation22 + $0x20] sm:$0xf]
    %v3597 = vld [vmem:[#allocation22 + $0x24] sm:$0xf]
    %v3598 = vld [vmem:[#allocation22 + $0x28] sm:$0xf]
    %v3599 = vld [vmem:[#allocation22 + $0x2c] sm:$0xf]
    %v3600 = vld [vmem:[#allocation22 + $0x30] sm:$0xf]
    %v3601 = vld [vmem:[#allocation22 + $0x34] sm:$0xf]
    %v3602 = vld [vmem:[#allocation22 + $0x38] sm:$0xf]
    %v3603 = vld [vmem:[#allocation22 + $0x3c] sm:$0xf]
    %v3604 = vld [vmem:[#allocation22 + $0x40] sm:$0xf]
    %v3605 = vld [vmem:[#allocation22 + $0x44] sm:$0xf]
    %v3606 = vld [vmem:[#allocation22 + $0x48] sm:$0xf]
    %v3607 = vld [vmem:[#allocation22 + $0x4c] sm:$0xf]
    %v3608 = vld [vmem:[#allocation22 + $0x50] sm:$0xf]
    %v3609 = vld [vmem:[#allocation22 + $0x54] sm:$0xf]
    %v3610 = vld [vmem:[#allocation22 + $0x58] sm:$0xf]
    %v3611 = vld [vmem:[#allocation22 + $0x5c] sm:$0xf]
    %v3612 = vld [vmem:[#allocation22 + $0x60] sm:$0xf]
    %v3613 = vld [vmem:[#allocation22 + $0x64] sm:$0xf]
    %v3614 = vld [vmem:[#allocation22 + $0x68] sm:$0xf]
    %v3615 = vld [vmem:[#allocation22 + $0x6c] sm:$0xf]
    %v3616 = vld [vmem:[#allocation22 + $0x70] sm:$0xf]
    %v3617 = vld [vmem:[#allocation22 + $0x74] sm:$0xf]
    %v3618 = vld [vmem:[#allocation22 + $0x78] sm:$0xf]
    %v3619 = vld [vmem:[#allocation22 + $0x7c] sm:$0xf]
    %v3620 = vld [vmem:[#allocation22 + $0x80] sm:$0xf]
    %v3621 = vld [vmem:[#allocation22 + $0x84] sm:$0xf]
    %v3622 = vld [vmem:[#allocation22 + $0x88] sm:$0xf]
    %v3623 = vld [vmem:[#allocation22 + $0x8c] sm:$0xf]
    %v3624 = vld [vmem:[#allocation22 + $0x90] sm:$0xf]
    %v3625 = vld [vmem:[#allocation22 + $0x94] sm:$0xf]
    %v3626 = vld [vmem:[#allocation22 + $0x98] sm:$0xf]
    %v3627 = vld [vmem:[#allocation22 + $0x9c] sm:$0xf]
    %v3628 = vld [vmem:[#allocation22 + $0xa0] sm:$0xf]
    %v3629 = vld [vmem:[#allocation22 + $0xa4] sm:$0xf]
    %v3630 = vld [vmem:[#allocation22 + $0xa8] sm:$0xf]
    %v3631 = vld [vmem:[#allocation22 + $0xac] sm:$0xf]
    %v3632 = vld [vmem:[#allocation22 + $0xb0] sm:$0xf]
    %v3633 = vld [vmem:[#allocation22 + $0xb4] sm:$0xf]
    %v3634 = vld [vmem:[#allocation22 + $0xb8] sm:$0xf]
    %v3635 = vld [vmem:[#allocation22 + $0xbc] sm:$0xf]
    %v3636 = vld [vmem:[#allocation22 + $0xc0] sm:$0xf]
    %v3637 = vld [vmem:[#allocation22 + $0xc4] sm:$0xf]
    %v3638 = vld [vmem:[#allocation22 + $0xc8] sm:$0xf]
    %v3639 = vld [vmem:[#allocation22 + $0xcc] sm:$0xf]
    %v3640 = vld [vmem:[#allocation22 + $0xd0] sm:$0xf]
    %v3641 = vld [vmem:[#allocation22 + $0xd4] sm:$0xf]
    %v3642 = vld [vmem:[#allocation22 + $0xd8] sm:$0xf]
    %v3643 = vld [vmem:[#allocation22 + $0xdc] sm:$0xf]
    %v3644 = vld [vmem:[#allocation22 + $0xe0] sm:$0xf]
    %v3645 = vld [vmem:[#allocation22 + $0xe4] sm:$0xf]
    %v3646 = vld [vmem:[#allocation22 + $0xe8] sm:$0xf]
    %v3647 = vld [vmem:[#allocation22 + $0xec] sm:$0xf]
    %v3648 = vld [vmem:[#allocation22 + $0xf0] sm:$0xf]
    %v3649 = vld [vmem:[#allocation22 + $0xf4] sm:$0xf]
    %v3650 = vld [vmem:[#allocation22 + $0xf8] sm:$0xf]
    %v3651 = vld [vmem:[#allocation22 + $0xfc] sm:$0xf]
    %v3652 = vld [vmem:[#allocation22 + $0x100] sm:$0xf]
    %v3653 = vld [vmem:[#allocation22 + $0x104] sm:$0xf]
    %v3654 = vld [vmem:[#allocation22 + $0x108] sm:$0xf]
    %v3655 = vld [vmem:[#allocation22 + $0x10c] sm:$0xf]
    %v3656 = vld [vmem:[#allocation22 + $0x110] sm:$0xf]
    %v3657 = vld [vmem:[#allocation22 + $0x114] sm:$0xf]
    %v3658 = vld [vmem:[#allocation22 + $0x118] sm:$0xf]
    %v3659 = vld [vmem:[#allocation22 + $0x11c] sm:$0xf]
    %v3660 = vld [vmem:[#allocation22 + $0x120] sm:$0xf]
    %v3661 = vld [vmem:[#allocation22 + $0x124] sm:$0xf]
    %v3662 = vld [vmem:[#allocation22 + $0x128] sm:$0xf]
    %v3663 = vld [vmem:[#allocation22 + $0x12c] sm:$0xf]
    %v3664 = vld [vmem:[#allocation22 + $0x130] sm:$0xf]
    %v3665 = vld [vmem:[#allocation22 + $0x134] sm:$0xf]
    %v3666 = vld [vmem:[#allocation22 + $0x138] sm:$0xf]
    %v3667 = vld [vmem:[#allocation22 + $0x13c] sm:$0xf]
    %v3668 = vld [vmem:[#allocation22 + $0x140] sm:$0xf]
    %v3669 = vld [vmem:[#allocation22 + $0x144] sm:$0xf]
    %v3670 = vld [vmem:[#allocation22 + $0x148] sm:$0xf]
    %v3671 = vld [vmem:[#allocation22 + $0x14c] sm:$0xf]
    %v3672 = vld [vmem:[#allocation22 + $0x150] sm:$0xf]
    %v3673 = vld [vmem:[#allocation22 + $0x154] sm:$0xf]
    %v3674 = vld [vmem:[#allocation22 + $0x158] sm:$0xf]
    %v3675 = vld [vmem:[#allocation22 + $0x15c] sm:$0xf]
    %v3676 = vld [vmem:[#allocation22 + $0x160] sm:$0xf]
    %v3677 = vld [vmem:[#allocation22 + $0x164] sm:$0xf]
    %v3678 = vld [vmem:[#allocation22 + $0x168] sm:$0xf]
    %v3679 = vld [vmem:[#allocation22 + $0x16c] sm:$0xf]
    %v3680 = vld [vmem:[#allocation22 + $0x170] sm:$0xf]
    %v3681 = vld [vmem:[#allocation22 + $0x174] sm:$0xf]
    %v3682 = vld [vmem:[#allocation22 + $0x178] sm:$0xf]
    %v3683 = vld [vmem:[#allocation22 + $0x17c] sm:$0xf]
    %v3684 = vld [vmem:[#allocation22 + $0x180] sm:$0xf]
    %v3685 = vld [vmem:[#allocation22 + $0x184] sm:$0xf]
    %v3686 = vld [vmem:[#allocation22 + $0x188] sm:$0xf]
    %v3687 = vld [vmem:[#allocation22 + $0x18c] sm:$0xf]
    %v3688 = vld [vmem:[#allocation22 + $0x190] sm:$0xf]
    %v3689 = vld [vmem:[#allocation22 + $0x194] sm:$0xf]
    %v3690 = vld [vmem:[#allocation22 + $0x198] sm:$0xf]
    %v3691 = vld [vmem:[#allocation22 + $0x19c] sm:$0xf]
    %v3692 = vld [vmem:[#allocation22 + $0x1a0] sm:$0xf]
    %v3693 = vld [vmem:[#allocation22 + $0x1a4] sm:$0xf]
    %v3694 = vld [vmem:[#allocation22 + $0x1a8] sm:$0xf]
    %v3695 = vld [vmem:[#allocation22 + $0x1ac] sm:$0xf]
    %v3696 = vld [vmem:[#allocation22 + $0x1b0] sm:$0xf]
    %v3697 = vld [vmem:[#allocation22 + $0x1b4] sm:$0xf]
    %v3698 = vld [vmem:[#allocation22 + $0x1b8] sm:$0xf]
    %v3699 = vld [vmem:[#allocation22 + $0x1bc] sm:$0xf]
    %v3700 = vld [vmem:[#allocation22 + $0x1c0] sm:$0xf]
    %v3701 = vld [vmem:[#allocation22 + $0x1c4] sm:$0xf]
    %v3702 = vld [vmem:[#allocation22 + $0x1c8] sm:$0xf]
    %v3703 = vld [vmem:[#allocation22 + $0x1cc] sm:$0xf]
    %v3704 = vld [vmem:[#allocation22 + $0x1d0] sm:$0xf]
    %v3705 = vld [vmem:[#allocation22 + $0x1d4] sm:$0xf]
    %v3706 = vld [vmem:[#allocation22 + $0x1d8] sm:$0xf]
    %v3707 = vld [vmem:[#allocation22 + $0x1dc] sm:$0xf]
    %v3708 = vld [vmem:[#allocation22 + $0x1e0] sm:$0xf]
    %v3709 = vld [vmem:[#allocation22 + $0x1e4] sm:$0xf]
    %v3710 = vld [vmem:[#allocation22 + $0x1e8] sm:$0xf]
    %v3711 = vld [vmem:[#allocation22 + $0x1ec] sm:$0xf]
    %v3712 = vld [vmem:[#allocation22 + $0x1f0] sm:$0xf]
    %v3713 = vld [vmem:[#allocation22 + $0x1f4] sm:$0xf]
    %v3714 = vld [vmem:[#allocation22 + $0x1f8] sm:$0xf]
    %v3715 = vld [vmem:[#allocation22 + $0x1fc] sm:$0xf]
    %v3716 = vld [vmem:[%s22] sm:$0x1]
    %v3718 = vlaneseq
    %v3719 = vshrl.u32 %v3718, 7
    %v3720 = vsub.s32 0, %v3719
    %v3721 = vrot.slane %v3716, %v3720
    %v3851 = vunpack.c.l.b16 %v3588
    %v3852 = vunpack.c.l.b16 %v3589
    %v3853 = vunpack.c.l.b16 %v3590
    %v3854 = vunpack.c.l.b16 %v3591
    %v3855 = vunpack.c.l.b16 %v3592
    %v3856 = vunpack.c.l.b16 %v3593
    %v3857 = vunpack.c.l.b16 %v3594
    %v3858 = vunpack.c.l.b16 %v3595
    %v3859 = vunpack.c.l.b16 %v3596
    %v3860 = vunpack.c.l.b16 %v3597
    %v3861 = vunpack.c.l.b16 %v3598
    %v3862 = vunpack.c.l.b16 %v3599
    %v3863 = vunpack.c.l.b16 %v3600
    %v3864 = vunpack.c.l.b16 %v3601
    %v3865 = vunpack.c.l.b16 %v3602
    %v3866 = vunpack.c.l.b16 %v3603
    %v3867 = vunpack.c.l.b16 %v3604
    %v3868 = vunpack.c.l.b16 %v3605
    %v3869 = vunpack.c.l.b16 %v3606
    %v3870 = vunpack.c.l.b16 %v3607
    %v3871 = vunpack.c.l.b16 %v3608
    %v3872 = vunpack.c.l.b16 %v3609
    %v3873 = vunpack.c.l.b16 %v3610
    %v3874 = vunpack.c.l.b16 %v3611
    %v3875 = vunpack.c.l.b16 %v3612
    %v3876 = vunpack.c.l.b16 %v3613
    %v3877 = vunpack.c.l.b16 %v3614
    %v3878 = vunpack.c.l.b16 %v3615
    %v3879 = vunpack.c.l.b16 %v3616
    %v3880 = vunpack.c.l.b16 %v3617
    %v3881 = vunpack.c.l.b16 %v3618
    %v3882 = vunpack.c.l.b16 %v3619
    %v3883 = vunpack.c.l.b16 %v3620
    %v3884 = vunpack.c.l.b16 %v3621
    %v3885 = vunpack.c.l.b16 %v3622
    %v3886 = vunpack.c.l.b16 %v3623
    %v3887 = vunpack.c.l.b16 %v3624
    %v3888 = vunpack.c.l.b16 %v3625
    %v3889 = vunpack.c.l.b16 %v3626
    %v3890 = vunpack.c.l.b16 %v3627
    %v3891 = vunpack.c.l.b16 %v3628
    %v3892 = vunpack.c.l.b16 %v3629
    %v3893 = vunpack.c.l.b16 %v3630
    %v3894 = vunpack.c.l.b16 %v3631
    %v3895 = vunpack.c.l.b16 %v3632
    %v3896 = vunpack.c.l.b16 %v3633
    %v3897 = vunpack.c.l.b16 %v3634
    %v3898 = vunpack.c.l.b16 %v3635
    %v3899 = vunpack.c.l.b16 %v3636
    %v3900 = vunpack.c.l.b16 %v3637
    %v3901 = vunpack.c.l.b16 %v3638
    %v3902 = vunpack.c.l.b16 %v3639
    %v3903 = vunpack.c.l.b16 %v3640
    %v3904 = vunpack.c.l.b16 %v3641
    %v3905 = vunpack.c.l.b16 %v3642
    %v3906 = vunpack.c.l.b16 %v3643
    %v3907 = vunpack.c.l.b16 %v3644
    %v3908 = vunpack.c.l.b16 %v3645
    %v3909 = vunpack.c.l.b16 %v3646
    %v3910 = vunpack.c.l.b16 %v3647
    %v3911 = vunpack.c.l.b16 %v3648
    %v3912 = vunpack.c.l.b16 %v3649
    %v3913 = vunpack.c.l.b16 %v3650
    %v3914 = vunpack.c.l.b16 %v3651
    %v3915 = vunpack.c.l.b16 %v3652
    %v3916 = vunpack.c.l.b16 %v3653
    %v3917 = vunpack.c.l.b16 %v3654
    %v3918 = vunpack.c.l.b16 %v3655
    %v3919 = vunpack.c.l.b16 %v3656
    %v3920 = vunpack.c.l.b16 %v3657
    %v3921 = vunpack.c.l.b16 %v3658
    %v3922 = vunpack.c.l.b16 %v3659
    %v3923 = vunpack.c.l.b16 %v3660
    %v3924 = vunpack.c.l.b16 %v3661
    %v3925 = vunpack.c.l.b16 %v3662
    %v3926 = vunpack.c.l.b16 %v3663
    %v3927 = vunpack.c.l.b16 %v3664
    %v3928 = vunpack.c.l.b16 %v3665
    %v3929 = vunpack.c.l.b16 %v3666
    %v3930 = vunpack.c.l.b16 %v3667
    %v3931 = vunpack.c.l.b16 %v3668
    %v3932 = vunpack.c.l.b16 %v3669
    %v3933 = vunpack.c.l.b16 %v3670
    %v3934 = vunpack.c.l.b16 %v3671
    %v3935 = vunpack.c.l.b16 %v3672
    %v3936 = vunpack.c.l.b16 %v3673
    %v3937 = vunpack.c.l.b16 %v3674
    %v3938 = vunpack.c.l.b16 %v3675
    %v3939 = vunpack.c.l.b16 %v3676
    %v3940 = vunpack.c.l.b16 %v3677
    %v3941 = vunpack.c.l.b16 %v3678
    %v3942 = vunpack.c.l.b16 %v3679
    %v3943 = vunpack.c.l.b16 %v3680
    %v3944 = vunpack.c.l.b16 %v3681
    %v3945 = vunpack.c.l.b16 %v3682
    %v3946 = vunpack.c.l.b16 %v3683
    %v3947 = vunpack.c.l.b16 %v3684
    %v3948 = vunpack.c.l.b16 %v3685
    %v3949 = vunpack.c.l.b16 %v3686
    %v3950 = vunpack.c.l.b16 %v3687
    %v3951 = vunpack.c.l.b16 %v3688
    %v3952 = vunpack.c.l.b16 %v3689
    %v3953 = vunpack.c.l.b16 %v3690
    %v3954 = vunpack.c.l.b16 %v3691
    %v3955 = vunpack.c.l.b16 %v3692
    %v3956 = vunpack.c.l.b16 %v3693
    %v3957 = vunpack.c.l.b16 %v3694
    %v3958 = vunpack.c.l.b16 %v3695
    %v3959 = vunpack.c.l.b16 %v3696
    %v3960 = vunpack.c.l.b16 %v3697
    %v3961 = vunpack.c.l.b16 %v3698
    %v3962 = vunpack.c.l.b16 %v3699
    %v3963 = vunpack.c.l.b16 %v3700
    %v3964 = vunpack.c.l.b16 %v3701
    %v3965 = vunpack.c.l.b16 %v3702
    %v3966 = vunpack.c.l.b16 %v3703
    %v3967 = vunpack.c.l.b16 %v3704
    %v3968 = vunpack.c.l.b16 %v3705
    %v3969 = vunpack.c.l.b16 %v3706
    %v3970 = vunpack.c.l.b16 %v3707
    %v3971 = vunpack.c.l.b16 %v3708
    %v3972 = vunpack.c.l.b16 %v3709
    %v3973 = vunpack.c.l.b16 %v3710
    %v3974 = vunpack.c.l.b16 %v3711
    %v3975 = vunpack.c.l.b16 %v3712
    %v3976 = vunpack.c.l.b16 %v3713
    %v3977 = vunpack.c.l.b16 %v3714
    %v3978 = vunpack.c.l.b16 %v3715
    %v3979 = vpack.c.b16 %v3852, %v3851
    %v3980 = vpack.c.b16 %v3854, %v3853
    %v3981 = vpack.c.b16 %v3856, %v3855
    %v3982 = vpack.c.b16 %v3858, %v3857
    %v3983 = vpack.c.b16 %v3860, %v3859
    %v3984 = vpack.c.b16 %v3862, %v3861
    %v3985 = vpack.c.b16 %v3864, %v3863
    %v3986 = vpack.c.b16 %v3866, %v3865
    %v3987 = vpack.c.b16 %v3868, %v3867
    %v3988 = vpack.c.b16 %v3870, %v3869
    %v3989 = vpack.c.b16 %v3872, %v3871
    %v3990 = vpack.c.b16 %v3874, %v3873
    %v3991 = vpack.c.b16 %v3876, %v3875
    %v3992 = vpack.c.b16 %v3878, %v3877
    %v3993 = vpack.c.b16 %v3880, %v3879
    %v3994 = vpack.c.b16 %v3882, %v3881
    %v3995 = vpack.c.b16 %v3884, %v3883
    %v3996 = vpack.c.b16 %v3886, %v3885
    %v3997 = vpack.c.b16 %v3888, %v3887
    %v3998 = vpack.c.b16 %v3890, %v3889
    %v3999 = vpack.c.b16 %v3892, %v3891
    %v4000 = vpack.c.b16 %v3894, %v3893
    %v4001 = vpack.c.b16 %v3896, %v3895
    %v4002 = vpack.c.b16 %v3898, %v3897
    %v4003 = vpack.c.b16 %v3900, %v3899
    %v4004 = vpack.c.b16 %v3902, %v3901
    %v4005 = vpack.c.b16 %v3904, %v3903
    %v4006 = vpack.c.b16 %v3906, %v3905
    %v4007 = vpack.c.b16 %v3908, %v3907
    %v4008 = vpack.c.b16 %v3910, %v3909
    %v4009 = vpack.c.b16 %v3912, %v3911
    %v4010 = vpack.c.b16 %v3914, %v3913
    %v4011 = vpack.c.b16 %v3916, %v3915
    %v4012 = vpack.c.b16 %v3918, %v3917
    %v4013 = vpack.c.b16 %v3920, %v3919
    %v4014 = vpack.c.b16 %v3922, %v3921
    %v4015 = vpack.c.b16 %v3924, %v3923
    %v4016 = vpack.c.b16 %v3926, %v3925
    %v4017 = vpack.c.b16 %v3928, %v3927
    %v4018 = vpack.c.b16 %v3930, %v3929
    %v4019 = vpack.c.b16 %v3932, %v3931
    %v4020 = vpack.c.b16 %v3934, %v3933
    %v4021 = vpack.c.b16 %v3936, %v3935
    %v4022 = vpack.c.b16 %v3938, %v3937
    %v4023 = vpack.c.b16 %v3940, %v3939
    %v4024 = vpack.c.b16 %v3942, %v3941
    %v4025 = vpack.c.b16 %v3944, %v3943
    %v4026 = vpack.c.b16 %v3946, %v3945
    %v4027 = vpack.c.b16 %v3948, %v3947
    %v4028 = vpack.c.b16 %v3950, %v3949
    %v4029 = vpack.c.b16 %v3952, %v3951
    %v4030 = vpack.c.b16 %v3954, %v3953
    %v4031 = vpack.c.b16 %v3956, %v3955
    %v4032 = vpack.c.b16 %v3958, %v3957
    %v4033 = vpack.c.b16 %v3960, %v3959
    %v4034 = vpack.c.b16 %v3962, %v3961
    %v4035 = vpack.c.b16 %v3964, %v3963
    %v4036 = vpack.c.b16 %v3966, %v3965
    %v4037 = vpack.c.b16 %v3968, %v3967
    %v4038 = vpack.c.b16 %v3970, %v3969
    %v4039 = vpack.c.b16 %v3972, %v3971
    %v4040 = vpack.c.b16 %v3974, %v3973
    %v4041 = vpack.c.b16 %v3976, %v3975
    %v4042 = vpack.c.b16 %v3978, %v3977
    %4107 = vmatprep.subr.bf16.mxu0 0
    %4108 = vmatpush1.bf16.msra.mxu0 %v3986
    %4109 = vmatprep.subr.bf16.mxu0 0
    %4110 = vmatpush1.bf16.msra.mxu0 %v3985
    %4111 = vmatprep.subr.bf16.mxu0 0
    %4112 = vmatpush1.bf16.msra.mxu0 %v3984
    %4113 = vmatprep.subr.bf16.mxu0 0
    %4114 = vmatpush1.bf16.msra.mxu0 %v3983
    %4115 = vmatprep.subr.bf16.mxu0 0
    %4116 = vmatpush1.bf16.msra.mxu0 %v3982
    %4117 = vmatprep.subr.bf16.mxu0 0
    %4118 = vmatpush1.bf16.msra.mxu0 %v3981
    %4119 = vmatprep.subr.bf16.mxu0 0
    %4120 = vmatpush1.bf16.msra.mxu0 %v3980
    %4121 = vmatprep.subr.bf16.mxu0 0
    %4122 = vmatpush1.bf16.msra.mxu0 %v3979
    %4123 = vmatprep.subr.bf16.mxu0 0
    %4124 = vmatpush2.bf16.msra.mxu0 %v3994
    %4125 = vmatprep.subr.bf16.mxu0 0
    %4126 = vmatpush2.bf16.msra.mxu0 %v3993
    %4127 = vmatprep.subr.bf16.mxu0 0
    %4128 = vmatpush2.bf16.msra.mxu0 %v3992
    %4129 = vmatprep.subr.bf16.mxu0 0
    %4130 = vmatpush2.bf16.msra.mxu0 %v3991
    %4131 = vmatprep.subr.bf16.mxu0 0
    %4132 = vmatpush2.bf16.msra.mxu0 %v3990
    %4133 = vmatprep.subr.bf16.mxu0 0
    %4134 = vmatpush2.bf16.msra.mxu0 %v3989
    %4135 = vmatprep.subr.bf16.mxu0 0
    %4136 = vmatpush2.bf16.msra.mxu0 %v3988
    %4137 = vmatprep.subr.bf16.mxu0 0
    %4138 = vmatpush2.bf16.msra.mxu0 %v3987
    %4139 = vmatprep.mubr.bf16.mxu0 %v3583
    %4140 = vmatmul.mubr.bf16.gmra.mxu0 %v3582
    %v4141 = vpop.f32.mrf.mxu0
    %v4142 = vadd.f32 %v3721, %v4141
    %v4143 = vpop.f32.mrf.mxu0
    %v4144 = vpop.f32.mrf.mxu0
    %v4145 = vadd.f32 %v3721, %v4144
    %v4146 = vpop.f32.mrf.mxu0
    %4147 = vdwg.mxu0
    %4148 = vmatprep.subr.bf16.mxu0 0
    %4149 = vmatpush1.bf16.msra.mxu0 %v4002
    %4150 = vmatprep.subr.bf16.mxu0 0
    %4151 = vmatpush1.bf16.msra.mxu0 %v4001
    %4152 = vmatprep.subr.bf16.mxu0 0
    %4153 = vmatpush1.bf16.msra.mxu0 %v4000
    %4154 = vmatprep.subr.bf16.mxu0 0
    %4155 = vmatpush1.bf16.msra.mxu0 %v3999
    %4156 = vmatprep.subr.bf16.mxu0 0
    %4157 = vmatpush1.bf16.msra.mxu0 %v3998
    %4158 = vmatprep.subr.bf16.mxu0 0
    %4159 = vmatpush1.bf16.msra.mxu0 %v3997
    %4160 = vmatprep.subr.bf16.mxu0 0
    %4161 = vmatpush1.bf16.msra.mxu0 %v3996
    %4162 = vmatprep.subr.bf16.mxu0 0
    %4163 = vmatpush1.bf16.msra.mxu0 %v3995
    %4164 = vmatprep.subr.bf16.mxu0 0
    %4165 = vmatpush2.bf16.msra.mxu0 %v4010
    %4166 = vmatprep.subr.bf16.mxu0 0
    %4167 = vmatpush2.bf16.msra.mxu0 %v4009
    %4168 = vmatprep.subr.bf16.mxu0 0
    %4169 = vmatpush2.bf16.msra.mxu0 %v4008
    %4170 = vmatprep.subr.bf16.mxu0 0
    %4171 = vmatpush2.bf16.msra.mxu0 %v4007
    %4172 = vmatprep.subr.bf16.mxu0 0
    %4173 = vmatpush2.bf16.msra.mxu0 %v4006
    %4174 = vmatprep.subr.bf16.mxu0 0
    %4175 = vmatpush2.bf16.msra.mxu0 %v4005
    %4176 = vmatprep.subr.bf16.mxu0 0
    %4177 = vmatpush2.bf16.msra.mxu0 %v4004
    %4178 = vmatprep.subr.bf16.mxu0 0
    %4179 = vmatpush2.bf16.msra.mxu0 %v4003
    %4180 = vmatprep.mubr.bf16.mxu0 %v3585
    %4181 = vmatmul.mubr.bf16.gmra.mxu0 %v3584
    %v4182 = vpop.f32.mrf.mxu0
    %v4183 = vadd.f32 %v4142, %v4182
    %v4184 = vpop.f32.mrf.mxu0
    %v4185 = vpop.f32.mrf.mxu0
    %v4186 = vadd.f32 %v4145, %v4185
    %v4187 = vpop.f32.mrf.mxu0
    %4188 = vdwg.mxu0
    %4189 = vmatprep.subr.bf16.mxu0 0
    %4190 = vmatpush1.bf16.msra.mxu0 %v4018
    %4191 = vmatprep.subr.bf16.mxu0 0
    %4192 = vmatpush1.bf16.msra.mxu0 %v4017
    %4193 = vmatprep.subr.bf16.mxu0 0
    %4194 = vmatpush1.bf16.msra.mxu0 %v4016
    %4195 = vmatprep.subr.bf16.mxu0 0
    %4196 = vmatpush1.bf16.msra.mxu0 %v4015
    %4197 = vmatprep.subr.bf16.mxu0 0
    %4198 = vmatpush1.bf16.msra.mxu0 %v4014
    %4199 = vmatprep.subr.bf16.mxu0 0
    %4200 = vmatpush1.bf16.msra.mxu0 %v4013
    %4201 = vmatprep.subr.bf16.mxu0 0
    %4202 = vmatpush1.bf16.msra.mxu0 %v4012
    %4203 = vmatprep.subr.bf16.mxu0 0
    %4204 = vmatpush1.bf16.msra.mxu0 %v4011
    %4205 = vmatprep.subr.bf16.mxu0 0
    %4206 = vmatpush2.bf16.msra.mxu0 %v4026
    %4207 = vmatprep.subr.bf16.mxu0 0
    %4208 = vmatpush2.bf16.msra.mxu0 %v4025
    %4209 = vmatprep.subr.bf16.mxu0 0
    %4210 = vmatpush2.bf16.msra.mxu0 %v4024
    %4211 = vmatprep.subr.bf16.mxu0 0
    %4212 = vmatpush2.bf16.msra.mxu0 %v4023
    %4213 = vmatprep.subr.bf16.mxu0 0
    %4214 = vmatpush2.bf16.msra.mxu0 %v4022
    %4215 = vmatprep.subr.bf16.mxu0 0
    %4216 = vmatpush2.bf16.msra.mxu0 %v4021
    %4217 = vmatprep.subr.bf16.mxu0 0
    %4218 = vmatpush2.bf16.msra.mxu0 %v4020
    %4219 = vmatprep.subr.bf16.mxu0 0
    %4220 = vmatpush2.bf16.msra.mxu0 %v4019
    %4221 = vmatprep.mubr.bf16.mxu0 %v3587
    %4222 = vmatmul.mubr.bf16.gmra.mxu0 %v3586
    %v4223 = vpop.f32.mrf.mxu0
    %v4224 = vadd.f32 %v4183, %v4223
    %v4225 = vpop.f32.mrf.mxu0
    %v4226 = vpop.f32.mrf.mxu0
    %v4227 = vadd.f32 %v4186, %v4226
    %v4228 = vpop.f32.mrf.mxu0
    %4229 = vdwg.mxu0
    %4230 = vmatprep.subr.bf16.mxu0 0
    %4231 = vmatpush1.bf16.msra.mxu0 %v4034
    %4232 = vmatprep.subr.bf16.mxu0 0
    %4233 = vmatpush1.bf16.msra.mxu0 %v4033
    %4234 = vmatprep.subr.bf16.mxu0 0
    %4235 = vmatpush1.bf16.msra.mxu0 %v4032
    %4236 = vmatprep.subr.bf16.mxu0 0
    %4237 = vmatpush1.bf16.msra.mxu0 %v4031
    %4238 = vmatprep.subr.bf16.mxu0 0
    %4239 = vmatpush1.bf16.msra.mxu0 %v4030
    %4240 = vmatprep.subr.bf16.mxu0 0
    %4241 = vmatpush1.bf16.msra.mxu0 %v4029
    %4242 = vmatprep.subr.bf16.mxu0 0
    %4243 = vmatpush1.bf16.msra.mxu0 %v4028
    %4244 = vmatprep.subr.bf16.mxu0 0
    %4245 = vmatpush1.bf16.msra.mxu0 %v4027
    %4246 = vmatprep.subr.bf16.mxu0 0
    %4247 = vmatpush2.bf16.msra.mxu0 %v4042
    %4248 = vmatprep.subr.bf16.mxu0 0
    %4249 = vmatpush2.bf16.msra.mxu0 %v4041
    %4250 = vmatprep.subr.bf16.mxu0 0
    %4251 = vmatpush2.bf16.msra.mxu0 %v4040
    %4252 = vmatprep.subr.bf16.mxu0 0
    %4253 = vmatpush2.bf16.msra.mxu0 %v4039
    %4254 = vmatprep.subr.bf16.mxu0 0
    %4255 = vmatpush2.bf16.msra.mxu0 %v4038
    %4256 = vmatprep.subr.bf16.mxu0 0
    %4257 = vmatpush2.bf16.msra.mxu0 %v4037
    %4258 = vmatprep.subr.bf16.mxu0 0
    %4259 = vmatpush2.bf16.msra.mxu0 %v4036
    %4260 = vmatprep.subr.bf16.mxu0 0
    %4261 = vmatpush2.bf16.msra.mxu0 %v4035
    %4262 = vmatprep.mubr.bf16.mxu0 %v612
    %4263 = vmatmul.mubr.bf16.gmra.mxu0 %v611
    %v4264 = vpop.f32.mrf.mxu0
    %v4265 = vadd.f32 %v4224, %v4264
    %v4266 = vpop.f32.mrf.mxu0
    %v4267 = vpop.f32.mrf.mxu0
    %v4268 = vadd.f32 %v4227, %v4267
    %v4269 = vpop.f32.mrf.mxu0
    %4270 = vdwg.mxu0
    %v4271 = vlaneseq
    %v4272 = vand.u32 %v4271, 127
    %v4273 = vsub.f32 0.0, %v4265
    %v4274 = vsub.f32 0.0, %v4268
    %v4275 = vmul.f32 %v4273, 1.442695
    %v4276 = vpow.pop %v4275
    %v4277 = vmul.f32 %v4274, 1.442695
    %v4278 = vpow.pop %v4277
    %v4279 = vadd.f32 %v4276, 1.0
    %v4280 = vadd.f32 %v4278, 1.0
    %v4281 = vrcp.pop %v4279
    %v4282 = vrcp.pop %v4280
    %vm4283 = vcmp.lt.s32.totalorder %v4272, 64
    %v4284 = vsel %vm4283, %v4281, %v4265
    %v4285 = vsel %vm4283, %v4282, %v4268
    %4286 = vst [vmem:[#allocation23] sm:$0xff] %v4284
    %4287 = vst [vmem:[#allocation23 + $0x8] sm:$0xff] %v4285
    // Predicated region
    $region146: #{tpu_custom_call.1} parent=1 // pred_check
      _
    $region147: #{tpu_custom_call.1} parent=1 // pred_check_branch
      %4289 = sbr.rel (0) target = $region149
    $region148: #{tpu_custom_call.1} parent=1 // pred_region
      %s4291 = ssub.s32 256, 256
      %4292 = vsyncadd [#allocation4], %s4291
      %s4293 = sshll.u32 [#allocation23], 4
      %s4294 = int_to_ptr.vmem [resolvable:$true] %s4293
      %4299 = dma.vmem_to_hbm [thread:$0]  %s4294, 256, %s23, [#allocation4], 128, 128, 8
    $region149: #{tpu_custom_call.1} parent=1 // pred_fallthru
      _
    // Predicated region
    $region150: #{tpu_custom_call.1} parent=1 // pred_check
      _
    $region151: #{tpu_custom_call.1} parent=1 // pred_check_branch
      %4301 = sbr.rel (0) target = $region153
    $region152: #{tpu_custom_call.1} parent=1 // pred_region
      %4302 = dma.done [#allocation4], 256
    $region153: #{tpu_custom_call.1} parent=1 // pred_fallthru
      _
    %4303 = vsyncpa [#allocation3], 1
    %4304 = vsyncpa [#allocation6], 1
    %4305 = vsyncpa [#allocation9], 1
    %4306 = vsyncpa [#allocation12], 1
    %4307 = vsyncpa [#allocation15], 1
    %4308 = vsyncpa [#allocation18], 1
    %4309 = vsyncpa [#allocation21], 1
    %4310 = vsyncpa [#allocation4], 1

</llo_original>
